<compile_context>
chip_gen: v6e
topology: v6e:2x2x1
jax: 0.10.0
libtpu: 0.0.40
codegen_flags: <defaults>
</compile_context>

<pallas_src>
import functools

import jax
import jax.numpy as jnp
from jax.experimental import pallas as pl
from jax.experimental.pallas import tpu as pltpu

LANE = 128
SUBLANE = 8
EPS = 1e-5


def _round_up(n, m):
    return ((n + m - 1) // m) * m


def fused_autoslim_kernel(v0_ref, v1_ref, v2_ref, w_ref, b_ref, wfc_ref,
                          bfc_ref, o_ref, acc_ref, *, out_w, tile_h):
    """3x3 conv (shifted taps, folded mask/BN/bias) -> ReLU -> global-avg-pool
    accumulation -> final FC.

    v{0,1,2}_ref : [1, tile_h, wp2, cin_p]  bf16 row-shifted activation views
    w_ref        : [9, cin_p, cout_p]       bf16 folded per-tap conv weights
    b_ref        : [1, cout_p]              f32  folded conv bias + BN shift
    wfc_ref      : [cout_p, nc_p]           f32  FC weight (1/HW pool folded in)
    bfc_ref      : [1, nc_p]                f32  FC bias
    o_ref        : [1, 1, nc_p]             f32  logits (lane-dense, padded)
    acc_ref      : [1, cout_p]              f32  running spatial sum (pool acc)
    """
    s = pl.program_id(1)

    @pl.when(s == 0)
    def _():
        acc_ref[...] = jnp.zeros_like(acc_ref)

    views = (v0_ref[0], v1_ref[0], v2_ref[0])       # [tile_h, wp2, cin_p] bf16
    cin_p = views[0].shape[-1]
    cout_p = acc_ref.shape[-1]

    # 3x3 conv as 9 shifted-tap MXU dots, accumulated in f32.
    pre = jnp.zeros((tile_h * out_w, cout_p), jnp.float32)
    for di in range(3):                              # unrolled at trace time
        v = views[di]
        for dj in range(3):
            tap = v[:, dj:dj + out_w, :].reshape(tile_h * out_w, cin_p)
            pre = pre + jnp.dot(tap, w_ref[di * 3 + dj],
                                preferred_element_type=jnp.float32)

    # Epilogue: bias (+ folded BN shift) + ReLU, then partial global-avg-pool.
    y = jnp.maximum(pre + b_ref[...], 0.0)
    acc_ref[...] += jnp.sum(y, axis=0, keepdims=True)

    @pl.when(s == pl.num_programs(1) - 1)
    def _():
        # NOTE: o_ref's block index is constant in s (accumulator-style
        # revisiting).  It must only be written here, on the last spatial
        # step; do not make out_specs depend on s.
        o_ref[0] = (jnp.dot(acc_ref[...], wfc_ref[...],
                            preferred_element_type=jnp.float32)
                    + bfc_ref[...])


def _pick_tile_h(H, W, wp2, cin_p, cout_p, nc_p, budget_bytes):
    """Largest divisor of H whose per-step VMEM working set fits the budget."""
    fixed = (2 * 9 * cin_p * cout_p * 2        # per-tap weights (x2 pipeline bufs)
             + 2 * cout_p * nc_p * 4           # FC weight
             + 2 * (cout_p + 2 * nc_p) * 4     # biases + logits block
             + cout_p * 4)                     # pool accumulator scratch
    best = 1
    for th in range(1, H + 1):
        if H % th:
            continue
        act = 3 * 2 * th * wp2 * cin_p * 2     # 3 shifted views, double-buffered
        work = th * W * (3 * cout_p * 4 + 2 * cin_p * 2)   # pre/relu + tap slices
        if fixed + act + work <= budget_bytes:
            best = th
    return best


def autoslim_forward(x_nchw, params, *, vmem_budget_bytes=20 * 1024 * 1024):
    B, Cin, H, W = x_nchw.shape
    Cout = params["w_conv"].shape[0]
    num_classes = params["w_fc"].shape[0]
    HW = H * W

    cin_p = _round_up(Cin, LANE)      # lane-dense contraction dim per tap
    cout_p = _round_up(Cout, LANE)    # lane-dense conv channels (>=128; multiples
                                      # of 128 also fill v6e/v7x 256-wide passes)
    nc_p = _round_up(num_classes, LANE)
    wp2 = _round_up(W + 2, SUBLANE)   # padded width incl. conv halo, sublane-aligned

    th = _pick_tile_h(H, W, wp2, cin_p, cout_p, nc_p, vmem_budget_bytes)
    n_s = H // th

    # --- activations: NCHW -> NHWC, halo pad, channel pad to 128 lanes, bf16 ---
    x = jnp.transpose(x_nchw, (0, 2, 3, 1)).astype(jnp.float32)
    x = jnp.pad(x, ((0, 0), (1, 1), (1, 1), (0, cin_p - Cin)))
    x = jnp.pad(x, ((0, 0), (0, 0), (0, wp2 - (W + 2)), (0, 0)))
    x = x.astype(jnp.bfloat16)
    # Three row-shifted views replace the 9x im2col slab (3x activation reads,
    # lane-dense contraction dim).
    # TODO(synk): a manual halo DMA (memory_space=pl.ANY) would cut this to 1x
    # activation traffic; kept on BlockSpecs for simplicity/robustness.
    views = [x[:, di:di + H, :, :] for di in range(3)]

    # --- fold pruner out_mask + BatchNorm(eval) + conv bias into weights ---
    #   original: relu(((conv + b) * mask) * scale + shift) * mask
    #   folded  : relu(conv @ (w*scale*mask) + (b*scale + shift)*mask)
    # identical output, incl. masked channels (exactly 0 after ReLU either way).
    scale = params["bn_gamma"] / jnp.sqrt(params["bn_var"] + EPS)
    shift = params["bn_beta"] - params["bn_mean"] * scale
    mask = params["out_mask"]
    w_t = jnp.transpose(params["w_conv"], (2, 3, 1, 0))        # [3,3,Cin,Cout]
    w_t = w_t * (scale * mask)[None, None, None, :]
    w_taps = jnp.zeros((9, cin_p, cout_p), jnp.float32)
    w_taps = w_taps.at[:, :Cin, :Cout].set(w_t.reshape(9, Cin, Cout))
    w_taps = w_taps.astype(jnp.bfloat16)
    b_fold = jnp.zeros((1, cout_p), jnp.float32)
    b_fold = b_fold.at[0, :Cout].set((params["b_conv"] * scale + shift) * mask)

    # --- FC: transpose, fold the 1/HW pooling scale, pad lane-dense (f32;
    #     tiny traffic, keeps the final logits at full precision) ---
    w_fc = jnp.zeros((cout_p, nc_p), jnp.float32)
    w_fc = w_fc.at[:Cout, :num_classes].set(params["w_fc"].T / HW)
    b_fc = jnp.zeros((1, nc_p), jnp.float32)
    b_fc = b_fc.at[0, :num_classes].set(params["b_fc"])

    kernel = functools.partial(fused_autoslim_kernel, out_w=W, tile_h=th)

    view_spec = pl.BlockSpec((1, th, wp2, cin_p), lambda b, s: (b, s, 0, 0))
    # Constant-index weight blocks are only DMA'd once by the pipeline; their
    # double-buffer VMEM cost is accounted for in _pick_tile_h.  Single-buffer
    # them (pl.Buffered(1) / manual scratch DMA) if they ever dominate VMEM.
    out = pl.pallas_call(
        kernel,
        out_shape=jax.ShapeDtypeStruct((B, 1, nc_p), jnp.float32),
        grid_spec=pltpu.PrefetchScalarGridSpec(
            num_scalar_prefetch=0,
            grid=(B, n_s),
            in_specs=[
                view_spec, view_spec, view_spec,                       # x views
                pl.BlockSpec((9, cin_p, cout_p), lambda b, s: (0, 0, 0)),  # w_taps
                pl.BlockSpec((1, cout_p), lambda b, s: (0, 0)),            # b_fold
                pl.BlockSpec((cout_p, nc_p), lambda b, s: (0, 0)),         # w_fc
                pl.BlockSpec((1, nc_p), lambda b, s: (0, 0)),              # b_fc
            ],
            out_specs=pl.BlockSpec((1, 1, nc_p), lambda b, s: (b, 0, 0)),
            scratch_shapes=[pltpu.VMEM((1, cout_p), jnp.float32)],
        ),
        compiler_params=pltpu.CompilerParams(
            dimension_semantics=("parallel", "arbitrary"),
            vmem_limit_bytes=32 * 1024 * 1024),
    )(*views, w_taps, b_fold, w_fc, b_fc)

    return out[:, 0, :num_classes]


def make_params(key, cin=3, cout=8, num_classes=10):
    ks = jax.random.split(key, 6)
    w_conv = 0.1 * jax.random.normal(ks[0], (cout, cin, 3, 3), jnp.float32)
    b_conv = 0.1 * jax.random.normal(ks[1], (cout,), jnp.float32)
    bn_gamma = 1.0 + 0.1 * jax.random.normal(ks[2], (cout,), jnp.float32)
    bn_beta = 0.1 * jax.random.normal(ks[3], (cout,), jnp.float32)
    bn_mean = jnp.zeros((cout,), jnp.float32)
    bn_var = jnp.ones((cout,), jnp.float32)
    w_fc = 0.1 * jax.random.normal(ks[4], (num_classes, cout), jnp.float32)
    b_fc = 0.1 * jax.random.normal(ks[5], (num_classes,), jnp.float32)
    # Pruner channel mask: keep 6 of 8 channels (deterministic subnet).
    out_mask = jnp.array([1, 1, 1, 1, 1, 1, 0, 0], jnp.float32)[:cout]
    return dict(
        w_conv=w_conv, b_conv=b_conv,
        bn_gamma=bn_gamma, bn_beta=bn_beta, bn_mean=bn_mean, bn_var=bn_var,
        w_fc=w_fc, b_fc=b_fc, out_mask=out_mask,
    )


def reference_forward(x_nchw, params):
    """Pure-JAX f32 reference (unfolded, unpadded) for a sanity check."""
    B, Cin, H, W = x_nchw.shape
    x = jnp.transpose(x_nchw, (0, 2, 3, 1)).astype(jnp.float32)
    xp = jnp.pad(x, ((0, 0), (1, 1), (1, 1), (0, 0)))
    w = params["w_conv"].astype(jnp.float32)
    Cout = w.shape[0]
    y = jnp.zeros((B, H, W, Cout), jnp.float32)
    for di in range(3):
        for dj in range(3):
            y = y + jnp.einsum("bhwc,oc->bhwo",
                               xp[:, di:di + H, dj:dj + W, :], w[:, :, di, dj])
    y = (y + params["b_conv"]) * params["out_mask"]
    scale = params["bn_gamma"] / jnp.sqrt(params["bn_var"] + EPS)
    shift = params["bn_beta"] - params["bn_mean"] * scale
    y = jnp.maximum(y * scale + shift, 0.0) * params["out_mask"]
    pooled = y.mean(axis=(1, 2)) * params["out_mask"]
    return pooled @ params["w_fc"].T + params["b_fc"]


if __name__ == "__main__":
    key = jax.random.PRNGKey(0)
    k_x, k_p = jax.random.split(key)

    B, Cin, H, W = 2, 3, 16, 16
    x = jax.random.normal(k_x, (B, Cin, H, W), jnp.float32)   # NCHW, like PyTorch
    params = make_params(k_p, cin=Cin, cout=8, num_classes=10)

    out = autoslim_forward(x, params)
    out = jax.block_until_ready(out)

    ref = reference_forward(x, params)
    assert out.shape == (B, 10)
    err = float(jnp.max(jnp.abs(out - ref)))
    # bf16 conv operands (f32 accumulation) vs an all-f32 reference.
    assert err < 2e-2, f"max abs err {err}"

    print("KERNEL_OK")
</pallas_src>

<mosaic_0001>
module attributes {stable_mosaic.version = 11 : i64} {
  func.func @fused_autoslim_kernel(%arg0: i32, %arg1: i32, %arg2: memref<1x16x24x128xbf16, #tpu.memory_space<vmem>>, %arg3: memref<1x16x24x128xbf16, #tpu.memory_space<vmem>>, %arg4: memref<1x16x24x128xbf16, #tpu.memory_space<vmem>>, %arg5: memref<9x128x128xbf16, #tpu.memory_space<vmem>>, %arg6: memref<1x128xf32, #tpu.memory_space<vmem>>, %arg7: memref<128x128xf32, #tpu.memory_space<vmem>>, %arg8: memref<1x128xf32, #tpu.memory_space<vmem>>, %arg9: memref<1x1x128xf32, #tpu.memory_space<vmem>>, %arg10: memref<1x128xf32, #tpu.memory_space<vmem>>) attributes {dimension_semantics = [#tpu.dimension_semantics<parallel>, #tpu.dimension_semantics<arbitrary>], iteration_bounds = array<i64: 2, 1>, scalar_prefetch = 0 : i64, scratch_operands = 1 : i64, tpu.core_type = #tpu.core_type<tc>, window_params = [{transform_indices = @transform_0, window_bounds = array<i64: 1, 16, 24, 128>}, {transform_indices = @transform_1, window_bounds = array<i64: 1, 16, 24, 128>}, {transform_indices = @transform_2, window_bounds = array<i64: 1, 16, 24, 128>}, {pipeline_mode = #tpu.pipeline_mode<synchronous>, transform_indices = @transform_3, window_bounds = array<i64: 9, 128, 128>}, {pipeline_mode = #tpu.pipeline_mode<synchronous>, transform_indices = @transform_4, window_bounds = array<i64: 1, 128>}, {pipeline_mode = #tpu.pipeline_mode<synchronous>, transform_indices = @transform_5, window_bounds = array<i64: 128, 128>}, {pipeline_mode = #tpu.pipeline_mode<synchronous>, transform_indices = @transform_6, window_bounds = array<i64: 1, 128>}, {transform_indices = @transform_7, window_bounds = array<i64: 1, 1, 128>}]} {
    %c0_i32 = arith.constant 0 : i32
    %0 = arith.cmpi eq, %arg1, %c0_i32 : i32
    %1 = arith.extui %0 : i1 to i32
    %c0_i32_0 = arith.constant 0 : i32
    %2 = arith.cmpi ne, %1, %c0_i32_0 : i32
    scf.if %2 {
      %cst_50 = arith.constant 0.000000e+00 : f32
      %77 = vector.broadcast %cst_50 : f32 to vector<1x128xf32>
      %c0_51 = arith.constant 0 : index
      %c0_52 = arith.constant 0 : index
      %78 = vector.load %arg10[%c0_51, %c0_52] : memref<1x128xf32, #tpu.memory_space<vmem>>, vector<1x128xf32>
      tpu.vector_store %arg10[%c0_51, %c0_52], %77 {strides = array<i32>} : memref<1x128xf32, #tpu.memory_space<vmem>>, vector<1x128xf32>,
    } else {
    }
    %c0 = arith.constant 0 : index
    %c0_1 = arith.constant 0 : index
    %c0_2 = arith.constant 0 : index
    %c0_3 = arith.constant 0 : index
    %3 = vector.load %arg2[%c0, %c0_1, %c0_2, %c0_3] : memref<1x16x24x128xbf16, #tpu.memory_space<vmem>>, vector<1x16x24x128xbf16>
    %4 = vector.shape_cast %3 : vector<1x16x24x128xbf16> to vector<16x24x128xbf16>
    %c0_4 = arith.constant 0 : index
    %c0_5 = arith.constant 0 : index
    %c0_6 = arith.constant 0 : index
    %c0_7 = arith.constant 0 : index
    %5 = vector.load %arg3[%c0_4, %c0_5, %c0_6, %c0_7] : memref<1x16x24x128xbf16, #tpu.memory_space<vmem>>, vector<1x16x24x128xbf16>
    %6 = vector.shape_cast %5 : vector<1x16x24x128xbf16> to vector<16x24x128xbf16>
    %c0_8 = arith.constant 0 : index
    %c0_9 = arith.constant 0 : index
    %c0_10 = arith.constant 0 : index
    %c0_11 = arith.constant 0 : index
    %7 = vector.load %arg4[%c0_8, %c0_9, %c0_10, %c0_11] : memref<1x16x24x128xbf16, #tpu.memory_space<vmem>>, vector<1x16x24x128xbf16>
    %8 = vector.shape_cast %7 : vector<1x16x24x128xbf16> to vector<16x24x128xbf16>
    %cst = arith.constant 0.000000e+00 : f32
    %9 = vector.broadcast %cst : f32 to vector<256x128xf32>
    %10 = vector.extract_strided_slice %4 {offsets = [0, 0, 0], sizes = [16, 16, 128], strides = [1, 1, 1]} : vector<16x24x128xbf16> to vector<16x16x128xbf16>
    %11 = vector.shape_cast %10 : vector<16x16x128xbf16> to vector<256x128xbf16>
    %c0_12 = arith.constant 0 : index
    %c0_13 = arith.constant 0 : index
    %c0_14 = arith.constant 0 : index
    %12 = vector.load %arg5[%c0_12, %c0_13, %c0_14] : memref<9x128x128xbf16, #tpu.memory_space<vmem>>, vector<1x128x128xbf16>
    %13 = vector.shape_cast %12 : vector<1x128x128xbf16> to vector<128x128xbf16>
    %cst_15 = arith.constant dense<0.000000e+00> : vector<256x128xf32>
    %14 = tpu.matmul %11, %13, %cst_15 {dimension_numbers = #tpu.dot_dimension_numbers<[1], [0], [0], [1], [0, 0, 1, 1], [], []>} : vector<256x128xbf16>, vector<128x128xbf16>, vector<256x128xf32> -> vector<256x128xf32>
    %15 = arith.addf %9, %14 : vector<256x128xf32>
    %16 = vector.extract_strided_slice %4 {offsets = [0, 1, 0], sizes = [16, 16, 128], strides = [1, 1, 1]} : vector<16x24x128xbf16> to vector<16x16x128xbf16>
    %17 = vector.shape_cast %16 : vector<16x16x128xbf16> to vector<256x128xbf16>
    %c1 = arith.constant 1 : index
    %c0_16 = arith.constant 0 : index
    %c0_17 = arith.constant 0 : index
    %18 = vector.load %arg5[%c1, %c0_16, %c0_17] : memref<9x128x128xbf16, #tpu.memory_space<vmem>>, vector<1x128x128xbf16>
    %19 = vector.shape_cast %18 : vector<1x128x128xbf16> to vector<128x128xbf16>
    %cst_18 = arith.constant dense<0.000000e+00> : vector<256x128xf32>
    %20 = tpu.matmul %17, %19, %cst_18 {dimension_numbers = #tpu.dot_dimension_numbers<[1], [0], [0], [1], [0, 0, 1, 1], [], []>} : vector<256x128xbf16>, vector<128x128xbf16>, vector<256x128xf32> -> vector<256x128xf32>
    %21 = arith.addf %15, %20 : vector<256x128xf32>
    %22 = vector.extract_strided_slice %4 {offsets = [0, 2, 0], sizes = [16, 16, 128], strides = [1, 1, 1]} : vector<16x24x128xbf16> to vector<16x16x128xbf16>
    %23 = vector.shape_cast %22 : vector<16x16x128xbf16> to vector<256x128xbf16>
    %c2 = arith.constant 2 : index
    %c0_19 = arith.constant 0 : index
    %c0_20 = arith.constant 0 : index
    %24 = vector.load %arg5[%c2, %c0_19, %c0_20] : memref<9x128x128xbf16, #tpu.memory_space<vmem>>, vector<1x128x128xbf16>
    %25 = vector.shape_cast %24 : vector<1x128x128xbf16> to vector<128x128xbf16>
    %cst_21 = arith.constant dense<0.000000e+00> : vector<256x128xf32>
    %26 = tpu.matmul %23, %25, %cst_21 {dimension_numbers = #tpu.dot_dimension_numbers<[1], [0], [0], [1], [0, 0, 1, 1], [], []>} : vector<256x128xbf16>, vector<128x128xbf16>, vector<256x128xf32> -> vector<256x128xf32>
    %27 = arith.addf %21, %26 : vector<256x128xf32>
    %28 = vector.extract_strided_slice %6 {offsets = [0, 0, 0], sizes = [16, 16, 128], strides = [1, 1, 1]} : vector<16x24x128xbf16> to vector<16x16x128xbf16>
    %29 = vector.shape_cast %28 : vector<16x16x128xbf16> to vector<256x128xbf16>
    %c3 = arith.constant 3 : index
    %c0_22 = arith.constant 0 : index
    %c0_23 = arith.constant 0 : index
    %30 = vector.load %arg5[%c3, %c0_22, %c0_23] : memref<9x128x128xbf16, #tpu.memory_space<vmem>>, vector<1x128x128xbf16>
    %31 = vector.shape_cast %30 : vector<1x128x128xbf16> to vector<128x128xbf16>
    %cst_24 = arith.constant dense<0.000000e+00> : vector<256x128xf32>
    %32 = tpu.matmul %29, %31, %cst_24 {dimension_numbers = #tpu.dot_dimension_numbers<[1], [0], [0], [1], [0, 0, 1, 1], [], []>} : vector<256x128xbf16>, vector<128x128xbf16>, vector<256x128xf32> -> vector<256x128xf32>
    %33 = arith.addf %27, %32 : vector<256x128xf32>
    %34 = vector.extract_strided_slice %6 {offsets = [0, 1, 0], sizes = [16, 16, 128], strides = [1, 1, 1]} : vector<16x24x128xbf16> to vector<16x16x128xbf16>
    %35 = vector.shape_cast %34 : vector<16x16x128xbf16> to vector<256x128xbf16>
    %c4 = arith.constant 4 : index
    %c0_25 = arith.constant 0 : index
    %c0_26 = arith.constant 0 : index
    %36 = vector.load %arg5[%c4, %c0_25, %c0_26] : memref<9x128x128xbf16, #tpu.memory_space<vmem>>, vector<1x128x128xbf16>
    %37 = vector.shape_cast %36 : vector<1x128x128xbf16> to vector<128x128xbf16>
    %cst_27 = arith.constant dense<0.000000e+00> : vector<256x128xf32>
    %38 = tpu.matmul %35, %37, %cst_27 {dimension_numbers = #tpu.dot_dimension_numbers<[1], [0], [0], [1], [0, 0, 1, 1], [], []>} : vector<256x128xbf16>, vector<128x128xbf16>, vector<256x128xf32> -> vector<256x128xf32>
    %39 = arith.addf %33, %38 : vector<256x128xf32>
    %40 = vector.extract_strided_slice %6 {offsets = [0, 2, 0], sizes = [16, 16, 128], strides = [1, 1, 1]} : vector<16x24x128xbf16> to vector<16x16x128xbf16>
    %41 = vector.shape_cast %40 : vector<16x16x128xbf16> to vector<256x128xbf16>
    %c5 = arith.constant 5 : index
    %c0_28 = arith.constant 0 : index
    %c0_29 = arith.constant 0 : index
    %42 = vector.load %arg5[%c5, %c0_28, %c0_29] : memref<9x128x128xbf16, #tpu.memory_space<vmem>>, vector<1x128x128xbf16>
    %43 = vector.shape_cast %42 : vector<1x128x128xbf16> to vector<128x128xbf16>
    %cst_30 = arith.constant dense<0.000000e+00> : vector<256x128xf32>
    %44 = tpu.matmul %41, %43, %cst_30 {dimension_numbers = #tpu.dot_dimension_numbers<[1], [0], [0], [1], [0, 0, 1, 1], [], []>} : vector<256x128xbf16>, vector<128x128xbf16>, vector<256x128xf32> -> vector<256x128xf32>
    %45 = arith.addf %39, %44 : vector<256x128xf32>
    %46 = vector.extract_strided_slice %8 {offsets = [0, 0, 0], sizes = [16, 16, 128], strides = [1, 1, 1]} : vector<16x24x128xbf16> to vector<16x16x128xbf16>
    %47 = vector.shape_cast %46 : vector<16x16x128xbf16> to vector<256x128xbf16>
    %c6 = arith.constant 6 : index
    %c0_31 = arith.constant 0 : index
    %c0_32 = arith.constant 0 : index
    %48 = vector.load %arg5[%c6, %c0_31, %c0_32] : memref<9x128x128xbf16, #tpu.memory_space<vmem>>, vector<1x128x128xbf16>
    %49 = vector.shape_cast %48 : vector<1x128x128xbf16> to vector<128x128xbf16>
    %cst_33 = arith.constant dense<0.000000e+00> : vector<256x128xf32>
    %50 = tpu.matmul %47, %49, %cst_33 {dimension_numbers = #tpu.dot_dimension_numbers<[1], [0], [0], [1], [0, 0, 1, 1], [], []>} : vector<256x128xbf16>, vector<128x128xbf16>, vector<256x128xf32> -> vector<256x128xf32>
    %51 = arith.addf %45, %50 : vector<256x128xf32>
    %52 = vector.extract_strided_slice %8 {offsets = [0, 1, 0], sizes = [16, 16, 128], strides = [1, 1, 1]} : vector<16x24x128xbf16> to vector<16x16x128xbf16>
    %53 = vector.shape_cast %52 : vector<16x16x128xbf16> to vector<256x128xbf16>
    %c7 = arith.constant 7 : index
    %c0_34 = arith.constant 0 : index
    %c0_35 = arith.constant 0 : index
    %54 = vector.load %arg5[%c7, %c0_34, %c0_35] : memref<9x128x128xbf16, #tpu.memory_space<vmem>>, vector<1x128x128xbf16>
    %55 = vector.shape_cast %54 : vector<1x128x128xbf16> to vector<128x128xbf16>
    %cst_36 = arith.constant dense<0.000000e+00> : vector<256x128xf32>
    %56 = tpu.matmul %53, %55, %cst_36 {dimension_numbers = #tpu.dot_dimension_numbers<[1], [0], [0], [1], [0, 0, 1, 1], [], []>} : vector<256x128xbf16>, vector<128x128xbf16>, vector<256x128xf32> -> vector<256x128xf32>
    %57 = arith.addf %51, %56 : vector<256x128xf32>
    %58 = vector.extract_strided_slice %8 {offsets = [0, 2, 0], sizes = [16, 16, 128], strides = [1, 1, 1]} : vector<16x24x128xbf16> to vector<16x16x128xbf16>
    %59 = vector.shape_cast %58 : vector<16x16x128xbf16> to vector<256x128xbf16>
    %c8 = arith.constant 8 : index
    %c0_37 = arith.constant 0 : index
    %c0_38 = arith.constant 0 : index
    %60 = vector.load %arg5[%c8, %c0_37, %c0_38] : memref<9x128x128xbf16, #tpu.memory_space<vmem>>, vector<1x128x128xbf16>
    %61 = vector.shape_cast %60 : vector<1x128x128xbf16> to vector<128x128xbf16>
    %cst_39 = arith.constant dense<0.000000e+00> : vector<256x128xf32>
    %62 = tpu.matmul %59, %61, %cst_39 {dimension_numbers = #tpu.dot_dimension_numbers<[1], [0], [0], [1], [0, 0, 1, 1], [], []>} : vector<256x128xbf16>, vector<128x128xbf16>, vector<256x128xf32> -> vector<256x128xf32>
    %63 = arith.addf %57, %62 : vector<256x128xf32>
    %c0_40 = arith.constant 0 : index
    %c0_41 = arith.constant 0 : index
    %64 = vector.load %arg6[%c0_40, %c0_41] : memref<1x128xf32, #tpu.memory_space<vmem>>, vector<1x128xf32>
    %65 = vector.broadcast %64 : vector<1x128xf32> to vector<256x128xf32>
    %66 = arith.addf %63, %65 : vector<256x128xf32>
    %cst_42 = arith.constant 0.000000e+00 : f32
    %67 = vector.broadcast %cst_42 : f32 to vector<256x128xf32>
    %68 = arith.maximumf %66, %67 : vector<256x128xf32>
    %c0_43 = arith.constant 0 : index
    %c0_44 = arith.constant 0 : index
    %69 = vector.load %arg10[%c0_43, %c0_44] : memref<1x128xf32, #tpu.memory_space<vmem>>, vector<1x128xf32>
    %cst_45 = arith.constant dense<0.000000e+00> : vector<128xf32>
    %70 = vector.multi_reduction <add>, %68, %cst_45 [0] : vector<256x128xf32> to vector<128xf32>
    %71 = vector.shape_cast %70 : vector<128xf32> to vector<1x128xf32>
    %72 = arith.addf %69, %71 : vector<1x128xf32>
    %c0_46 = arith.constant 0 : index
    %c0_47 = arith.constant 0 : index
    %73 = vector.load %arg10[%c0_46, %c0_47] : memref<1x128xf32, #tpu.memory_space<vmem>>, vector<1x128xf32>
    tpu.vector_store %arg10[%c0_46, %c0_47], %72 {strides = array<i32>} : memref<1x128xf32, #tpu.memory_space<vmem>>, vector<1x128xf32>,
    %c0_i32_48 = arith.constant 0 : i32
    %74 = arith.cmpi eq, %arg1, %c0_i32_48 : i32
    %75 = arith.extui %74 : i1 to i32
    %c0_i32_49 = arith.constant 0 : i32
    %76 = arith.cmpi ne, %75, %c0_i32_49 : i32
    scf.if %76 {
      %c0_50 = arith.constant 0 : index
      %c0_51 = arith.constant 0 : index
      %77 = vector.load %arg10[%c0_50, %c0_51] : memref<1x128xf32, #tpu.memory_space<vmem>>, vector<1x128xf32>
      %c0_52 = arith.constant 0 : index
      %c0_53 = arith.constant 0 : index
      %78 = vector.load %arg7[%c0_52, %c0_53] : memref<128x128xf32, #tpu.memory_space<vmem>>, vector<128x128xf32>
      %cst_54 = arith.constant dense<0.000000e+00> : vector<1x128xf32>
      %79 = tpu.matmul %77, %78, %cst_54 {dimension_numbers = #tpu.dot_dimension_numbers<[1], [0], [0], [1], [0, 0, 1, 1], [], []>} : vector<1x128xf32>, vector<128x128xf32>, vector<1x128xf32> -> vector<1x128xf32>
      %c0_55 = arith.constant 0 : index
      %c0_56 = arith.constant 0 : index
      %80 = vector.load %arg8[%c0_55, %c0_56] : memref<1x128xf32, #tpu.memory_space<vmem>>, vector<1x128xf32>
      %81 = arith.addf %79, %80 : vector<1x128xf32>
      %c0_57 = arith.constant 0 : index
      %c0_58 = arith.constant 0 : index
      %c0_59 = arith.constant 0 : index
      %82 = vector.load %arg9[%c0_57, %c0_58, %c0_59] : memref<1x1x128xf32, #tpu.memory_space<vmem>>, vector<1x1x128xf32>
      %83 = vector.shape_cast %82 : vector<1x1x128xf32> to vector<1x128xf32>
      %84 = vector.shape_cast %81 : vector<1x128xf32> to vector<1x1x128xf32>
      tpu.vector_store %arg9[%c0_57, %c0_58, %c0_59], %84 {strides = array<i32>} : memref<1x1x128xf32, #tpu.memory_space<vmem>>, vector<1x1x128xf32>,
    } else {
    }
    return
  }
  func.func @transform_0(%arg0: i32, %arg1: i32) -> (i32, i32, i32, i32) {
    %c0_i32 = arith.constant 0 : i32
    %c0_i32_0 = arith.constant 0 : i32
    %c0_i32_1 = arith.constant 0 : i32
    return %arg0, %arg1, %c0_i32, %c0_i32_0 : i32, i32, i32, i32
  }
  func.func @transform_1(%arg0: i32, %arg1: i32) -> (i32, i32, i32, i32) {
    %c0_i32 = arith.constant 0 : i32
    %c0_i32_0 = arith.constant 0 : i32
    %c0_i32_1 = arith.constant 0 : i32
    return %arg0, %arg1, %c0_i32, %c0_i32_0 : i32, i32, i32, i32
  }
  func.func @transform_2(%arg0: i32, %arg1: i32) -> (i32, i32, i32, i32) {
    %c0_i32 = arith.constant 0 : i32
    %c0_i32_0 = arith.constant 0 : i32
    %c0_i32_1 = arith.constant 0 : i32
    return %arg0, %arg1, %c0_i32, %c0_i32_0 : i32, i32, i32, i32
  }
  func.func @transform_3(%arg0: i32, %arg1: i32) -> (i32, i32, i32) {
    %c0_i32 = arith.constant 0 : i32
    %c0_i32_0 = arith.constant 0 : i32
    %c0_i32_1 = arith.constant 0 : i32
    %c0_i32_2 = arith.constant 0 : i32
    return %c0_i32, %c0_i32_0, %c0_i32_1 : i32, i32, i32
  }
  func.func @transform_4(%arg0: i32, %arg1: i32) -> (i32, i32) {
    %c0_i32 = arith.constant 0 : i32
    %c0_i32_0 = arith.constant 0 : i32
    %c0_i32_1 = arith.constant 0 : i32
    return %c0_i32, %c0_i32_0 : i32, i32
  }
  func.func @transform_5(%arg0: i32, %arg1: i32) -> (i32, i32) {
    %c0_i32 = arith.constant 0 : i32
    %c0_i32_0 = arith.constant 0 : i32
    %c0_i32_1 = arith.constant 0 : i32
    return %c0_i32, %c0_i32_0 : i32, i32
  }
  func.func @transform_6(%arg0: i32, %arg1: i32) -> (i32, i32) {
    %c0_i32 = arith.constant 0 : i32
    %c0_i32_0 = arith.constant 0 : i32
    %c0_i32_1 = arith.constant 0 : i32
    return %c0_i32, %c0_i32_0 : i32, i32
  }
  func.func @transform_7(%arg0: i32, %arg1: i32) -> (i32, i32, i32) {
    %c0_i32 = arith.constant 0 : i32
    %c0_i32_0 = arith.constant 0 : i32
    %c0_i32_1 = arith.constant 0 : i32
    return %arg0, %c0_i32, %c0_i32_0 : i32, i32, i32
  }
}

</mosaic_0001>

<llo_original>
// kernel: tpu_custom_call.1
$region0: #{tpu_custom_call.1}
  #allocation0 [shape = 'u32[]', space=smem, size = 0x4, offset = 0x4, fixed_abs, tag = 'smem constant byte address 0x4 - core index']
  #allocation1 [shape = 'u32[144,128]{1,0:T(1,128)}', space=vmem, size = 0x12000, scoped, tag = 'internal scratch']
  #allocation2 [shape = 'f32[1,128]{1,0:T(1,128)}', space=vmem, size = 0x200, scoped, tag = 'scratch operand']
  %s0 = inlined_call_operand.hbm [shape: bf16[2,16,24,128], index: 0, kind: input, shape index: {}]
  %s1 = inlined_call_operand.hbm [shape: bf16[2,16,24,128], index: 1, kind: input, shape index: {}]
  %s2 = inlined_call_operand.hbm [shape: bf16[2,16,24,128], index: 2, kind: input, shape index: {}]
  %s3 = inlined_call_operand.hbm [shape: bf16[9,128,128], index: 3, kind: input, shape index: {}]
  %s4 = inlined_call_operand.vmem [shape: f32[1,128], index: 4, kind: input, shape index: {}]
  %s5 = inlined_call_operand.hbm [shape: f32[128,128], index: 5, kind: input, shape index: {}]
  %s6 = inlined_call_operand.vmem [shape: f32[1,128], index: 6, kind: input, shape index: {}]
  %s7 = inlined_call_operand.hbm [shape: f32[2,1,128], index: 7, kind: output, shape index: {}]
  %s8 = sld [smem:[#allocation0]]
  $region89: #{tpu_custom_call.1} parent=0
    _
  %s10 = ssub.s32 1, %s8
  %s11 = scalar_select 0, %s10, %s8
  $region1: #{tpu_custom_call.1} parent=0
    #allocation3 [shape = 'u8[196608]{0}', space=vmem, size = 0x30000, scoped, tag = 'input window, operand 0']
    #allocation4 [shape = 's32[2]{0}', space=sflag, size = 0x8, scoped, tag = 'scoped memory for tpu_custom_call.1']
    #allocation5 [shape = 's32[2]{0}', space=sflag, size = 0x8, scoped, tag = 'scoped memory for tpu_custom_call.1']
    #allocation6 [shape = 'u8[196608]{0}', space=vmem, size = 0x30000, scoped, tag = 'input window, operand 1']
    #allocation7 [shape = 's32[2]{0}', space=sflag, size = 0x8, scoped, tag = 'scoped memory for tpu_custom_call.1']
    #allocation8 [shape = 'u8[196608]{0}', space=vmem, size = 0x30000, scoped, tag = 'input window, operand 2']
    #allocation9 [shape = 'u8[294912]{0}', space=vmem, size = 0x48000, scoped, tag = 'input window, operand 3, single buffered']
    #allocation10 [shape = 's32[1]{0}', space=sflag, size = 0x4, scoped, tag = 'scoped memory for tpu_custom_call.1']
    #allocation11 [shape = 'u8[65536]{0}', space=vmem, size = 0x10000, scoped, tag = 'input window, operand 5, single buffered']
    #allocation12 [shape = 'u8[1024]{0}', space=vmem, size = 0x400, scoped, tag = 'output window, operand 0']
    %12 = vsyncpa [#allocation4], 0
    %s13 = scalar_lea.sflag [#allocation4], 1
    %14 = vsyncpa %s13, 0
    %15 = vsyncpa [#allocation7], 0
    %s16 = scalar_lea.sflag [#allocation7], 1
    %17 = vsyncpa %s16, 0
    %18 = vsyncpa [#allocation10], 0
    %19 = vsyncpa [#allocation5], 0
    %s20 = scalar_lea.sflag [#allocation5], 1
    %21 = vsyncpa %s20, 0
    loop: start=0, step=1, limit=4
    $region2: #{tpu_custom_call.1} parent=1 // loop_pre_header
      _
    $region3: #{tpu_custom_call.1} parent=1 // loop_header
      %s23 = sphi 0, %s27
      %p24 = scmp.ge.s32.totalorder %s23, 4
      %s30 = sphi 0, %s42
      %s31 = sphi 0, %s38
      %s32 = sphi 0, %s30
      %s33 = sphi 0, %s31
      %s34 = sphi 0, %s32
      %s35 = sphi 0, %s33
      %s47 = sphi 0, %s49
      %s50 = sphi 0, %s47
      %s51 = sphi 0, %s50
      %s67 = sphi 0, %s51
      %s75 = sphi 0, %s77
      %s78 = sphi 0, %s75
      %s79 = sphi 0, %s78
      %s95 = sphi 0, %s79
      %s103 = sphi 0, %s105
      %s106 = sphi 0, %s103
      %s107 = sphi 0, %s106
      %s123 = sphi 0, %s107
      %s127 = sphi 0, %s127
      %s129 = sphi 0, %s127
      %s130 = sphi 0, %s129
      %s144 = sphi 0, %s130
      %s148 = sphi 0, %s148
      %s150 = sphi 0, %s148
      %s151 = sphi 0, %s150
      %s165 = sphi 0, %s151
      %s169 = sphi 0, %s169
      %s171 = sphi 0, %s169
      %s172 = sphi 0, %s171
      %s186 = sphi 0, %s172
      %s190 = sphi 0, %s190
      %s192 = sphi 0, %s190
      %s193 = sphi 0, %s192
      %s207 = sphi 0, %s193
      %s213 = sphi 0, %s215
      %s216 = sphi 0, %s213
      %s217 = sphi 0, %s216
      %s233 = sphi 0, %s217
    $region4: #{tpu_custom_call.1} parent=1 // loop_header_branch
      %26 = sbr.rel (%p24) target = $region8
    $region5: #{tpu_custom_call.1} parent=1 // loop_body
      %s28 = ssub.s32 %s23, 1
      %s29 = ssub.s32 %s23, 2
      %s36 = sadd.s32 1, %s31
      %p37 = scmp.ge.s32.totalorder %s36, 1
      %s38 = scalar_select %p37, 0, %s36
      %s39 = sadd.s32 1, %s30
      %s40 = scalar_select %p37, %s39, %s30
      %p41 = scmp.ge.s32.totalorder %s40, 2
      %s42 = scalar_select %p41, 0, %s40
      %s43 = ssub.s32 %s30, %s42
      %s44 = ssub.s32 %s31, %s38
      %s45 = sor.u32 %s43, %s44
      %p46 = scmp.eq.s32.totalorder %s45, 0
      %s48 = sadd.s32 %s47, 1
      %s49 = scalar_select %p46, %s47, %s48
      %p52 = pneg %p46
      %p53 = scmp.eq.s32.totalorder %s23, 1
      %p54 = por %p52, %p53
      %p55 = scmp.ne.s32.totalorder %s47, %s50
      %p56 = scmp.eq.s32.totalorder %s23, 0
      %p57 = por %p55, %p56
      %p58 = scmp.ne.s32.totalorder %s47, %s50
      %p59 = scmp.eq.s32.totalorder %s28, 1
      %p60 = por %p58, %p59
      %p61 = scmp.ne.s32.totalorder %s50, %s51
      %p62 = scmp.eq.s32.totalorder %s28, 0
      %p63 = por %p61, %p62
      %p64 = scmp.ne.s32.totalorder %s50, %s51
      %p65 = scmp.eq.s32.totalorder %s29, 1
      %p66 = por %p64, %p65
      %p68 = scmp.ne.s32.totalorder %s51, %s67
      %p69 = scmp.eq.s32.totalorder %s29, 0
      %p70 = por %p68, %p69
      %s71 = ssub.s32 %s30, %s42
      %s72 = ssub.s32 %s31, %s38
      %s73 = sor.u32 %s71, %s72
      %p74 = scmp.eq.s32.totalorder %s73, 0
      %s76 = sadd.s32 %s75, 1
      %s77 = scalar_select %p74, %s75, %s76
      %p80 = pneg %p74
      %p81 = scmp.eq.s32.totalorder %s23, 1
      %p82 = por %p80, %p81
      %p83 = scmp.ne.s32.totalorder %s75, %s78
      %p84 = scmp.eq.s32.totalorder %s23, 0
      %p85 = por %p83, %p84
      %p86 = scmp.ne.s32.totalorder %s75, %s78
      %p87 = scmp.eq.s32.totalorder %s28, 1
      %p88 = por %p86, %p87
      %p89 = scmp.ne.s32.totalorder %s78, %s79
      %p90 = scmp.eq.s32.totalorder %s28, 0
      %p91 = por %p89, %p90
      %p92 = scmp.ne.s32.totalorder %s78, %s79
      %p93 = scmp.eq.s32.totalorder %s29, 1
      %p94 = por %p92, %p93
      %p96 = scmp.ne.s32.totalorder %s79, %s95
      %p97 = scmp.eq.s32.totalorder %s29, 0
      %p98 = por %p96, %p97
      %s99 = ssub.s32 %s30, %s42
      %s100 = ssub.s32 %s31, %s38
      %s101 = sor.u32 %s99, %s100
      %p102 = scmp.eq.s32.totalorder %s101, 0
      %s104 = sadd.s32 %s103, 1
      %s105 = scalar_select %p102, %s103, %s104
      %p108 = pneg %p102
      %p109 = scmp.eq.s32.totalorder %s23, 1
      %p110 = por %p108, %p109
      %p111 = scmp.ne.s32.totalorder %s103, %s106
      %p112 = scmp.eq.s32.totalorder %s23, 0
      %p113 = por %p111, %p112
      %p114 = scmp.ne.s32.totalorder %s103, %s106
      %p115 = scmp.eq.s32.totalorder %s28, 1
      %p116 = por %p114, %p115
      %p117 = scmp.ne.s32.totalorder %s106, %s107
      %p118 = scmp.eq.s32.totalorder %s28, 0
      %p119 = por %p117, %p118
      %p120 = scmp.ne.s32.totalorder %s106, %s107
      %p121 = scmp.eq.s32.totalorder %s29, 1
      %p122 = por %p120, %p121
      %p124 = scmp.ne.s32.totalorder %s107, %s123
      %p125 = scmp.eq.s32.totalorder %s29, 0
      %p126 = por %p124, %p125
      %s128 = sadd.s32 %s127, 1
      %p131 = scmp.eq.s32.totalorder %s23, 1
      %p132 = scmp.ne.s32.totalorder %s127, %s129
      %p133 = scmp.eq.s32.totalorder %s23, 0
      %p134 = por %p132, %p133
      %p135 = scmp.ne.s32.totalorder %s127, %s129
      %p136 = scmp.eq.s32.totalorder %s28, 1
      %p137 = por %p135, %p136
      %p138 = scmp.ne.s32.totalorder %s129, %s130
      %p139 = scmp.eq.s32.totalorder %s28, 0
      %p140 = por %p138, %p139
      %p141 = scmp.ne.s32.totalorder %s129, %s130
      %p142 = scmp.eq.s32.totalorder %s29, 1
      %p143 = por %p141, %p142
      %p145 = scmp.ne.s32.totalorder %s130, %s144
      %p146 = scmp.eq.s32.totalorder %s29, 0
      %p147 = por %p145, %p146
      %s149 = sadd.s32 %s148, 1
      %p152 = scmp.eq.s32.totalorder %s23, 1
      %p153 = scmp.ne.s32.totalorder %s148, %s150
      %p154 = scmp.eq.s32.totalorder %s23, 0
      %p155 = por %p153, %p154
      %p156 = scmp.ne.s32.totalorder %s148, %s150
      %p157 = scmp.eq.s32.totalorder %s28, 1
      %p158 = por %p156, %p157
      %p159 = scmp.ne.s32.totalorder %s150, %s151
      %p160 = scmp.eq.s32.totalorder %s28, 0
      %p161 = por %p159, %p160
      %p162 = scmp.ne.s32.totalorder %s150, %s151
      %p163 = scmp.eq.s32.totalorder %s29, 1
      %p164 = por %p162, %p163
      %p166 = scmp.ne.s32.totalorder %s151, %s165
      %p167 = scmp.eq.s32.totalorder %s29, 0
      %p168 = por %p166, %p167
      %s170 = sadd.s32 %s169, 1
      %p173 = scmp.eq.s32.totalorder %s23, 1
      %p174 = scmp.ne.s32.totalorder %s169, %s171
      %p175 = scmp.eq.s32.totalorder %s23, 0
      %p176 = por %p174, %p175
      %p177 = scmp.ne.s32.totalorder %s169, %s171
      %p178 = scmp.eq.s32.totalorder %s28, 1
      %p179 = por %p177, %p178
      %p180 = scmp.ne.s32.totalorder %s171, %s172
      %p181 = scmp.eq.s32.totalorder %s28, 0
      %p182 = por %p180, %p181
      %p183 = scmp.ne.s32.totalorder %s171, %s172
      %p184 = scmp.eq.s32.totalorder %s29, 1
      %p185 = por %p183, %p184
      %p187 = scmp.ne.s32.totalorder %s172, %s186
      %p188 = scmp.eq.s32.totalorder %s29, 0
      %p189 = por %p187, %p188
      %s191 = sadd.s32 %s190, 1
      %p194 = scmp.eq.s32.totalorder %s23, 1
      %p195 = scmp.ne.s32.totalorder %s190, %s192
      %p196 = scmp.eq.s32.totalorder %s23, 0
      %p197 = por %p195, %p196
      %p198 = scmp.ne.s32.totalorder %s190, %s192
      %p199 = scmp.eq.s32.totalorder %s28, 1
      %p200 = por %p198, %p199
      %p201 = scmp.ne.s32.totalorder %s192, %s193
      %p202 = scmp.eq.s32.totalorder %s28, 0
      %p203 = por %p201, %p202
      %p204 = scmp.ne.s32.totalorder %s192, %s193
      %p205 = scmp.eq.s32.totalorder %s29, 1
      %p206 = por %p204, %p205
      %p208 = scmp.ne.s32.totalorder %s193, %s207
      %p209 = scmp.eq.s32.totalorder %s29, 0
      %p210 = por %p208, %p209
      %s211 = ssub.s32 %s30, %s42
      %p212 = scmp.eq.s32.totalorder %s211, 0
      %s214 = sadd.s32 %s213, 1
      %s215 = scalar_select %p212, %s213, %s214
      %p218 = pneg %p212
      %p219 = scmp.eq.s32.totalorder %s23, 1
      %p220 = por %p218, %p219
      %p221 = scmp.ne.s32.totalorder %s213, %s216
      %p222 = scmp.eq.s32.totalorder %s23, 0
      %p223 = por %p221, %p222
      %p224 = scmp.ne.s32.totalorder %s213, %s216
      %p225 = scmp.eq.s32.totalorder %s28, 1
      %p226 = por %p224, %p225
      %p227 = scmp.ne.s32.totalorder %s216, %s217
      %p228 = scmp.eq.s32.totalorder %s28, 0
      %p229 = por %p227, %p228
      %p230 = scmp.ne.s32.totalorder %s216, %s217
      %p231 = scmp.eq.s32.totalorder %s29, 1
      %p232 = por %p230, %p231
      %p234 = scmp.ne.s32.totalorder %s217, %s233
      %p235 = scmp.eq.s32.totalorder %s29, 0
      %p236 = por %p234, %p235
      %p237 = scmp.le.s32.totalorder 1, %s23
      %p238 = scmp.lt.s32.totalorder %s23, 3
      %p239 = pnand %p237, %p238
      %p240 = pneg %p239
      // Predicated region
      $region9: #{tpu_custom_call.1} parent=5 // pred_check
        _
      $region10: #{tpu_custom_call.1} parent=5 // pred_check_branch
        %242 = sbr.rel (%p239) target = $region12
      $region11: #{tpu_custom_call.1} parent=5 // pred_region
        %s243 = ssub.s32 %s23, 1
        // Predicated region
        $region13: #{tpu_custom_call.1} parent=11 // pred_check
          %p244 = pneg %p140
        $region14: #{tpu_custom_call.1} parent=11 // pred_check_branch
          %246 = sbr.rel (%p244) target = $region16
        $region15: #{tpu_custom_call.1} parent=11 // pred_region
          %s248 = ssub.s32 9216, 9216
          %249 = vsyncadd [#allocation10], %s248
          %s250 = sshll.u32 [#allocation9], 4
          %s251 = int_to_ptr.vmem [resolvable:$true] %s250
          %256 = dma.hbm_to_vmem [thread:$0]  %s3, 9216, %s251, [#allocation10], 64, 64, 4
        $region16: #{tpu_custom_call.1} parent=11 // pred_fallthru
          _
        // Predicated region
        $region17: #{tpu_custom_call.1} parent=11 // pred_check
          %p257 = pneg %p161
        $region18: #{tpu_custom_call.1} parent=11 // pred_check_branch
          %259 = sbr.rel (%p257) target = $region20
        $region19: #{tpu_custom_call.1} parent=11 // pred_region
          _
        $region20: #{tpu_custom_call.1} parent=11 // pred_fallthru
          _
        // Predicated region
        $region21: #{tpu_custom_call.1} parent=11 // pred_check
          %p260 = pneg %p182
        $region22: #{tpu_custom_call.1} parent=11 // pred_check_branch
          %262 = sbr.rel (%p260) target = $region24
        $region23: #{tpu_custom_call.1} parent=11 // pred_region
          %s264 = ssub.s32 2048, 2048
          %265 = vsyncadd [#allocation10], %s264
          %s266 = sshll.u32 [#allocation11], 4
          %s267 = int_to_ptr.vmem [resolvable:$true] %s266
          %272 = dma.hbm_to_vmem [thread:$0]  %s5, 2048, %s267, [#allocation10], 128, 128, 8
        $region24: #{tpu_custom_call.1} parent=11 // pred_fallthru
          _
        // Predicated region
        $region25: #{tpu_custom_call.1} parent=11 // pred_check
          %p273 = pneg %p203
        $region26: #{tpu_custom_call.1} parent=11 // pred_check_branch
          %275 = sbr.rel (%p273) target = $region28
        $region27: #{tpu_custom_call.1} parent=11 // pred_region
          _
        $region28: #{tpu_custom_call.1} parent=11 // pred_fallthru
          _
      $region12: #{tpu_custom_call.1} parent=5 // pred_fallthru
        _
      %p276 = scmp.lt.s32.totalorder %s23, 2
      // Predicated region
      $region29: #{tpu_custom_call.1} parent=5 // pred_check
        %p277 = pneg %p276
      $region30: #{tpu_custom_call.1} parent=5 // pred_check_branch
        %279 = sbr.rel (%p277) target = $region32
      $region31: #{tpu_custom_call.1} parent=5 // pred_region
        // Predicated region
        $region33: #{tpu_custom_call.1} parent=31 // pred_check
          %p280 = pneg %p57
        $region34: #{tpu_custom_call.1} parent=31 // pred_check_branch
          %282 = sbr.rel (%p280) target = $region36
        $region35: #{tpu_custom_call.1} parent=31 // pred_region
          %s283 = sand.u32 %s47, 1
          %s284 = scalar_lea.sflag [#allocation4], %s283
          %s285 = sand.u32 %s47, 1
          %s286 = smul.addr %s285, 192
          %s287 = scalar_lea.vmem [#allocation3], %s286
          %s288 = smul.u32 16, %s31
          %s290 = ssub.s32 3072, 3072
          %291 = vsyncadd %s284, %s290
          %s292 = smul.addr %s288, 3
          %s293 = smul.addr %s30, 48
          %s294 = sadd.s32 %s292, %s293
          %s295 = smul.addr %s294, 64
          %s296 = scalar_lea.hbm %s0, %s295
          %s297 = sshll.u32 %s287, 4
          %s298 = int_to_ptr.vmem [resolvable:$true] %s297
          %303 = dma.hbm_to_vmem [thread:$0]  %s296, 3072, %s298, %s284, 64, 64, 4
        $region36: #{tpu_custom_call.1} parent=31 // pred_fallthru
          _
        // Predicated region
        $region37: #{tpu_custom_call.1} parent=31 // pred_check
          %p304 = pneg %p85
        $region38: #{tpu_custom_call.1} parent=31 // pred_check_branch
          %306 = sbr.rel (%p304) target = $region40
        $region39: #{tpu_custom_call.1} parent=31 // pred_region
          %s307 = sand.u32 %s23, 1
          %s308 = scalar_lea.sflag [#allocation7], %s307
          %s309 = sand.u32 %s75, 1
          %s310 = smul.addr %s309, 192
          %s311 = scalar_lea.vmem [#allocation6], %s310
          %s312 = smul.u32 16, %s31
          %s314 = ssub.s32 3072, 3072
          %315 = vsyncadd %s308, %s314
          %s316 = smul.addr %s312, 3
          %s317 = smul.addr %s30, 48
          %s318 = sadd.s32 %s316, %s317
          %s319 = smul.addr %s318, 64
          %s320 = scalar_lea.hbm %s1, %s319
          %s321 = sshll.u32 %s311, 4
          %s322 = int_to_ptr.vmem [resolvable:$true] %s321
          %327 = dma.hbm_to_vmem [thread:$0]  %s320, 3072, %s322, %s308, 64, 64, 4
        $region40: #{tpu_custom_call.1} parent=31 // pred_fallthru
          _
        // Predicated region
        $region41: #{tpu_custom_call.1} parent=31 // pred_check
          %p328 = pneg %p113
        $region42: #{tpu_custom_call.1} parent=31 // pred_check_branch
          %330 = sbr.rel (%p328) target = $region44
        $region43: #{tpu_custom_call.1} parent=31 // pred_region
          %s331 = sand.u32 %s23, 1
          %s332 = scalar_lea.sflag [#allocation7], %s331
          %s333 = sand.u32 %s103, 1
          %s334 = smul.addr %s333, 192
          %s335 = scalar_lea.vmem [#allocation8], %s334
          %s336 = smul.u32 16, %s31
          %s338 = ssub.s32 3072, 3072
          %339 = vsyncadd %s332, %s338
          %s340 = smul.addr %s336, 3
          %s341 = smul.addr %s30, 48
          %s342 = sadd.s32 %s340, %s341
          %s343 = smul.addr %s342, 64
          %s344 = scalar_lea.hbm %s2, %s343
          %s345 = sshll.u32 %s335, 4
          %s346 = int_to_ptr.vmem [resolvable:$true] %s345
          %351 = dma.hbm_to_vmem [thread:$0]  %s344, 3072, %s346, %s332, 64, 64, 4
        $region44: #{tpu_custom_call.1} parent=31 // pred_fallthru
          _
      $region32: #{tpu_custom_call.1} parent=5 // pred_fallthru
        _
      %p352 = scmp.le.s32.totalorder 1, %s23
      %p353 = scmp.lt.s32.totalorder %s23, 3
      %p354 = pnand %p352, %p353
      %p355 = pneg %p354
      // Predicated region
      $region45: #{tpu_custom_call.1} parent=5 // pred_check
        _
      $region46: #{tpu_custom_call.1} parent=5 // pred_check_branch
        %357 = sbr.rel (%p354) target = $region48
      $region47: #{tpu_custom_call.1} parent=5 // pred_region
        %s358 = ssub.s32 %s23, 1
        %s359 = sand.u32 %s50, 1
        %s360 = scalar_lea.sflag [#allocation4], %s359
        %s361 = sand.u32 %s50, 1
        %s362 = smul.addr %s361, 192
        %s363 = scalar_lea.vmem [#allocation3], %s362
        // Predicated region
        $region49: #{tpu_custom_call.1} parent=47 // pred_check
          %p364 = pneg %p63
        $region50: #{tpu_custom_call.1} parent=47 // pred_check_branch
          %366 = sbr.rel (%p364) target = $region52
        $region51: #{tpu_custom_call.1} parent=47 // pred_region
          %367 = dma.done %s360, 3072
        $region52: #{tpu_custom_call.1} parent=47 // pred_fallthru
          _
        %s368 = sand.u32 %s28, 1
        %s369 = scalar_lea.sflag [#allocation7], %s368
        %s370 = sand.u32 %s78, 1
        %s371 = smul.addr %s370, 192
        %s372 = scalar_lea.vmem [#allocation6], %s371
        // Predicated region
        $region53: #{tpu_custom_call.1} parent=47 // pred_check
          %p373 = pneg %p91
        $region54: #{tpu_custom_call.1} parent=47 // pred_check_branch
          %375 = sbr.rel (%p373) target = $region56
        $region55: #{tpu_custom_call.1} parent=47 // pred_region
          %376 = dma.done %s369, 3072
        $region56: #{tpu_custom_call.1} parent=47 // pred_fallthru
          _
        %s377 = sand.u32 %s28, 1
        %s378 = scalar_lea.sflag [#allocation7], %s377
        %s379 = sand.u32 %s106, 1
        %s380 = smul.addr %s379, 192
        %s381 = scalar_lea.vmem [#allocation8], %s380
        // Predicated region
        $region57: #{tpu_custom_call.1} parent=47 // pred_check
          %p382 = pneg %p119
        $region58: #{tpu_custom_call.1} parent=47 // pred_check_branch
          %384 = sbr.rel (%p382) target = $region60
        $region59: #{tpu_custom_call.1} parent=47 // pred_region
          %385 = dma.done %s378, 3072
        $region60: #{tpu_custom_call.1} parent=47 // pred_fallthru
          _
        // Predicated region
        $region61: #{tpu_custom_call.1} parent=47 // pred_check
          %p386 = pneg %p140
        $region62: #{tpu_custom_call.1} parent=47 // pred_check_branch
          %388 = sbr.rel (%p386) target = $region64
        $region63: #{tpu_custom_call.1} parent=47 // pred_region
          %389 = dma.done [#allocation10], 9216
        $region64: #{tpu_custom_call.1} parent=47 // pred_fallthru
          _
        // Predicated region
        $region65: #{tpu_custom_call.1} parent=47 // pred_check
          %p390 = pneg %p182
        $region66: #{tpu_custom_call.1} parent=47 // pred_check_branch
          %392 = sbr.rel (%p390) target = $region68
        $region67: #{tpu_custom_call.1} parent=47 // pred_region
          %393 = dma.done [#allocation10], 2048
        $region68: #{tpu_custom_call.1} parent=47 // pred_fallthru
          _
        %s394 = sand.u32 %s50, 1
        %s395 = scalar_lea.sflag [#allocation4], %s394
        %s396 = sand.u32 %s50, 1
        %s397 = smul.addr %s396, 192
        %s398 = scalar_lea.vmem [#allocation3], %s397
        %p399 = pneg %p63
        %p400 = pneg %p60
        %s401 = sand.u32 %s28, 1
        %s402 = scalar_lea.sflag [#allocation7], %s401
        %s403 = sand.u32 %s78, 1
        %s404 = smul.addr %s403, 192
        %s405 = scalar_lea.vmem [#allocation6], %s404
        %p406 = pneg %p91
        %p407 = pneg %p88
        %s408 = sand.u32 %s28, 1
        %s409 = scalar_lea.sflag [#allocation7], %s408
        %s410 = sand.u32 %s106, 1
        %s411 = smul.addr %s410, 192
        %s412 = scalar_lea.vmem [#allocation8], %s411
        %p413 = pneg %p119
        %p414 = pneg %p116
        %p415 = pneg %p140
        %p416 = pneg %p137
        %p417 = pneg %p161
        %p418 = pneg %p158
        %p419 = pneg %p182
        %p420 = pneg %p179
        %p421 = pneg %p203
        %p422 = pneg %p200
        %p423 = pneg %p229
        %p424 = pneg %p226
        %s425 = sand.u32 %s216, 1
        %s426 = scalar_lea.sflag [#allocation5], %s425
        %s427 = sand.u32 %s216, 1
        %s428 = scalar_lea.vmem [#allocation12], %s427
        %s429 = smul.u32 16, %s33
        %s430 = smul.u32 16, %s33
        %s431 = smul.u32 16, %s33
        %p433 = scmp.eq.s32.totalorder %s33, 0
        // Predicated region
        $region69: #{tpu_custom_call.1} parent=47 // pred_check
          %p434 = pneg %p433
        $region70: #{tpu_custom_call.1} parent=47 // pred_check_branch
          %436 = sbr.rel (%p434) target = $region72
        $region71: #{tpu_custom_call.1} parent=47 // pred_region
          %437 = vst [vmem:[#allocation2] sm:$0x1] 0.0
        $region72: #{tpu_custom_call.1} parent=47 // pred_fallthru
          _
        %v438 = vld [vmem:[%s363] sm:$0xf]
        %v439 = vld [vmem:[%s363 + $0x4] sm:$0xf]
        %v440 = vld [vmem:[%s363 + $0x8] sm:$0xf]
        %v441 = vld [vmem:[%s363 + $0xc] sm:$0xf]
        %v442 = vld [vmem:[%s363 + $0x10] sm:$0xf]
        %v443 = vld [vmem:[%s363 + $0x14] sm:$0xf]
        %v444 = vld [vmem:[%s363 + $0x18] sm:$0xf]
        %v445 = vld [vmem:[%s363 + $0x1c] sm:$0xf]
        %v446 = vld [vmem:[%s363 + $0x20] sm:$0xf]
        %v447 = vld [vmem:[%s363 + $0x24] sm:$0xf]
        %v448 = vld [vmem:[%s363 + $0x28] sm:$0xf]
        %v449 = vld [vmem:[%s363 + $0x2c] sm:$0xf]
        %v450 = vld [vmem:[%s363 + $0x30] sm:$0xf]
        %v451 = vld [vmem:[%s363 + $0x34] sm:$0xf]
        %v452 = vld [vmem:[%s363 + $0x38] sm:$0xf]
        %v453 = vld [vmem:[%s363 + $0x3c] sm:$0xf]
        %v454 = vld [vmem:[%s363 + $0x40] sm:$0xf]
        %v455 = vld [vmem:[%s363 + $0x44] sm:$0xf]
        %v456 = vld [vmem:[%s363 + $0x48] sm:$0xf]
        %v457 = vld [vmem:[%s363 + $0x4c] sm:$0xf]
        %v458 = vld [vmem:[%s363 + $0x50] sm:$0xf]
        %v459 = vld [vmem:[%s363 + $0x54] sm:$0xf]
        %v460 = vld [vmem:[%s363 + $0x58] sm:$0xf]
        %v461 = vld [vmem:[%s363 + $0x5c] sm:$0xf]
        %v462 = vld [vmem:[%s363 + $0x60] sm:$0xf]
        %v463 = vld [vmem:[%s363 + $0x64] sm:$0xf]
        %v464 = vld [vmem:[%s363 + $0x68] sm:$0xf]
        %v465 = vld [vmem:[%s363 + $0x6c] sm:$0xf]
        %v466 = vld [vmem:[%s363 + $0x70] sm:$0xf]
        %v467 = vld [vmem:[%s363 + $0x74] sm:$0xf]
        %v468 = vld [vmem:[%s363 + $0x78] sm:$0xf]
        %v469 = vld [vmem:[%s363 + $0x7c] sm:$0xf]
        %v470 = vld [vmem:[%s363 + $0x80] sm:$0xf]
        %v471 = vld [vmem:[%s363 + $0x84] sm:$0xf]
        %v472 = vld [vmem:[%s363 + $0x88] sm:$0xf]
        %v473 = vld [vmem:[%s363 + $0x8c] sm:$0xf]
        %v474 = vld [vmem:[%s363 + $0x90] sm:$0xf]
        %v475 = vld [vmem:[%s363 + $0x94] sm:$0xf]
        %v476 = vld [vmem:[%s363 + $0x98] sm:$0xf]
        %v477 = vld [vmem:[%s363 + $0x9c] sm:$0xf]
        %v478 = vld [vmem:[%s363 + $0xa0] sm:$0xf]
        %v479 = vld [vmem:[%s363 + $0xa4] sm:$0xf]
        %v480 = vld [vmem:[%s363 + $0xa8] sm:$0xf]
        %v481 = vld [vmem:[%s363 + $0xac] sm:$0xf]
        %v482 = vld [vmem:[%s363 + $0xb0] sm:$0xf]
        %v483 = vld [vmem:[%s363 + $0xb4] sm:$0xf]
        %v484 = vld [vmem:[%s363 + $0xb8] sm:$0xf]
        %v485 = vld [vmem:[%s363 + $0xbc] sm:$0xf]
        %v486 = vld [vmem:[%s372] sm:$0xf]
        %v487 = vld [vmem:[%s372 + $0x4] sm:$0xf]
        %v488 = vld [vmem:[%s372 + $0x8] sm:$0xf]
        %v489 = vld [vmem:[%s372 + $0xc] sm:$0xf]
        %v490 = vld [vmem:[%s372 + $0x10] sm:$0xf]
        %v491 = vld [vmem:[%s372 + $0x14] sm:$0xf]
        %v492 = vld [vmem:[%s372 + $0x18] sm:$0xf]
        %v493 = vld [vmem:[%s372 + $0x1c] sm:$0xf]
        %v494 = vld [vmem:[%s372 + $0x20] sm:$0xf]
        %v495 = vld [vmem:[%s372 + $0x24] sm:$0xf]
        %v496 = vld [vmem:[%s372 + $0x28] sm:$0xf]
        %v497 = vld [vmem:[%s372 + $0x2c] sm:$0xf]
        %v498 = vld [vmem:[%s372 + $0x30] sm:$0xf]
        %v499 = vld [vmem:[%s372 + $0x34] sm:$0xf]
        %v500 = vld [vmem:[%s372 + $0x38] sm:$0xf]
        %v501 = vld [vmem:[%s372 + $0x3c] sm:$0xf]
        %v502 = vld [vmem:[%s372 + $0x40] sm:$0xf]
        %v503 = vld [vmem:[%s372 + $0x44] sm:$0xf]
        %v504 = vld [vmem:[%s372 + $0x48] sm:$0xf]
        %v505 = vld [vmem:[%s372 + $0x4c] sm:$0xf]
        %v506 = vld [vmem:[%s372 + $0x50] sm:$0xf]
        %v507 = vld [vmem:[%s372 + $0x54] sm:$0xf]
        %v508 = vld [vmem:[%s372 + $0x58] sm:$0xf]
        %v509 = vld [vmem:[%s372 + $0x5c] sm:$0xf]
        %v510 = vld [vmem:[%s372 + $0x60] sm:$0xf]
        %v511 = vld [vmem:[%s372 + $0x64] sm:$0xf]
        %v512 = vld [vmem:[%s372 + $0x68] sm:$0xf]
        %v513 = vld [vmem:[%s372 + $0x6c] sm:$0xf]
        %v514 = vld [vmem:[%s372 + $0x70] sm:$0xf]
        %v515 = vld [vmem:[%s372 + $0x74] sm:$0xf]
        %v516 = vld [vmem:[%s372 + $0x78] sm:$0xf]
        %v517 = vld [vmem:[%s372 + $0x7c] sm:$0xf]
        %v518 = vld [vmem:[%s372 + $0x80] sm:$0xf]
        %v519 = vld [vmem:[%s372 + $0x84] sm:$0xf]
        %v520 = vld [vmem:[%s372 + $0x88] sm:$0xf]
        %v521 = vld [vmem:[%s372 + $0x8c] sm:$0xf]
        %v522 = vld [vmem:[%s372 + $0x90] sm:$0xf]
        %v523 = vld [vmem:[%s372 + $0x94] sm:$0xf]
        %v524 = vld [vmem:[%s372 + $0x98] sm:$0xf]
        %v525 = vld [vmem:[%s372 + $0x9c] sm:$0xf]
        %v526 = vld [vmem:[%s372 + $0xa0] sm:$0xf]
        %v527 = vld [vmem:[%s372 + $0xa4] sm:$0xf]
        %v528 = vld [vmem:[%s372 + $0xa8] sm:$0xf]
        %v529 = vld [vmem:[%s372 + $0xac] sm:$0xf]
        %v530 = vld [vmem:[%s372 + $0xb0] sm:$0xf]
        %v531 = vld [vmem:[%s372 + $0xb4] sm:$0xf]
        %v532 = vld [vmem:[%s372 + $0xb8] sm:$0xf]
        %v533 = vld [vmem:[%s372 + $0xbc] sm:$0xf]
        %v534 = vld [vmem:[%s381] sm:$0xf]
        %v535 = vld [vmem:[%s381 + $0x4] sm:$0xf]
        %v536 = vld [vmem:[%s381 + $0x8] sm:$0xf]
        %v537 = vld [vmem:[%s381 + $0xc] sm:$0xf]
        %v538 = vld [vmem:[%s381 + $0x10] sm:$0xf]
        %v539 = vld [vmem:[%s381 + $0x14] sm:$0xf]
        %v540 = vld [vmem:[%s381 + $0x18] sm:$0xf]
        %v541 = vld [vmem:[%s381 + $0x1c] sm:$0xf]
        %v542 = vld [vmem:[%s381 + $0x20] sm:$0xf]
        %v543 = vld [vmem:[%s381 + $0x24] sm:$0xf]
        %v544 = vld [vmem:[%s381 + $0x28] sm:$0xf]
        %v545 = vld [vmem:[%s381 + $0x2c] sm:$0xf]
        %v546 = vld [vmem:[%s381 + $0x30] sm:$0xf]
        %v547 = vld [vmem:[%s381 + $0x34] sm:$0xf]
        %v548 = vld [vmem:[%s381 + $0x38] sm:$0xf]
        %v549 = vld [vmem:[%s381 + $0x3c] sm:$0xf]
        %v550 = vld [vmem:[%s381 + $0x40] sm:$0xf]
        %v551 = vld [vmem:[%s381 + $0x44] sm:$0xf]
        %v552 = vld [vmem:[%s381 + $0x48] sm:$0xf]
        %v553 = vld [vmem:[%s381 + $0x4c] sm:$0xf]
        %v554 = vld [vmem:[%s381 + $0x50] sm:$0xf]
        %v555 = vld [vmem:[%s381 + $0x54] sm:$0xf]
        %v556 = vld [vmem:[%s381 + $0x58] sm:$0xf]
        %v557 = vld [vmem:[%s381 + $0x5c] sm:$0xf]
        %v558 = vld [vmem:[%s381 + $0x60] sm:$0xf]
        %v559 = vld [vmem:[%s381 + $0x64] sm:$0xf]
        %v560 = vld [vmem:[%s381 + $0x68] sm:$0xf]
        %v561 = vld [vmem:[%s381 + $0x6c] sm:$0xf]
        %v562 = vld [vmem:[%s381 + $0x70] sm:$0xf]
        %v563 = vld [vmem:[%s381 + $0x74] sm:$0xf]
        %v564 = vld [vmem:[%s381 + $0x78] sm:$0xf]
        %v565 = vld [vmem:[%s381 + $0x7c] sm:$0xf]
        %v566 = vld [vmem:[%s381 + $0x80] sm:$0xf]
        %v567 = vld [vmem:[%s381 + $0x84] sm:$0xf]
        %v568 = vld [vmem:[%s381 + $0x88] sm:$0xf]
        %v569 = vld [vmem:[%s381 + $0x8c] sm:$0xf]
        %v570 = vld [vmem:[%s381 + $0x90] sm:$0xf]
        %v571 = vld [vmem:[%s381 + $0x94] sm:$0xf]
        %v572 = vld [vmem:[%s381 + $0x98] sm:$0xf]
        %v573 = vld [vmem:[%s381 + $0x9c] sm:$0xf]
        %v574 = vld [vmem:[%s381 + $0xa0] sm:$0xf]
        %v575 = vld [vmem:[%s381 + $0xa4] sm:$0xf]
        %v576 = vld [vmem:[%s381 + $0xa8] sm:$0xf]
        %v577 = vld [vmem:[%s381 + $0xac] sm:$0xf]
        %v578 = vld [vmem:[%s381 + $0xb0] sm:$0xf]
        %v579 = vld [vmem:[%s381 + $0xb4] sm:$0xf]
        %v580 = vld [vmem:[%s381 + $0xb8] sm:$0xf]
        %v581 = vld [vmem:[%s381 + $0xbc] sm:$0xf]
        %v582 = vld [vmem:[#allocation9] sm:$0xf]
        %v583 = vld [vmem:[#allocation9 + $0x4] sm:$0xf]
        %v584 = vld [vmem:[#allocation9 + $0x8] sm:$0xf]
        %v585 = vld [vmem:[#allocation9 + $0xc] sm:$0xf]
        %v586 = vld [vmem:[#allocation9 + $0x10] sm:$0xf]
        %v587 = vld [vmem:[#allocation9 + $0x14] sm:$0xf]
        %v588 = vld [vmem:[#allocation9 + $0x18] sm:$0xf]
        %v589 = vld [vmem:[#allocation9 + $0x1c] sm:$0xf]
        %v590 = vld [vmem:[#allocation9 + $0x20] sm:$0xf]
        %v591 = vld [vmem:[#allocation9 + $0x24] sm:$0xf]
        %v592 = vld [vmem:[#allocation9 + $0x28] sm:$0xf]
        %v593 = vld [vmem:[#allocation9 + $0x2c] sm:$0xf]
        %v594 = vld [vmem:[#allocation9 + $0x30] sm:$0xf]
        %v595 = vld [vmem:[#allocation9 + $0x34] sm:$0xf]
        %v596 = vld [vmem:[#allocation9 + $0x38] sm:$0xf]
        %v597 = vld [vmem:[#allocation9 + $0x3c] sm:$0xf]
        %vm598 = vsmask.f32 3328
        %vm599 = vsmask.f32 7440
        %vm600 = vmor %vm598, %vm599
        %v602 = vshrl.u32 %v438, 16
        %v604 = vrot.slane %v602, 4
        %v605 = vshll.u32 %v438, 16
        %v607 = vrot.slane %v605, 5
        %v608 = vor.u32 %v604, %v607
        %v609 = vrot.slane %v608, 4
        %v611 = vshll.u32 %v439, 16
        %v613 = vrot.slane %v611, 5
        %v614 = vsel %vm600, %v609, %v613
        %v615 = vshrl.u32 %v439, 16
        %v617 = vrot.slane %v615, 4
        %v618 = vor.u32 %v617, %v613
        %v619 = vrot.slane %v618, 4
        %v621 = vshll.u32 %v440, 16
        %v623 = vrot.slane %v621, 5
        %v624 = vsel %vm600, %v619, %v623
        %v626 = vshrl.u32 %v441, 16
        %v628 = vrot.slane %v626, 4
        %v629 = vshll.u32 %v441, 16
        %v631 = vrot.slane %v629, 5
        %v632 = vor.u32 %v628, %v631
        %v633 = vrot.slane %v632, 4
        %v635 = vshll.u32 %v442, 16
        %v637 = vrot.slane %v635, 5
        %v638 = vsel %vm600, %v633, %v637
        %v639 = vshrl.u32 %v442, 16
        %v641 = vrot.slane %v639, 4
        %v642 = vor.u32 %v641, %v637
        %v643 = vrot.slane %v642, 4
        %v645 = vshll.u32 %v443, 16
        %v647 = vrot.slane %v645, 5
        %v648 = vsel %vm600, %v643, %v647
        %v650 = vshrl.u32 %v444, 16
        %v652 = vrot.slane %v650, 4
        %v653 = vshll.u32 %v444, 16
        %v655 = vrot.slane %v653, 5
        %v656 = vor.u32 %v652, %v655
        %v657 = vrot.slane %v656, 4
        %v659 = vshll.u32 %v445, 16
        %v661 = vrot.slane %v659, 5
        %v662 = vsel %vm600, %v657, %v661
        %v663 = vshrl.u32 %v445, 16
        %v665 = vrot.slane %v663, 4
        %v666 = vor.u32 %v665, %v661
        %v667 = vrot.slane %v666, 4
        %v669 = vshll.u32 %v446, 16
        %v671 = vrot.slane %v669, 5
        %v672 = vsel %vm600, %v667, %v671
        %v674 = vshrl.u32 %v447, 16
        %v676 = vrot.slane %v674, 4
        %v677 = vshll.u32 %v447, 16
        %v679 = vrot.slane %v677, 5
        %v680 = vor.u32 %v676, %v679
        %v681 = vrot.slane %v680, 4
        %v683 = vshll.u32 %v448, 16
        %v685 = vrot.slane %v683, 5
        %v686 = vsel %vm600, %v681, %v685
        %v687 = vshrl.u32 %v448, 16
        %v689 = vrot.slane %v687, 4
        %v690 = vor.u32 %v689, %v685
        %v691 = vrot.slane %v690, 4
        %v693 = vshll.u32 %v449, 16
        %v695 = vrot.slane %v693, 5
        %v696 = vsel %vm600, %v691, %v695
        %v698 = vshrl.u32 %v450, 16
        %v700 = vrot.slane %v698, 4
        %v701 = vshll.u32 %v450, 16
        %v703 = vrot.slane %v701, 5
        %v704 = vor.u32 %v700, %v703
        %v705 = vrot.slane %v704, 4
        %v707 = vshll.u32 %v451, 16
        %v709 = vrot.slane %v707, 5
        %v710 = vsel %vm600, %v705, %v709
        %v711 = vshrl.u32 %v451, 16
        %v713 = vrot.slane %v711, 4
        %v714 = vor.u32 %v713, %v709
        %v715 = vrot.slane %v714, 4
        %v717 = vshll.u32 %v452, 16
        %v719 = vrot.slane %v717, 5
        %v720 = vsel %vm600, %v715, %v719
        %v722 = vshrl.u32 %v453, 16
        %v724 = vrot.slane %v722, 4
        %v725 = vshll.u32 %v453, 16
        %v727 = vrot.slane %v725, 5
        %v728 = vor.u32 %v724, %v727
        %v729 = vrot.slane %v728, 4
        %v731 = vshll.u32 %v454, 16
        %v733 = vrot.slane %v731, 5
        %v734 = vsel %vm600, %v729, %v733
        %v735 = vshrl.u32 %v454, 16
        %v737 = vrot.slane %v735, 4
        %v738 = vor.u32 %v737, %v733
        %v739 = vrot.slane %v738, 4
        %v741 = vshll.u32 %v455, 16
        %v743 = vrot.slane %v741, 5
        %v744 = vsel %vm600, %v739, %v743
        %v746 = vshrl.u32 %v456, 16
        %v748 = vrot.slane %v746, 4
        %v749 = vshll.u32 %v456, 16
        %v751 = vrot.slane %v749, 5
        %v752 = vor.u32 %v748, %v751
        %v753 = vrot.slane %v752, 4
        %v755 = vshll.u32 %v457, 16
        %v757 = vrot.slane %v755, 5
        %v758 = vsel %vm600, %v753, %v757
        %v759 = vshrl.u32 %v457, 16
        %v761 = vrot.slane %v759, 4
        %v762 = vor.u32 %v761, %v757
        %v763 = vrot.slane %v762, 4
        %v765 = vshll.u32 %v458, 16
        %v767 = vrot.slane %v765, 5
        %v768 = vsel %vm600, %v763, %v767
        %v770 = vshrl.u32 %v459, 16
        %v772 = vrot.slane %v770, 4
        %v773 = vshll.u32 %v459, 16
        %v775 = vrot.slane %v773, 5
        %v776 = vor.u32 %v772, %v775
        %v777 = vrot.slane %v776, 4
        %v779 = vshll.u32 %v460, 16
        %v781 = vrot.slane %v779, 5
        %v782 = vsel %vm600, %v777, %v781
        %v783 = vshrl.u32 %v460, 16
        %v785 = vrot.slane %v783, 4
        %v786 = vor.u32 %v785, %v781
        %v787 = vrot.slane %v786, 4
        %v789 = vshll.u32 %v461, 16
        %v791 = vrot.slane %v789, 5
        %v792 = vsel %vm600, %v787, %v791
        %v794 = vshrl.u32 %v462, 16
        %v796 = vrot.slane %v794, 4
        %v797 = vshll.u32 %v462, 16
        %v799 = vrot.slane %v797, 5
        %v800 = vor.u32 %v796, %v799
        %v801 = vrot.slane %v800, 4
        %v803 = vshll.u32 %v463, 16
        %v805 = vrot.slane %v803, 5
        %v806 = vsel %vm600, %v801, %v805
        %v807 = vshrl.u32 %v463, 16
        %v809 = vrot.slane %v807, 4
        %v810 = vor.u32 %v809, %v805
        %v811 = vrot.slane %v810, 4
        %v813 = vshll.u32 %v464, 16
        %v815 = vrot.slane %v813, 5
        %v816 = vsel %vm600, %v811, %v815
        %v818 = vshrl.u32 %v465, 16
        %v820 = vrot.slane %v818, 4
        %v821 = vshll.u32 %v465, 16
        %v823 = vrot.slane %v821, 5
        %v824 = vor.u32 %v820, %v823
        %v825 = vrot.slane %v824, 4
        %v827 = vshll.u32 %v466, 16
        %v829 = vrot.slane %v827, 5
        %v830 = vsel %vm600, %v825, %v829
        %v831 = vshrl.u32 %v466, 16
        %v833 = vrot.slane %v831, 4
        %v834 = vor.u32 %v833, %v829
        %v835 = vrot.slane %v834, 4
        %v837 = vshll.u32 %v467, 16
        %v839 = vrot.slane %v837, 5
        %v840 = vsel %vm600, %v835, %v839
        %v842 = vshrl.u32 %v468, 16
        %v844 = vrot.slane %v842, 4
        %v845 = vshll.u32 %v468, 16
        %v847 = vrot.slane %v845, 5
        %v848 = vor.u32 %v844, %v847
        %v849 = vrot.slane %v848, 4
        %v851 = vshll.u32 %v469, 16
        %v853 = vrot.slane %v851, 5
        %v854 = vsel %vm600, %v849, %v853
        %v855 = vshrl.u32 %v469, 16
        %v857 = vrot.slane %v855, 4
        %v858 = vor.u32 %v857, %v853
        %v859 = vrot.slane %v858, 4
        %v861 = vshll.u32 %v470, 16
        %v863 = vrot.slane %v861, 5
        %v864 = vsel %vm600, %v859, %v863
        %v866 = vshrl.u32 %v471, 16
        %v868 = vrot.slane %v866, 4
        %v869 = vshll.u32 %v471, 16
        %v871 = vrot.slane %v869, 5
        %v872 = vor.u32 %v868, %v871
        %v873 = vrot.slane %v872, 4
        %v875 = vshll.u32 %v472, 16
        %v877 = vrot.slane %v875, 5
        %v878 = vsel %vm600, %v873, %v877
        %v879 = vshrl.u32 %v472, 16
        %v881 = vrot.slane %v879, 4
        %v882 = vor.u32 %v881, %v877
        %v883 = vrot.slane %v882, 4
        %v885 = vshll.u32 %v473, 16
        %v887 = vrot.slane %v885, 5
        %v888 = vsel %vm600, %v883, %v887
        %v890 = vshrl.u32 %v474, 16
        %v892 = vrot.slane %v890, 4
        %v893 = vshll.u32 %v474, 16
        %v895 = vrot.slane %v893, 5
        %v896 = vor.u32 %v892, %v895
        %v897 = vrot.slane %v896, 4
        %v899 = vshll.u32 %v475, 16
        %v901 = vrot.slane %v899, 5
        %v902 = vsel %vm600, %v897, %v901
        %v903 = vshrl.u32 %v475, 16
        %v905 = vrot.slane %v903, 4
        %v906 = vor.u32 %v905, %v901
        %v907 = vrot.slane %v906, 4
        %v909 = vshll.u32 %v476, 16
        %v911 = vrot.slane %v909, 5
        %v912 = vsel %vm600, %v907, %v911
        %v914 = vshrl.u32 %v477, 16
        %v916 = vrot.slane %v914, 4
        %v917 = vshll.u32 %v477, 16
        %v919 = vrot.slane %v917, 5
        %v920 = vor.u32 %v916, %v919
        %v921 = vrot.slane %v920, 4
        %v923 = vshll.u32 %v478, 16
        %v925 = vrot.slane %v923, 5
        %v926 = vsel %vm600, %v921, %v925
        %v927 = vshrl.u32 %v478, 16
        %v929 = vrot.slane %v927, 4
        %v930 = vor.u32 %v929, %v925
        %v931 = vrot.slane %v930, 4
        %v933 = vshll.u32 %v479, 16
        %v935 = vrot.slane %v933, 5
        %v936 = vsel %vm600, %v931, %v935
        %v938 = vshrl.u32 %v480, 16
        %v940 = vrot.slane %v938, 4
        %v941 = vshll.u32 %v480, 16
        %v943 = vrot.slane %v941, 5
        %v944 = vor.u32 %v940, %v943
        %v945 = vrot.slane %v944, 4
        %v947 = vshll.u32 %v481, 16
        %v949 = vrot.slane %v947, 5
        %v950 = vsel %vm600, %v945, %v949
        %v951 = vshrl.u32 %v481, 16
        %v953 = vrot.slane %v951, 4
        %v954 = vor.u32 %v953, %v949
        %v955 = vrot.slane %v954, 4
        %v957 = vshll.u32 %v482, 16
        %v959 = vrot.slane %v957, 5
        %v960 = vsel %vm600, %v955, %v959
        %v962 = vshrl.u32 %v483, 16
        %v964 = vrot.slane %v962, 4
        %v965 = vshll.u32 %v483, 16
        %v967 = vrot.slane %v965, 5
        %v968 = vor.u32 %v964, %v967
        %v969 = vrot.slane %v968, 4
        %v971 = vshll.u32 %v484, 16
        %v973 = vrot.slane %v971, 5
        %v974 = vsel %vm600, %v969, %v973
        %v975 = vshrl.u32 %v484, 16
        %v977 = vrot.slane %v975, 4
        %v978 = vor.u32 %v977, %v973
        %v979 = vrot.slane %v978, 4
        %v981 = vshll.u32 %v485, 16
        %v983 = vrot.slane %v981, 5
        %v984 = vsel %vm600, %v979, %v983
        %s985 = scalar_lea.vmem [#allocation9], 64
        %v986 = vld [vmem:[%s985] sm:$0xf]
        %v987 = vld [vmem:[%s985 + $0x4] sm:$0xf]
        %v988 = vld [vmem:[%s985 + $0x8] sm:$0xf]
        %v989 = vld [vmem:[%s985 + $0xc] sm:$0xf]
        %v990 = vld [vmem:[%s985 + $0x10] sm:$0xf]
        %v991 = vld [vmem:[%s985 + $0x14] sm:$0xf]
        %v992 = vld [vmem:[%s985 + $0x18] sm:$0xf]
        %v993 = vld [vmem:[%s985 + $0x1c] sm:$0xf]
        %v994 = vld [vmem:[%s985 + $0x20] sm:$0xf]
        %v995 = vld [vmem:[%s985 + $0x24] sm:$0xf]
        %v996 = vld [vmem:[%s985 + $0x28] sm:$0xf]
        %v997 = vld [vmem:[%s985 + $0x2c] sm:$0xf]
        %v998 = vld [vmem:[%s985 + $0x30] sm:$0xf]
        %v999 = vld [vmem:[%s985 + $0x34] sm:$0xf]
        %v1000 = vld [vmem:[%s985 + $0x38] sm:$0xf]
        %v1001 = vld [vmem:[%s985 + $0x3c] sm:$0xf]
        %v1002 = vunpack.c.l.b16 %v614
        %v1003 = vunpack.c.l.b16 %v624
        %v1004 = vunpack.c.l.b16 %v638
        %v1005 = vunpack.c.l.b16 %v648
        %v1006 = vunpack.c.l.b16 %v662
        %v1007 = vunpack.c.l.b16 %v672
        %v1008 = vunpack.c.l.b16 %v686
        %v1009 = vunpack.c.l.b16 %v696
        %v1010 = vunpack.c.l.b16 %v710
        %v1011 = vunpack.c.l.b16 %v720
        %v1012 = vunpack.c.l.b16 %v734
        %v1013 = vunpack.c.l.b16 %v744
        %v1014 = vunpack.c.l.b16 %v758
        %v1015 = vunpack.c.l.b16 %v768
        %v1016 = vunpack.c.l.b16 %v782
        %v1017 = vunpack.c.l.b16 %v792
        %v1018 = vunpack.c.l.b16 %v806
        %v1019 = vunpack.c.l.b16 %v816
        %v1020 = vunpack.c.l.b16 %v830
        %v1021 = vunpack.c.l.b16 %v840
        %v1022 = vunpack.c.l.b16 %v854
        %v1023 = vunpack.c.l.b16 %v864
        %v1024 = vunpack.c.l.b16 %v878
        %v1025 = vunpack.c.l.b16 %v888
        %v1026 = vunpack.c.l.b16 %v902
        %v1027 = vunpack.c.l.b16 %v912
        %v1028 = vunpack.c.l.b16 %v926
        %v1029 = vunpack.c.l.b16 %v936
        %v1030 = vunpack.c.l.b16 %v950
        %v1031 = vunpack.c.l.b16 %v960
        %v1032 = vunpack.c.l.b16 %v974
        %v1033 = vunpack.c.l.b16 %v984
        %v1034 = vpack.c.b16 %v1003, %v1002
        %v1035 = vpack.c.b16 %v1005, %v1004
        %v1036 = vpack.c.b16 %v1007, %v1006
        %v1037 = vpack.c.b16 %v1009, %v1008
        %v1038 = vpack.c.b16 %v1011, %v1010
        %v1039 = vpack.c.b16 %v1013, %v1012
        %v1040 = vpack.c.b16 %v1015, %v1014
        %v1041 = vpack.c.b16 %v1017, %v1016
        %v1042 = vpack.c.b16 %v1019, %v1018
        %v1043 = vpack.c.b16 %v1021, %v1020
        %v1044 = vpack.c.b16 %v1023, %v1022
        %v1045 = vpack.c.b16 %v1025, %v1024
        %v1046 = vpack.c.b16 %v1027, %v1026
        %v1047 = vpack.c.b16 %v1029, %v1028
        %v1048 = vpack.c.b16 %v1031, %v1030
        %v1049 = vpack.c.b16 %v1033, %v1032
        %v1082 = vunpack.c.l.b16 %v986
        %v1083 = vunpack.c.l.b16 %v987
        %v1084 = vunpack.c.l.b16 %v988
        %v1085 = vunpack.c.l.b16 %v989
        %v1086 = vunpack.c.l.b16 %v990
        %v1087 = vunpack.c.l.b16 %v991
        %v1088 = vunpack.c.l.b16 %v992
        %v1089 = vunpack.c.l.b16 %v993
        %v1090 = vunpack.c.l.b16 %v994
        %v1091 = vunpack.c.l.b16 %v995
        %v1092 = vunpack.c.l.b16 %v996
        %v1093 = vunpack.c.l.b16 %v997
        %v1094 = vunpack.c.l.b16 %v998
        %v1095 = vunpack.c.l.b16 %v999
        %v1096 = vunpack.c.l.b16 %v1000
        %v1097 = vunpack.c.l.b16 %v1001
        %v1098 = vpack.c.b16 %v1083, %v1082
        %v1099 = vpack.c.b16 %v1085, %v1084
        %v1100 = vpack.c.b16 %v1087, %v1086
        %v1101 = vpack.c.b16 %v1089, %v1088
        %v1102 = vpack.c.b16 %v1091, %v1090
        %v1103 = vpack.c.b16 %v1093, %v1092
        %v1104 = vpack.c.b16 %v1095, %v1094
        %v1105 = vpack.c.b16 %v1097, %v1096
        %1114 = vmatprep.subr.bf16.mxu0 0
        %1115 = vmatpush1.bf16.msra.mxu0 %v1105
        %1116 = vmatprep.subr.bf16.mxu0 0
        %1117 = vmatpush1.bf16.msra.mxu0 %v1104
        %1118 = vmatprep.subr.bf16.mxu0 0
        %1119 = vmatpush1.bf16.msra.mxu0 %v1103
        %1120 = vmatprep.subr.bf16.mxu0 0
        %1121 = vmatpush1.bf16.msra.mxu0 %v1102
        %1122 = vmatprep.subr.bf16.mxu0 0
        %1123 = vmatpush1.bf16.msra.mxu0 %v1101
        %1124 = vmatprep.subr.bf16.mxu0 0
        %1125 = vmatpush1.bf16.msra.mxu0 %v1100
        %1126 = vmatprep.subr.bf16.mxu0 0
        %1127 = vmatpush1.bf16.msra.mxu0 %v1099
        %1128 = vmatprep.subr.bf16.mxu0 0
        %1129 = vmatpush1.bf16.msra.mxu0 %v1098
        %1130 = vmatprep.subr.bf16.mxu0 0
        %1131 = vmatpush2.bf16.msra.mxu0 0
        %1132 = vmatprep.subr.bf16.mxu0 0
        %1133 = vmatpush2.bf16.msra.mxu0 0
        %1134 = vmatprep.subr.bf16.mxu0 0
        %1135 = vmatpush2.bf16.msra.mxu0 0
        %1136 = vmatprep.subr.bf16.mxu0 0
        %1137 = vmatpush2.bf16.msra.mxu0 0
        %1138 = vmatprep.subr.bf16.mxu0 0
        %1139 = vmatpush2.bf16.msra.mxu0 0
        %1140 = vmatprep.subr.bf16.mxu0 0
        %1141 = vmatpush2.bf16.msra.mxu0 0
        %1142 = vmatprep.subr.bf16.mxu0 0
        %1143 = vmatpush2.bf16.msra.mxu0 0
        %1144 = vmatprep.subr.bf16.mxu0 0
        %1145 = vmatpush2.bf16.msra.mxu0 0
        %1146 = vmatprep.mubr.bf16.mxu0 0
        %1147 = vmatmul.mubr.bf16.gmra.mxu0 %v1034
        %v1148 = vpop.f32.mrf.mxu0
        %v1149 = vadd.f32 0.0, %v1148
        %v1150 = vpop.f32.mrf.mxu0
        %v1151 = vpop.f32.mrf.mxu0
        %v1152 = vadd.f32 0.0, %v1151
        %v1153 = vpop.f32.mrf.mxu0
        %1154 = vmatprep.mubr.bf16.mxu0 0
        %1155 = vmatmul.mubr.bf16.gmra.mxu0 %v1035
        %v1156 = vpop.f32.mrf.mxu0
        %v1157 = vadd.f32 0.0, %v1156
        %v1158 = vpop.f32.mrf.mxu0
        %v1159 = vpop.f32.mrf.mxu0
        %v1160 = vadd.f32 0.0, %v1159
        %v1161 = vpop.f32.mrf.mxu0
        %1162 = vmatprep.mubr.bf16.mxu0 0
        %1163 = vmatmul.mubr.bf16.gmra.mxu0 %v1036
        %v1164 = vpop.f32.mrf.mxu0
        %v1165 = vadd.f32 0.0, %v1164
        %v1166 = vpop.f32.mrf.mxu0
        %v1167 = vpop.f32.mrf.mxu0
        %v1168 = vadd.f32 0.0, %v1167
        %v1169 = vpop.f32.mrf.mxu0
        %1170 = vmatprep.mubr.bf16.mxu0 0
        %1171 = vmatmul.mubr.bf16.gmra.mxu0 %v1037
        %v1172 = vpop.f32.mrf.mxu0
        %v1173 = vadd.f32 0.0, %v1172
        %v1174 = vpop.f32.mrf.mxu0
        %v1175 = vpop.f32.mrf.mxu0
        %v1176 = vadd.f32 0.0, %v1175
        %v1177 = vpop.f32.mrf.mxu0
        %1178 = vmatprep.mubr.bf16.mxu0 0
        %1179 = vmatmul.mubr.bf16.gmra.mxu0 %v1038
        %v1180 = vpop.f32.mrf.mxu0
        %v1181 = vadd.f32 0.0, %v1180
        %v1182 = vpop.f32.mrf.mxu0
        %v1183 = vpop.f32.mrf.mxu0
        %v1184 = vadd.f32 0.0, %v1183
        %v1185 = vpop.f32.mrf.mxu0
        %1186 = vmatprep.mubr.bf16.mxu0 0
        %1187 = vmatmul.mubr.bf16.gmra.mxu0 %v1039
        %v1188 = vpop.f32.mrf.mxu0
        %v1189 = vadd.f32 0.0, %v1188
        %v1190 = vpop.f32.mrf.mxu0
        %v1191 = vpop.f32.mrf.mxu0
        %v1192 = vadd.f32 0.0, %v1191
        %v1193 = vpop.f32.mrf.mxu0
        %1194 = vmatprep.mubr.bf16.mxu0 0
        %1195 = vmatmul.mubr.bf16.gmra.mxu0 %v1040
        %v1196 = vpop.f32.mrf.mxu0
        %v1197 = vadd.f32 0.0, %v1196
        %v1198 = vpop.f32.mrf.mxu0
        %v1199 = vpop.f32.mrf.mxu0
        %v1200 = vadd.f32 0.0, %v1199
        %v1201 = vpop.f32.mrf.mxu0
        %1202 = vmatprep.mubr.bf16.mxu0 0
        %1203 = vmatmul.mubr.bf16.gmra.mxu0 %v1041
        %v1204 = vpop.f32.mrf.mxu0
        %v1205 = vadd.f32 0.0, %v1204
        %v1206 = vpop.f32.mrf.mxu0
        %v1207 = vpop.f32.mrf.mxu0
        %v1208 = vadd.f32 0.0, %v1207
        %v1209 = vpop.f32.mrf.mxu0
        %1210 = vmatprep.mubr.bf16.mxu0 0
        %1211 = vmatmul.mubr.bf16.gmra.mxu0 %v1042
        %v1212 = vpop.f32.mrf.mxu0
        %v1213 = vadd.f32 0.0, %v1212
        %v1214 = vpop.f32.mrf.mxu0
        %v1215 = vpop.f32.mrf.mxu0
        %v1216 = vadd.f32 0.0, %v1215
        %v1217 = vpop.f32.mrf.mxu0
        %1218 = vmatprep.mubr.bf16.mxu0 0
        %1219 = vmatmul.mubr.bf16.gmra.mxu0 %v1043
        %v1220 = vpop.f32.mrf.mxu0
        %v1221 = vadd.f32 0.0, %v1220
        %v1222 = vpop.f32.mrf.mxu0
        %v1223 = vpop.f32.mrf.mxu0
        %v1224 = vadd.f32 0.0, %v1223
        %v1225 = vpop.f32.mrf.mxu0
        %1226 = vmatprep.mubr.bf16.mxu0 0
        %1227 = vmatmul.mubr.bf16.gmra.mxu0 %v1044
        %v1228 = vpop.f32.mrf.mxu0
        %v1229 = vadd.f32 0.0, %v1228
        %v1230 = vpop.f32.mrf.mxu0
        %v1231 = vpop.f32.mrf.mxu0
        %v1232 = vadd.f32 0.0, %v1231
        %v1233 = vpop.f32.mrf.mxu0
        %1234 = vmatprep.mubr.bf16.mxu0 0
        %1235 = vmatmul.mubr.bf16.gmra.mxu0 %v1045
        %v1236 = vpop.f32.mrf.mxu0
        %v1237 = vadd.f32 0.0, %v1236
        %v1238 = vpop.f32.mrf.mxu0
        %v1239 = vpop.f32.mrf.mxu0
        %v1240 = vadd.f32 0.0, %v1239
        %v1241 = vpop.f32.mrf.mxu0
        %1242 = vmatprep.mubr.bf16.mxu0 0
        %1243 = vmatmul.mubr.bf16.gmra.mxu0 %v1046
        %v1244 = vpop.f32.mrf.mxu0
        %v1245 = vadd.f32 0.0, %v1244
        %v1246 = vpop.f32.mrf.mxu0
        %v1247 = vpop.f32.mrf.mxu0
        %v1248 = vadd.f32 0.0, %v1247
        %v1249 = vpop.f32.mrf.mxu0
        %1250 = vmatprep.mubr.bf16.mxu0 0
        %1251 = vmatmul.mubr.bf16.gmra.mxu0 %v1047
        %v1252 = vpop.f32.mrf.mxu0
        %v1253 = vadd.f32 0.0, %v1252
        %v1254 = vpop.f32.mrf.mxu0
        %v1255 = vpop.f32.mrf.mxu0
        %v1256 = vadd.f32 0.0, %v1255
        %v1257 = vpop.f32.mrf.mxu0
        %1258 = vmatprep.mubr.bf16.mxu0 0
        %1259 = vmatmul.mubr.bf16.gmra.mxu0 %v1048
        %v1260 = vpop.f32.mrf.mxu0
        %v1261 = vadd.f32 0.0, %v1260
        %v1262 = vpop.f32.mrf.mxu0
        %v1263 = vpop.f32.mrf.mxu0
        %v1264 = vadd.f32 0.0, %v1263
        %v1265 = vpop.f32.mrf.mxu0
        %1266 = vmatprep.mubr.bf16.mxu0 0
        %1267 = vmatmul.mubr.bf16.gmra.mxu0 %v1049
        %v1268 = vpop.f32.mrf.mxu0
        %v1269 = vadd.f32 0.0, %v1268
        %v1270 = vpop.f32.mrf.mxu0
        %v1271 = vpop.f32.mrf.mxu0
        %v1272 = vadd.f32 0.0, %v1271
        %v1273 = vpop.f32.mrf.mxu0
        %1274 = vdwg.mxu0
        %v1307 = vunpack.c.l.b16 %v438
        %v1308 = vunpack.c.l.b16 %v439
        %v1309 = vunpack.c.l.b16 %v441
        %v1310 = vunpack.c.l.b16 %v442
        %v1311 = vunpack.c.l.b16 %v444
        %v1312 = vunpack.c.l.b16 %v445
        %v1313 = vunpack.c.l.b16 %v447
        %v1314 = vunpack.c.l.b16 %v448
        %v1315 = vunpack.c.l.b16 %v450
        %v1316 = vunpack.c.l.b16 %v451
        %v1317 = vunpack.c.l.b16 %v453
        %v1318 = vunpack.c.l.b16 %v454
        %v1319 = vunpack.c.l.b16 %v456
        %v1320 = vunpack.c.l.b16 %v457
        %v1321 = vunpack.c.l.b16 %v459
        %v1322 = vunpack.c.l.b16 %v460
        %v1323 = vunpack.c.l.b16 %v462
        %v1324 = vunpack.c.l.b16 %v463
        %v1325 = vunpack.c.l.b16 %v465
        %v1326 = vunpack.c.l.b16 %v466
        %v1327 = vunpack.c.l.b16 %v468
        %v1328 = vunpack.c.l.b16 %v469
        %v1329 = vunpack.c.l.b16 %v471
        %v1330 = vunpack.c.l.b16 %v472
        %v1331 = vunpack.c.l.b16 %v474
        %v1332 = vunpack.c.l.b16 %v475
        %v1333 = vunpack.c.l.b16 %v477
        %v1334 = vunpack.c.l.b16 %v478
        %v1335 = vunpack.c.l.b16 %v480
        %v1336 = vunpack.c.l.b16 %v481
        %v1337 = vunpack.c.l.b16 %v483
        %v1338 = vunpack.c.l.b16 %v484
        %v1339 = vpack.c.b16 %v1308, %v1307
        %v1340 = vpack.c.b16 %v1310, %v1309
        %v1341 = vpack.c.b16 %v1312, %v1311
        %v1342 = vpack.c.b16 %v1314, %v1313
        %v1343 = vpack.c.b16 %v1316, %v1315
        %v1344 = vpack.c.b16 %v1318, %v1317
        %v1345 = vpack.c.b16 %v1320, %v1319
        %v1346 = vpack.c.b16 %v1322, %v1321
        %v1347 = vpack.c.b16 %v1324, %v1323
        %v1348 = vpack.c.b16 %v1326, %v1325
        %v1349 = vpack.c.b16 %v1328, %v1327
        %v1350 = vpack.c.b16 %v1330, %v1329
        %v1351 = vpack.c.b16 %v1332, %v1331
        %v1352 = vpack.c.b16 %v1334, %v1333
        %v1353 = vpack.c.b16 %v1336, %v1335
        %v1354 = vpack.c.b16 %v1338, %v1337
        %v1387 = vunpack.c.l.b16 %v582
        %v1388 = vunpack.c.l.b16 %v583
        %v1389 = vunpack.c.l.b16 %v584
        %v1390 = vunpack.c.l.b16 %v585
        %v1391 = vunpack.c.l.b16 %v586
        %v1392 = vunpack.c.l.b16 %v587
        %v1393 = vunpack.c.l.b16 %v588
        %v1394 = vunpack.c.l.b16 %v589
        %v1395 = vunpack.c.l.b16 %v590
        %v1396 = vunpack.c.l.b16 %v591
        %v1397 = vunpack.c.l.b16 %v592
        %v1398 = vunpack.c.l.b16 %v593
        %v1399 = vunpack.c.l.b16 %v594
        %v1400 = vunpack.c.l.b16 %v595
        %v1401 = vunpack.c.l.b16 %v596
        %v1402 = vunpack.c.l.b16 %v597
        %v1403 = vpack.c.b16 %v1388, %v1387
        %v1404 = vpack.c.b16 %v1390, %v1389
        %v1405 = vpack.c.b16 %v1392, %v1391
        %v1406 = vpack.c.b16 %v1394, %v1393
        %v1407 = vpack.c.b16 %v1396, %v1395
        %v1408 = vpack.c.b16 %v1398, %v1397
        %v1409 = vpack.c.b16 %v1400, %v1399
        %v1410 = vpack.c.b16 %v1402, %v1401
        %1419 = vmatprep.subr.bf16.mxu0 0
        %1420 = vmatpush1.bf16.msra.mxu0 %v1410
        %1421 = vmatprep.subr.bf16.mxu0 0
        %1422 = vmatpush1.bf16.msra.mxu0 %v1409
        %1423 = vmatprep.subr.bf16.mxu0 0
        %1424 = vmatpush1.bf16.msra.mxu0 %v1408
        %1425 = vmatprep.subr.bf16.mxu0 0
        %1426 = vmatpush1.bf16.msra.mxu0 %v1407
        %1427 = vmatprep.subr.bf16.mxu0 0
        %1428 = vmatpush1.bf16.msra.mxu0 %v1406
        %1429 = vmatprep.subr.bf16.mxu0 0
        %1430 = vmatpush1.bf16.msra.mxu0 %v1405
        %1431 = vmatprep.subr.bf16.mxu0 0
        %1432 = vmatpush1.bf16.msra.mxu0 %v1404
        %1433 = vmatprep.subr.bf16.mxu0 0
        %1434 = vmatpush1.bf16.msra.mxu0 %v1403
        %1435 = vmatprep.subr.bf16.mxu0 0
        %1436 = vmatpush2.bf16.msra.mxu0 0
        %1437 = vmatprep.subr.bf16.mxu0 0
        %1438 = vmatpush2.bf16.msra.mxu0 0
        %1439 = vmatprep.subr.bf16.mxu0 0
        %1440 = vmatpush2.bf16.msra.mxu0 0
        %1441 = vmatprep.subr.bf16.mxu0 0
        %1442 = vmatpush2.bf16.msra.mxu0 0
        %1443 = vmatprep.subr.bf16.mxu0 0
        %1444 = vmatpush2.bf16.msra.mxu0 0
        %1445 = vmatprep.subr.bf16.mxu0 0
        %1446 = vmatpush2.bf16.msra.mxu0 0
        %1447 = vmatprep.subr.bf16.mxu0 0
        %1448 = vmatpush2.bf16.msra.mxu0 0
        %1449 = vmatprep.subr.bf16.mxu0 0
        %1450 = vmatpush2.bf16.msra.mxu0 0
        %1451 = vmatprep.mubr.bf16.mxu0 0
        %1452 = vmatmul.mubr.bf16.gmra.mxu0 %v1339
        %v1453 = vpop.f32.mrf.mxu0
        %v1454 = vadd.f32 %v1149, %v1453
        %v1455 = vpop.f32.mrf.mxu0
        %v1456 = vpop.f32.mrf.mxu0
        %v1457 = vadd.f32 %v1152, %v1456
        %v1458 = vpop.f32.mrf.mxu0
        %1459 = vmatprep.mubr.bf16.mxu0 0
        %1460 = vmatmul.mubr.bf16.gmra.mxu0 %v1340
        %v1461 = vpop.f32.mrf.mxu0
        %v1462 = vadd.f32 %v1157, %v1461
        %v1463 = vpop.f32.mrf.mxu0
        %v1464 = vpop.f32.mrf.mxu0
        %v1465 = vadd.f32 %v1160, %v1464
        %v1466 = vpop.f32.mrf.mxu0
        %1467 = vmatprep.mubr.bf16.mxu0 0
        %1468 = vmatmul.mubr.bf16.gmra.mxu0 %v1341
        %v1469 = vpop.f32.mrf.mxu0
        %v1470 = vadd.f32 %v1165, %v1469
        %v1471 = vpop.f32.mrf.mxu0
        %v1472 = vpop.f32.mrf.mxu0
        %v1473 = vadd.f32 %v1168, %v1472
        %v1474 = vpop.f32.mrf.mxu0
        %1475 = vmatprep.mubr.bf16.mxu0 0
        %1476 = vmatmul.mubr.bf16.gmra.mxu0 %v1342
        %v1477 = vpop.f32.mrf.mxu0
        %v1478 = vadd.f32 %v1173, %v1477
        %v1479 = vpop.f32.mrf.mxu0
        %v1480 = vpop.f32.mrf.mxu0
        %v1481 = vadd.f32 %v1176, %v1480
        %v1482 = vpop.f32.mrf.mxu0
        %1483 = vmatprep.mubr.bf16.mxu0 0
        %1484 = vmatmul.mubr.bf16.gmra.mxu0 %v1343
        %v1485 = vpop.f32.mrf.mxu0
        %v1486 = vadd.f32 %v1181, %v1485
        %v1487 = vpop.f32.mrf.mxu0
        %v1488 = vpop.f32.mrf.mxu0
        %v1489 = vadd.f32 %v1184, %v1488
        %v1490 = vpop.f32.mrf.mxu0
        %1491 = vmatprep.mubr.bf16.mxu0 0
        %1492 = vmatmul.mubr.bf16.gmra.mxu0 %v1344
        %v1493 = vpop.f32.mrf.mxu0
        %v1494 = vadd.f32 %v1189, %v1493
        %v1495 = vpop.f32.mrf.mxu0
        %v1496 = vpop.f32.mrf.mxu0
        %v1497 = vadd.f32 %v1192, %v1496
        %v1498 = vpop.f32.mrf.mxu0
        %1499 = vmatprep.mubr.bf16.mxu0 0
        %1500 = vmatmul.mubr.bf16.gmra.mxu0 %v1345
        %v1501 = vpop.f32.mrf.mxu0
        %v1502 = vadd.f32 %v1197, %v1501
        %v1503 = vpop.f32.mrf.mxu0
        %v1504 = vpop.f32.mrf.mxu0
        %v1505 = vadd.f32 %v1200, %v1504
        %v1506 = vpop.f32.mrf.mxu0
        %1507 = vmatprep.mubr.bf16.mxu0 0
        %1508 = vmatmul.mubr.bf16.gmra.mxu0 %v1346
        %v1509 = vpop.f32.mrf.mxu0
        %v1510 = vadd.f32 %v1205, %v1509
        %v1511 = vpop.f32.mrf.mxu0
        %v1512 = vpop.f32.mrf.mxu0
        %v1513 = vadd.f32 %v1208, %v1512
        %v1514 = vpop.f32.mrf.mxu0
        %1515 = vmatprep.mubr.bf16.mxu0 0
        %1516 = vmatmul.mubr.bf16.gmra.mxu0 %v1347
        %v1517 = vpop.f32.mrf.mxu0
        %v1518 = vadd.f32 %v1213, %v1517
        %v1519 = vpop.f32.mrf.mxu0
        %v1520 = vpop.f32.mrf.mxu0
        %v1521 = vadd.f32 %v1216, %v1520
        %v1522 = vpop.f32.mrf.mxu0
        %1523 = vmatprep.mubr.bf16.mxu0 0
        %1524 = vmatmul.mubr.bf16.gmra.mxu0 %v1348
        %v1525 = vpop.f32.mrf.mxu0
        %v1526 = vadd.f32 %v1221, %v1525
        %v1527 = vpop.f32.mrf.mxu0
        %v1528 = vpop.f32.mrf.mxu0
        %v1529 = vadd.f32 %v1224, %v1528
        %v1530 = vpop.f32.mrf.mxu0
        %1531 = vmatprep.mubr.bf16.mxu0 0
        %1532 = vmatmul.mubr.bf16.gmra.mxu0 %v1349
        %v1533 = vpop.f32.mrf.mxu0
        %v1534 = vadd.f32 %v1229, %v1533
        %v1535 = vpop.f32.mrf.mxu0
        %v1536 = vpop.f32.mrf.mxu0
        %v1537 = vadd.f32 %v1232, %v1536
        %v1538 = vpop.f32.mrf.mxu0
        %1539 = vmatprep.mubr.bf16.mxu0 0
        %1540 = vmatmul.mubr.bf16.gmra.mxu0 %v1350
        %v1541 = vpop.f32.mrf.mxu0
        %v1542 = vadd.f32 %v1237, %v1541
        %v1543 = vpop.f32.mrf.mxu0
        %v1544 = vpop.f32.mrf.mxu0
        %v1545 = vadd.f32 %v1240, %v1544
        %v1546 = vpop.f32.mrf.mxu0
        %1547 = vmatprep.mubr.bf16.mxu0 0
        %1548 = vmatmul.mubr.bf16.gmra.mxu0 %v1351
        %v1549 = vpop.f32.mrf.mxu0
        %v1550 = vadd.f32 %v1245, %v1549
        %v1551 = vpop.f32.mrf.mxu0
        %v1552 = vpop.f32.mrf.mxu0
        %v1553 = vadd.f32 %v1248, %v1552
        %v1554 = vpop.f32.mrf.mxu0
        %1555 = vmatprep.mubr.bf16.mxu0 0
        %1556 = vmatmul.mubr.bf16.gmra.mxu0 %v1352
        %v1557 = vpop.f32.mrf.mxu0
        %v1558 = vadd.f32 %v1253, %v1557
        %v1559 = vpop.f32.mrf.mxu0
        %v1560 = vpop.f32.mrf.mxu0
        %v1561 = vadd.f32 %v1256, %v1560
        %v1562 = vpop.f32.mrf.mxu0
        %1563 = vmatprep.mubr.bf16.mxu0 0
        %1564 = vmatmul.mubr.bf16.gmra.mxu0 %v1353
        %v1565 = vpop.f32.mrf.mxu0
        %v1566 = vadd.f32 %v1261, %v1565
        %v1567 = vpop.f32.mrf.mxu0
        %v1568 = vpop.f32.mrf.mxu0
        %v1569 = vadd.f32 %v1264, %v1568
        %v1570 = vpop.f32.mrf.mxu0
        %1571 = vmatprep.mubr.bf16.mxu0 0
        %1572 = vmatmul.mubr.bf16.gmra.mxu0 %v1354
        %v1573 = vpop.f32.mrf.mxu0
        %v1574 = vadd.f32 %v1269, %v1573
        %v1575 = vpop.f32.mrf.mxu0
        %v1576 = vpop.f32.mrf.mxu0
        %v1577 = vadd.f32 %v1272, %v1576
        %v1578 = vpop.f32.mrf.mxu0
        %1579 = vdwg.mxu0
        %vm1596 = vcmask 1042432
        %vm1597 = vcmask 1046532
        %vm1598 = vmor %vm1596, %vm1597
        %v1599 = vrot.slane %v438, 5
        %v1600 = vrot.slane %v1599, 4
        %v1601 = vrot.slane %v439, 5
        %v1602 = vsel %vm1598, %v1600, %v1601
        %v1603 = vrot.slane %v1601, 4
        %v1604 = vrot.slane %v440, 5
        %v1605 = vsel %vm1598, %v1603, %v1604
        %v1606 = vrot.slane %v441, 5
        %v1607 = vrot.slane %v1606, 4
        %v1608 = vrot.slane %v442, 5
        %v1609 = vsel %vm1598, %v1607, %v1608
        %v1610 = vrot.slane %v1608, 4
        %v1611 = vrot.slane %v443, 5
        %v1612 = vsel %vm1598, %v1610, %v1611
        %v1613 = vrot.slane %v444, 5
        %v1614 = vrot.slane %v1613, 4
        %v1615 = vrot.slane %v445, 5
        %v1616 = vsel %vm1598, %v1614, %v1615
        %v1617 = vrot.slane %v1615, 4
        %v1618 = vrot.slane %v446, 5
        %v1619 = vsel %vm1598, %v1617, %v1618
        %v1620 = vrot.slane %v447, 5
        %v1621 = vrot.slane %v1620, 4
        %v1622 = vrot.slane %v448, 5
        %v1623 = vsel %vm1598, %v1621, %v1622
        %v1624 = vrot.slane %v1622, 4
        %v1625 = vrot.slane %v449, 5
        %v1626 = vsel %vm1598, %v1624, %v1625
        %v1627 = vrot.slane %v450, 5
        %v1628 = vrot.slane %v1627, 4
        %v1629 = vrot.slane %v451, 5
        %v1630 = vsel %vm1598, %v1628, %v1629
        %v1631 = vrot.slane %v1629, 4
        %v1632 = vrot.slane %v452, 5
        %v1633 = vsel %vm1598, %v1631, %v1632
        %v1634 = vrot.slane %v453, 5
        %v1635 = vrot.slane %v1634, 4
        %v1636 = vrot.slane %v454, 5
        %v1637 = vsel %vm1598, %v1635, %v1636
        %v1638 = vrot.slane %v1636, 4
        %v1639 = vrot.slane %v455, 5
        %v1640 = vsel %vm1598, %v1638, %v1639
        %v1641 = vrot.slane %v456, 5
        %v1642 = vrot.slane %v1641, 4
        %v1643 = vrot.slane %v457, 5
        %v1644 = vsel %vm1598, %v1642, %v1643
        %v1645 = vrot.slane %v1643, 4
        %v1646 = vrot.slane %v458, 5
        %v1647 = vsel %vm1598, %v1645, %v1646
        %v1648 = vrot.slane %v459, 5
        %v1649 = vrot.slane %v1648, 4
        %v1650 = vrot.slane %v460, 5
        %v1651 = vsel %vm1598, %v1649, %v1650
        %v1652 = vrot.slane %v1650, 4
        %v1653 = vrot.slane %v461, 5
        %v1654 = vsel %vm1598, %v1652, %v1653
        %v1655 = vrot.slane %v462, 5
        %v1656 = vrot.slane %v1655, 4
        %v1657 = vrot.slane %v463, 5
        %v1658 = vsel %vm1598, %v1656, %v1657
        %v1659 = vrot.slane %v1657, 4
        %v1660 = vrot.slane %v464, 5
        %v1661 = vsel %vm1598, %v1659, %v1660
        %v1662 = vrot.slane %v465, 5
        %v1663 = vrot.slane %v1662, 4
        %v1664 = vrot.slane %v466, 5
        %v1665 = vsel %vm1598, %v1663, %v1664
        %v1666 = vrot.slane %v1664, 4
        %v1667 = vrot.slane %v467, 5
        %v1668 = vsel %vm1598, %v1666, %v1667
        %v1669 = vrot.slane %v468, 5
        %v1670 = vrot.slane %v1669, 4
        %v1671 = vrot.slane %v469, 5
        %v1672 = vsel %vm1598, %v1670, %v1671
        %v1673 = vrot.slane %v1671, 4
        %v1674 = vrot.slane %v470, 5
        %v1675 = vsel %vm1598, %v1673, %v1674
        %v1676 = vrot.slane %v471, 5
        %v1677 = vrot.slane %v1676, 4
        %v1678 = vrot.slane %v472, 5
        %v1679 = vsel %vm1598, %v1677, %v1678
        %v1680 = vrot.slane %v1678, 4
        %v1681 = vrot.slane %v473, 5
        %v1682 = vsel %vm1598, %v1680, %v1681
        %v1683 = vrot.slane %v474, 5
        %v1684 = vrot.slane %v1683, 4
        %v1685 = vrot.slane %v475, 5
        %v1686 = vsel %vm1598, %v1684, %v1685
        %v1687 = vrot.slane %v1685, 4
        %v1688 = vrot.slane %v476, 5
        %v1689 = vsel %vm1598, %v1687, %v1688
        %v1690 = vrot.slane %v477, 5
        %v1691 = vrot.slane %v1690, 4
        %v1692 = vrot.slane %v478, 5
        %v1693 = vsel %vm1598, %v1691, %v1692
        %v1694 = vrot.slane %v1692, 4
        %v1695 = vrot.slane %v479, 5
        %v1696 = vsel %vm1598, %v1694, %v1695
        %v1697 = vrot.slane %v480, 5
        %v1698 = vrot.slane %v1697, 4
        %v1699 = vrot.slane %v481, 5
        %v1700 = vsel %vm1598, %v1698, %v1699
        %v1701 = vrot.slane %v1699, 4
        %v1702 = vrot.slane %v482, 5
        %v1703 = vsel %vm1598, %v1701, %v1702
        %v1704 = vrot.slane %v483, 5
        %v1705 = vrot.slane %v1704, 4
        %v1706 = vrot.slane %v484, 5
        %v1707 = vsel %vm1598, %v1705, %v1706
        %v1708 = vrot.slane %v1706, 4
        %v1709 = vrot.slane %v485, 5
        %v1710 = vsel %vm1598, %v1708, %v1709
        %s1711 = scalar_lea.vmem [#allocation9], 128
        %v1712 = vld [vmem:[%s1711] sm:$0xf]
        %v1713 = vld [vmem:[%s1711 + $0x4] sm:$0xf]
        %v1714 = vld [vmem:[%s1711 + $0x8] sm:$0xf]
        %v1715 = vld [vmem:[%s1711 + $0xc] sm:$0xf]
        %v1716 = vld [vmem:[%s1711 + $0x10] sm:$0xf]
        %v1717 = vld [vmem:[%s1711 + $0x14] sm:$0xf]
        %v1718 = vld [vmem:[%s1711 + $0x18] sm:$0xf]
        %v1719 = vld [vmem:[%s1711 + $0x1c] sm:$0xf]
        %v1720 = vld [vmem:[%s1711 + $0x20] sm:$0xf]
        %v1721 = vld [vmem:[%s1711 + $0x24] sm:$0xf]
        %v1722 = vld [vmem:[%s1711 + $0x28] sm:$0xf]
        %v1723 = vld [vmem:[%s1711 + $0x2c] sm:$0xf]
        %v1724 = vld [vmem:[%s1711 + $0x30] sm:$0xf]
        %v1725 = vld [vmem:[%s1711 + $0x34] sm:$0xf]
        %v1726 = vld [vmem:[%s1711 + $0x38] sm:$0xf]
        %v1727 = vld [vmem:[%s1711 + $0x3c] sm:$0xf]
        %v1728 = vunpack.c.l.b16 %v1602
        %v1729 = vunpack.c.l.b16 %v1605
        %v1730 = vunpack.c.l.b16 %v1609
        %v1731 = vunpack.c.l.b16 %v1612
        %v1732 = vunpack.c.l.b16 %v1616
        %v1733 = vunpack.c.l.b16 %v1619
        %v1734 = vunpack.c.l.b16 %v1623
        %v1735 = vunpack.c.l.b16 %v1626
        %v1736 = vunpack.c.l.b16 %v1630
        %v1737 = vunpack.c.l.b16 %v1633
        %v1738 = vunpack.c.l.b16 %v1637
        %v1739 = vunpack.c.l.b16 %v1640
        %v1740 = vunpack.c.l.b16 %v1644
        %v1741 = vunpack.c.l.b16 %v1647
        %v1742 = vunpack.c.l.b16 %v1651
        %v1743 = vunpack.c.l.b16 %v1654
        %v1744 = vunpack.c.l.b16 %v1658
        %v1745 = vunpack.c.l.b16 %v1661
        %v1746 = vunpack.c.l.b16 %v1665
        %v1747 = vunpack.c.l.b16 %v1668
        %v1748 = vunpack.c.l.b16 %v1672
        %v1749 = vunpack.c.l.b16 %v1675
        %v1750 = vunpack.c.l.b16 %v1679
        %v1751 = vunpack.c.l.b16 %v1682
        %v1752 = vunpack.c.l.b16 %v1686
        %v1753 = vunpack.c.l.b16 %v1689
        %v1754 = vunpack.c.l.b16 %v1693
        %v1755 = vunpack.c.l.b16 %v1696
        %v1756 = vunpack.c.l.b16 %v1700
        %v1757 = vunpack.c.l.b16 %v1703
        %v1758 = vunpack.c.l.b16 %v1707
        %v1759 = vunpack.c.l.b16 %v1710
        %v1760 = vpack.c.b16 %v1729, %v1728
        %v1761 = vpack.c.b16 %v1731, %v1730
        %v1762 = vpack.c.b16 %v1733, %v1732
        %v1763 = vpack.c.b16 %v1735, %v1734
        %v1764 = vpack.c.b16 %v1737, %v1736
        %v1765 = vpack.c.b16 %v1739, %v1738
        %v1766 = vpack.c.b16 %v1741, %v1740
        %v1767 = vpack.c.b16 %v1743, %v1742
        %v1768 = vpack.c.b16 %v1745, %v1744
        %v1769 = vpack.c.b16 %v1747, %v1746
        %v1770 = vpack.c.b16 %v1749, %v1748
        %v1771 = vpack.c.b16 %v1751, %v1750
        %v1772 = vpack.c.b16 %v1753, %v1752
        %v1773 = vpack.c.b16 %v1755, %v1754
        %v1774 = vpack.c.b16 %v1757, %v1756
        %v1775 = vpack.c.b16 %v1759, %v1758
        %v1808 = vunpack.c.l.b16 %v1712
        %v1809 = vunpack.c.l.b16 %v1713
        %v1810 = vunpack.c.l.b16 %v1714
        %v1811 = vunpack.c.l.b16 %v1715
        %v1812 = vunpack.c.l.b16 %v1716
        %v1813 = vunpack.c.l.b16 %v1717
        %v1814 = vunpack.c.l.b16 %v1718
        %v1815 = vunpack.c.l.b16 %v1719
        %v1816 = vunpack.c.l.b16 %v1720
        %v1817 = vunpack.c.l.b16 %v1721
        %v1818 = vunpack.c.l.b16 %v1722
        %v1819 = vunpack.c.l.b16 %v1723
        %v1820 = vunpack.c.l.b16 %v1724
        %v1821 = vunpack.c.l.b16 %v1725
        %v1822 = vunpack.c.l.b16 %v1726
        %v1823 = vunpack.c.l.b16 %v1727
        %v1824 = vpack.c.b16 %v1809, %v1808
        %v1825 = vpack.c.b16 %v1811, %v1810
        %v1826 = vpack.c.b16 %v1813, %v1812
        %v1827 = vpack.c.b16 %v1815, %v1814
        %v1828 = vpack.c.b16 %v1817, %v1816
        %v1829 = vpack.c.b16 %v1819, %v1818
        %v1830 = vpack.c.b16 %v1821, %v1820
        %v1831 = vpack.c.b16 %v1823, %v1822
        %1840 = vmatprep.subr.bf16.mxu0 0
        %1841 = vmatpush1.bf16.msra.mxu0 %v1831
        %1842 = vmatprep.subr.bf16.mxu0 0
        %1843 = vmatpush1.bf16.msra.mxu0 %v1830
        %1844 = vmatprep.subr.bf16.mxu0 0
        %1845 = vmatpush1.bf16.msra.mxu0 %v1829
        %1846 = vmatprep.subr.bf16.mxu0 0
        %1847 = vmatpush1.bf16.msra.mxu0 %v1828
        %1848 = vmatprep.subr.bf16.mxu0 0
        %1849 = vmatpush1.bf16.msra.mxu0 %v1827
        %1850 = vmatprep.subr.bf16.mxu0 0
        %1851 = vmatpush1.bf16.msra.mxu0 %v1826
        %1852 = vmatprep.subr.bf16.mxu0 0
        %1853 = vmatpush1.bf16.msra.mxu0 %v1825
        %1854 = vmatprep.subr.bf16.mxu0 0
        %1855 = vmatpush1.bf16.msra.mxu0 %v1824
        %1856 = vmatprep.subr.bf16.mxu0 0
        %1857 = vmatpush2.bf16.msra.mxu0 0
        %1858 = vmatprep.subr.bf16.mxu0 0
        %1859 = vmatpush2.bf16.msra.mxu0 0
        %1860 = vmatprep.subr.bf16.mxu0 0
        %1861 = vmatpush2.bf16.msra.mxu0 0
        %1862 = vmatprep.subr.bf16.mxu0 0
        %1863 = vmatpush2.bf16.msra.mxu0 0
        %1864 = vmatprep.subr.bf16.mxu0 0
        %1865 = vmatpush2.bf16.msra.mxu0 0
        %1866 = vmatprep.subr.bf16.mxu0 0
        %1867 = vmatpush2.bf16.msra.mxu0 0
        %1868 = vmatprep.subr.bf16.mxu0 0
        %1869 = vmatpush2.bf16.msra.mxu0 0
        %1870 = vmatprep.subr.bf16.mxu0 0
        %1871 = vmatpush2.bf16.msra.mxu0 0
        %1872 = vmatprep.mubr.bf16.mxu0 0
        %1873 = vmatmul.mubr.bf16.gmra.mxu0 %v1760
        %v1874 = vpop.f32.mrf.mxu0
        %v1875 = vadd.f32 0.0, %v1874
        %v1876 = vpop.f32.mrf.mxu0
        %v1877 = vpop.f32.mrf.mxu0
        %v1878 = vadd.f32 0.0, %v1877
        %v1879 = vpop.f32.mrf.mxu0
        %1880 = vmatprep.mubr.bf16.mxu0 0
        %1881 = vmatmul.mubr.bf16.gmra.mxu0 %v1761
        %v1882 = vpop.f32.mrf.mxu0
        %v1883 = vadd.f32 0.0, %v1882
        %v1884 = vpop.f32.mrf.mxu0
        %v1885 = vpop.f32.mrf.mxu0
        %v1886 = vadd.f32 0.0, %v1885
        %v1887 = vpop.f32.mrf.mxu0
        %1888 = vmatprep.mubr.bf16.mxu0 0
        %1889 = vmatmul.mubr.bf16.gmra.mxu0 %v1762
        %v1890 = vpop.f32.mrf.mxu0
        %v1891 = vadd.f32 0.0, %v1890
        %v1892 = vpop.f32.mrf.mxu0
        %v1893 = vpop.f32.mrf.mxu0
        %v1894 = vadd.f32 0.0, %v1893
        %v1895 = vpop.f32.mrf.mxu0
        %1896 = vmatprep.mubr.bf16.mxu0 0
        %1897 = vmatmul.mubr.bf16.gmra.mxu0 %v1763
        %v1898 = vpop.f32.mrf.mxu0
        %v1899 = vadd.f32 0.0, %v1898
        %v1900 = vpop.f32.mrf.mxu0
        %v1901 = vpop.f32.mrf.mxu0
        %v1902 = vadd.f32 0.0, %v1901
        %v1903 = vpop.f32.mrf.mxu0
        %1904 = vmatprep.mubr.bf16.mxu0 0
        %1905 = vmatmul.mubr.bf16.gmra.mxu0 %v1764
        %v1906 = vpop.f32.mrf.mxu0
        %v1907 = vadd.f32 0.0, %v1906
        %v1908 = vpop.f32.mrf.mxu0
        %v1909 = vpop.f32.mrf.mxu0
        %v1910 = vadd.f32 0.0, %v1909
        %v1911 = vpop.f32.mrf.mxu0
        %1912 = vmatprep.mubr.bf16.mxu0 0
        %1913 = vmatmul.mubr.bf16.gmra.mxu0 %v1765
        %v1914 = vpop.f32.mrf.mxu0
        %v1915 = vadd.f32 0.0, %v1914
        %v1916 = vpop.f32.mrf.mxu0
        %v1917 = vpop.f32.mrf.mxu0
        %v1918 = vadd.f32 0.0, %v1917
        %v1919 = vpop.f32.mrf.mxu0
        %1920 = vmatprep.mubr.bf16.mxu0 0
        %1921 = vmatmul.mubr.bf16.gmra.mxu0 %v1766
        %v1922 = vpop.f32.mrf.mxu0
        %v1923 = vadd.f32 0.0, %v1922
        %v1924 = vpop.f32.mrf.mxu0
        %v1925 = vpop.f32.mrf.mxu0
        %v1926 = vadd.f32 0.0, %v1925
        %v1927 = vpop.f32.mrf.mxu0
        %1928 = vmatprep.mubr.bf16.mxu0 0
        %1929 = vmatmul.mubr.bf16.gmra.mxu0 %v1767
        %v1930 = vpop.f32.mrf.mxu0
        %v1931 = vadd.f32 0.0, %v1930
        %v1932 = vpop.f32.mrf.mxu0
        %v1933 = vpop.f32.mrf.mxu0
        %v1934 = vadd.f32 0.0, %v1933
        %v1935 = vpop.f32.mrf.mxu0
        %1936 = vmatprep.mubr.bf16.mxu0 0
        %1937 = vmatmul.mubr.bf16.gmra.mxu0 %v1768
        %v1938 = vpop.f32.mrf.mxu0
        %v1939 = vadd.f32 0.0, %v1938
        %v1940 = vpop.f32.mrf.mxu0
        %v1941 = vpop.f32.mrf.mxu0
        %v1942 = vadd.f32 0.0, %v1941
        %v1943 = vpop.f32.mrf.mxu0
        %1944 = vmatprep.mubr.bf16.mxu0 0
        %1945 = vmatmul.mubr.bf16.gmra.mxu0 %v1769
        %v1946 = vpop.f32.mrf.mxu0
        %v1947 = vadd.f32 0.0, %v1946
        %v1948 = vpop.f32.mrf.mxu0
        %v1949 = vpop.f32.mrf.mxu0
        %v1950 = vadd.f32 0.0, %v1949
        %v1951 = vpop.f32.mrf.mxu0
        %1952 = vmatprep.mubr.bf16.mxu0 0
        %1953 = vmatmul.mubr.bf16.gmra.mxu0 %v1770
        %v1954 = vpop.f32.mrf.mxu0
        %v1955 = vadd.f32 0.0, %v1954
        %v1956 = vpop.f32.mrf.mxu0
        %v1957 = vpop.f32.mrf.mxu0
        %v1958 = vadd.f32 0.0, %v1957
        %v1959 = vpop.f32.mrf.mxu0
        %1960 = vmatprep.mubr.bf16.mxu0 0
        %1961 = vmatmul.mubr.bf16.gmra.mxu0 %v1771
        %v1962 = vpop.f32.mrf.mxu0
        %v1963 = vadd.f32 0.0, %v1962
        %v1964 = vpop.f32.mrf.mxu0
        %v1965 = vpop.f32.mrf.mxu0
        %v1966 = vadd.f32 0.0, %v1965
        %v1967 = vpop.f32.mrf.mxu0
        %1968 = vmatprep.mubr.bf16.mxu0 0
        %1969 = vmatmul.mubr.bf16.gmra.mxu0 %v1772
        %v1970 = vpop.f32.mrf.mxu0
        %v1971 = vadd.f32 0.0, %v1970
        %v1972 = vpop.f32.mrf.mxu0
        %v1973 = vpop.f32.mrf.mxu0
        %v1974 = vadd.f32 0.0, %v1973
        %v1975 = vpop.f32.mrf.mxu0
        %1976 = vmatprep.mubr.bf16.mxu0 0
        %1977 = vmatmul.mubr.bf16.gmra.mxu0 %v1773
        %v1978 = vpop.f32.mrf.mxu0
        %v1979 = vadd.f32 0.0, %v1978
        %v1980 = vpop.f32.mrf.mxu0
        %v1981 = vpop.f32.mrf.mxu0
        %v1982 = vadd.f32 0.0, %v1981
        %v1983 = vpop.f32.mrf.mxu0
        %1984 = vmatprep.mubr.bf16.mxu0 0
        %1985 = vmatmul.mubr.bf16.gmra.mxu0 %v1774
        %v1986 = vpop.f32.mrf.mxu0
        %v1987 = vadd.f32 0.0, %v1986
        %v1988 = vpop.f32.mrf.mxu0
        %v1989 = vpop.f32.mrf.mxu0
        %v1990 = vadd.f32 0.0, %v1989
        %v1991 = vpop.f32.mrf.mxu0
        %1992 = vmatprep.mubr.bf16.mxu0 0
        %1993 = vmatmul.mubr.bf16.gmra.mxu0 %v1775
        %v1994 = vpop.f32.mrf.mxu0
        %v1995 = vadd.f32 0.0, %v1994
        %v1996 = vpop.f32.mrf.mxu0
        %v1997 = vpop.f32.mrf.mxu0
        %v1998 = vadd.f32 0.0, %v1997
        %v1999 = vpop.f32.mrf.mxu0
        %2000 = vdwg.mxu0
        %v2001 = vadd.f32 %v1454, %v1875
        %v2002 = vadd.f32 %v1457, %v1878
        %v2003 = vadd.f32 %v1462, %v1883
        %v2004 = vadd.f32 %v1465, %v1886
        %v2005 = vadd.f32 %v1470, %v1891
        %v2006 = vadd.f32 %v1473, %v1894
        %v2007 = vadd.f32 %v1478, %v1899
        %v2008 = vadd.f32 %v1481, %v1902
        %v2009 = vadd.f32 %v1486, %v1907
        %v2010 = vadd.f32 %v1489, %v1910
        %v2011 = vadd.f32 %v1494, %v1915
        %v2012 = vadd.f32 %v1497, %v1918
        %v2013 = vadd.f32 %v1502, %v1923
        %v2014 = vadd.f32 %v1505, %v1926
        %v2015 = vadd.f32 %v1510, %v1931
        %v2016 = vadd.f32 %v1513, %v1934
        %v2017 = vadd.f32 %v1518, %v1939
        %v2018 = vadd.f32 %v1521, %v1942
        %v2019 = vadd.f32 %v1526, %v1947
        %v2020 = vadd.f32 %v1529, %v1950
        %v2021 = vadd.f32 %v1534, %v1955
        %v2022 = vadd.f32 %v1537, %v1958
        %v2023 = vadd.f32 %v1542, %v1963
        %v2024 = vadd.f32 %v1545, %v1966
        %v2025 = vadd.f32 %v1550, %v1971
        %v2026 = vadd.f32 %v1553, %v1974
        %v2027 = vadd.f32 %v1558, %v1979
        %v2028 = vadd.f32 %v1561, %v1982
        %v2029 = vadd.f32 %v1566, %v1987
        %v2030 = vadd.f32 %v1569, %v1990
        %v2031 = vadd.f32 %v1574, %v1995
        %v2032 = vadd.f32 %v1577, %v1998
        %s2033 = scalar_lea.vmem [#allocation9], 192
        %v2034 = vld [vmem:[%s2033] sm:$0xf]
        %v2035 = vld [vmem:[%s2033 + $0x4] sm:$0xf]
        %v2036 = vld [vmem:[%s2033 + $0x8] sm:$0xf]
        %v2037 = vld [vmem:[%s2033 + $0xc] sm:$0xf]
        %v2038 = vld [vmem:[%s2033 + $0x10] sm:$0xf]
        %v2039 = vld [vmem:[%s2033 + $0x14] sm:$0xf]
        %v2040 = vld [vmem:[%s2033 + $0x18] sm:$0xf]
        %v2041 = vld [vmem:[%s2033 + $0x1c] sm:$0xf]
        %v2042 = vld [vmem:[%s2033 + $0x20] sm:$0xf]
        %v2043 = vld [vmem:[%s2033 + $0x24] sm:$0xf]
        %v2044 = vld [vmem:[%s2033 + $0x28] sm:$0xf]
        %v2045 = vld [vmem:[%s2033 + $0x2c] sm:$0xf]
        %v2046 = vld [vmem:[%s2033 + $0x30] sm:$0xf]
        %v2047 = vld [vmem:[%s2033 + $0x34] sm:$0xf]
        %v2048 = vld [vmem:[%s2033 + $0x38] sm:$0xf]
        %v2049 = vld [vmem:[%s2033 + $0x3c] sm:$0xf]
        %v2082 = vunpack.c.l.b16 %v486
        %v2083 = vunpack.c.l.b16 %v487
        %v2084 = vunpack.c.l.b16 %v489
        %v2085 = vunpack.c.l.b16 %v490
        %v2086 = vunpack.c.l.b16 %v492
        %v2087 = vunpack.c.l.b16 %v493
        %v2088 = vunpack.c.l.b16 %v495
        %v2089 = vunpack.c.l.b16 %v496
        %v2090 = vunpack.c.l.b16 %v498
        %v2091 = vunpack.c.l.b16 %v499
        %v2092 = vunpack.c.l.b16 %v501
        %v2093 = vunpack.c.l.b16 %v502
        %v2094 = vunpack.c.l.b16 %v504
        %v2095 = vunpack.c.l.b16 %v505
        %v2096 = vunpack.c.l.b16 %v507
        %v2097 = vunpack.c.l.b16 %v508
        %v2098 = vunpack.c.l.b16 %v510
        %v2099 = vunpack.c.l.b16 %v511
        %v2100 = vunpack.c.l.b16 %v513
        %v2101 = vunpack.c.l.b16 %v514
        %v2102 = vunpack.c.l.b16 %v516
        %v2103 = vunpack.c.l.b16 %v517
        %v2104 = vunpack.c.l.b16 %v519
        %v2105 = vunpack.c.l.b16 %v520
        %v2106 = vunpack.c.l.b16 %v522
        %v2107 = vunpack.c.l.b16 %v523
        %v2108 = vunpack.c.l.b16 %v525
        %v2109 = vunpack.c.l.b16 %v526
        %v2110 = vunpack.c.l.b16 %v528
        %v2111 = vunpack.c.l.b16 %v529
        %v2112 = vunpack.c.l.b16 %v531
        %v2113 = vunpack.c.l.b16 %v532
        %v2114 = vpack.c.b16 %v2083, %v2082
        %v2115 = vpack.c.b16 %v2085, %v2084
        %v2116 = vpack.c.b16 %v2087, %v2086
        %v2117 = vpack.c.b16 %v2089, %v2088
        %v2118 = vpack.c.b16 %v2091, %v2090
        %v2119 = vpack.c.b16 %v2093, %v2092
        %v2120 = vpack.c.b16 %v2095, %v2094
        %v2121 = vpack.c.b16 %v2097, %v2096
        %v2122 = vpack.c.b16 %v2099, %v2098
        %v2123 = vpack.c.b16 %v2101, %v2100
        %v2124 = vpack.c.b16 %v2103, %v2102
        %v2125 = vpack.c.b16 %v2105, %v2104
        %v2126 = vpack.c.b16 %v2107, %v2106
        %v2127 = vpack.c.b16 %v2109, %v2108
        %v2128 = vpack.c.b16 %v2111, %v2110
        %v2129 = vpack.c.b16 %v2113, %v2112
        %v2162 = vunpack.c.l.b16 %v2034
        %v2163 = vunpack.c.l.b16 %v2035
        %v2164 = vunpack.c.l.b16 %v2036
        %v2165 = vunpack.c.l.b16 %v2037
        %v2166 = vunpack.c.l.b16 %v2038
        %v2167 = vunpack.c.l.b16 %v2039
        %v2168 = vunpack.c.l.b16 %v2040
        %v2169 = vunpack.c.l.b16 %v2041
        %v2170 = vunpack.c.l.b16 %v2042
        %v2171 = vunpack.c.l.b16 %v2043
        %v2172 = vunpack.c.l.b16 %v2044
        %v2173 = vunpack.c.l.b16 %v2045
        %v2174 = vunpack.c.l.b16 %v2046
        %v2175 = vunpack.c.l.b16 %v2047
        %v2176 = vunpack.c.l.b16 %v2048
        %v2177 = vunpack.c.l.b16 %v2049
        %v2178 = vpack.c.b16 %v2163, %v2162
        %v2179 = vpack.c.b16 %v2165, %v2164
        %v2180 = vpack.c.b16 %v2167, %v2166
        %v2181 = vpack.c.b16 %v2169, %v2168
        %v2182 = vpack.c.b16 %v2171, %v2170
        %v2183 = vpack.c.b16 %v2173, %v2172
        %v2184 = vpack.c.b16 %v2175, %v2174
        %v2185 = vpack.c.b16 %v2177, %v2176
        %2194 = vmatprep.subr.bf16.mxu0 0
        %2195 = vmatpush1.bf16.msra.mxu0 %v2185
        %2196 = vmatprep.subr.bf16.mxu0 0
        %2197 = vmatpush1.bf16.msra.mxu0 %v2184
        %2198 = vmatprep.subr.bf16.mxu0 0
        %2199 = vmatpush1.bf16.msra.mxu0 %v2183
        %2200 = vmatprep.subr.bf16.mxu0 0
        %2201 = vmatpush1.bf16.msra.mxu0 %v2182
        %2202 = vmatprep.subr.bf16.mxu0 0
        %2203 = vmatpush1.bf16.msra.mxu0 %v2181
        %2204 = vmatprep.subr.bf16.mxu0 0
        %2205 = vmatpush1.bf16.msra.mxu0 %v2180
        %2206 = vmatprep.subr.bf16.mxu0 0
        %2207 = vmatpush1.bf16.msra.mxu0 %v2179
        %2208 = vmatprep.subr.bf16.mxu0 0
        %2209 = vmatpush1.bf16.msra.mxu0 %v2178
        %2210 = vmatprep.subr.bf16.mxu0 0
        %2211 = vmatpush2.bf16.msra.mxu0 0
        %2212 = vmatprep.subr.bf16.mxu0 0
        %2213 = vmatpush2.bf16.msra.mxu0 0
        %2214 = vmatprep.subr.bf16.mxu0 0
        %2215 = vmatpush2.bf16.msra.mxu0 0
        %2216 = vmatprep.subr.bf16.mxu0 0
        %2217 = vmatpush2.bf16.msra.mxu0 0
        %2218 = vmatprep.subr.bf16.mxu0 0
        %2219 = vmatpush2.bf16.msra.mxu0 0
        %2220 = vmatprep.subr.bf16.mxu0 0
        %2221 = vmatpush2.bf16.msra.mxu0 0
        %2222 = vmatprep.subr.bf16.mxu0 0
        %2223 = vmatpush2.bf16.msra.mxu0 0
        %2224 = vmatprep.subr.bf16.mxu0 0
        %2225 = vmatpush2.bf16.msra.mxu0 0
        %2226 = vmatprep.mubr.bf16.mxu0 0
        %2227 = vmatmul.mubr.bf16.gmra.mxu0 %v2114
        %v2228 = vpop.f32.mrf.mxu0
        %v2229 = vadd.f32 0.0, %v2228
        %v2230 = vpop.f32.mrf.mxu0
        %v2231 = vpop.f32.mrf.mxu0
        %v2232 = vadd.f32 0.0, %v2231
        %v2233 = vpop.f32.mrf.mxu0
        %2234 = vmatprep.mubr.bf16.mxu0 0
        %2235 = vmatmul.mubr.bf16.gmra.mxu0 %v2115
        %v2236 = vpop.f32.mrf.mxu0
        %v2237 = vadd.f32 0.0, %v2236
        %v2238 = vpop.f32.mrf.mxu0
        %v2239 = vpop.f32.mrf.mxu0
        %v2240 = vadd.f32 0.0, %v2239
        %v2241 = vpop.f32.mrf.mxu0
        %2242 = vmatprep.mubr.bf16.mxu0 0
        %2243 = vmatmul.mubr.bf16.gmra.mxu0 %v2116
        %v2244 = vpop.f32.mrf.mxu0
        %v2245 = vadd.f32 0.0, %v2244
        %v2246 = vpop.f32.mrf.mxu0
        %v2247 = vpop.f32.mrf.mxu0
        %v2248 = vadd.f32 0.0, %v2247
        %v2249 = vpop.f32.mrf.mxu0
        %2250 = vmatprep.mubr.bf16.mxu0 0
        %2251 = vmatmul.mubr.bf16.gmra.mxu0 %v2117
        %v2252 = vpop.f32.mrf.mxu0
        %v2253 = vadd.f32 0.0, %v2252
        %v2254 = vpop.f32.mrf.mxu0
        %v2255 = vpop.f32.mrf.mxu0
        %v2256 = vadd.f32 0.0, %v2255
        %v2257 = vpop.f32.mrf.mxu0
        %2258 = vmatprep.mubr.bf16.mxu0 0
        %2259 = vmatmul.mubr.bf16.gmra.mxu0 %v2118
        %v2260 = vpop.f32.mrf.mxu0
        %v2261 = vadd.f32 0.0, %v2260
        %v2262 = vpop.f32.mrf.mxu0
        %v2263 = vpop.f32.mrf.mxu0
        %v2264 = vadd.f32 0.0, %v2263
        %v2265 = vpop.f32.mrf.mxu0
        %2266 = vmatprep.mubr.bf16.mxu0 0
        %2267 = vmatmul.mubr.bf16.gmra.mxu0 %v2119
        %v2268 = vpop.f32.mrf.mxu0
        %v2269 = vadd.f32 0.0, %v2268
        %v2270 = vpop.f32.mrf.mxu0
        %v2271 = vpop.f32.mrf.mxu0
        %v2272 = vadd.f32 0.0, %v2271
        %v2273 = vpop.f32.mrf.mxu0
        %2274 = vmatprep.mubr.bf16.mxu0 0
        %2275 = vmatmul.mubr.bf16.gmra.mxu0 %v2120
        %v2276 = vpop.f32.mrf.mxu0
        %v2277 = vadd.f32 0.0, %v2276
        %v2278 = vpop.f32.mrf.mxu0
        %v2279 = vpop.f32.mrf.mxu0
        %v2280 = vadd.f32 0.0, %v2279
        %v2281 = vpop.f32.mrf.mxu0
        %2282 = vmatprep.mubr.bf16.mxu0 0
        %2283 = vmatmul.mubr.bf16.gmra.mxu0 %v2121
        %v2284 = vpop.f32.mrf.mxu0
        %v2285 = vadd.f32 0.0, %v2284
        %v2286 = vpop.f32.mrf.mxu0
        %v2287 = vpop.f32.mrf.mxu0
        %v2288 = vadd.f32 0.0, %v2287
        %v2289 = vpop.f32.mrf.mxu0
        %2290 = vmatprep.mubr.bf16.mxu0 0
        %2291 = vmatmul.mubr.bf16.gmra.mxu0 %v2122
        %v2292 = vpop.f32.mrf.mxu0
        %v2293 = vadd.f32 0.0, %v2292
        %v2294 = vpop.f32.mrf.mxu0
        %v2295 = vpop.f32.mrf.mxu0
        %v2296 = vadd.f32 0.0, %v2295
        %v2297 = vpop.f32.mrf.mxu0
        %2298 = vmatprep.mubr.bf16.mxu0 0
        %2299 = vmatmul.mubr.bf16.gmra.mxu0 %v2123
        %v2300 = vpop.f32.mrf.mxu0
        %v2301 = vadd.f32 0.0, %v2300
        %v2302 = vpop.f32.mrf.mxu0
        %v2303 = vpop.f32.mrf.mxu0
        %v2304 = vadd.f32 0.0, %v2303
        %v2305 = vpop.f32.mrf.mxu0
        %2306 = vmatprep.mubr.bf16.mxu0 0
        %2307 = vmatmul.mubr.bf16.gmra.mxu0 %v2124
        %v2308 = vpop.f32.mrf.mxu0
        %v2309 = vadd.f32 0.0, %v2308
        %v2310 = vpop.f32.mrf.mxu0
        %v2311 = vpop.f32.mrf.mxu0
        %v2312 = vadd.f32 0.0, %v2311
        %v2313 = vpop.f32.mrf.mxu0
        %2314 = vmatprep.mubr.bf16.mxu0 0
        %2315 = vmatmul.mubr.bf16.gmra.mxu0 %v2125
        %v2316 = vpop.f32.mrf.mxu0
        %v2317 = vadd.f32 0.0, %v2316
        %v2318 = vpop.f32.mrf.mxu0
        %v2319 = vpop.f32.mrf.mxu0
        %v2320 = vadd.f32 0.0, %v2319
        %v2321 = vpop.f32.mrf.mxu0
        %2322 = vmatprep.mubr.bf16.mxu0 0
        %2323 = vmatmul.mubr.bf16.gmra.mxu0 %v2126
        %v2324 = vpop.f32.mrf.mxu0
        %v2325 = vadd.f32 0.0, %v2324
        %v2326 = vpop.f32.mrf.mxu0
        %v2327 = vpop.f32.mrf.mxu0
        %v2328 = vadd.f32 0.0, %v2327
        %v2329 = vpop.f32.mrf.mxu0
        %2330 = vmatprep.mubr.bf16.mxu0 0
        %2331 = vmatmul.mubr.bf16.gmra.mxu0 %v2127
        %v2332 = vpop.f32.mrf.mxu0
        %v2333 = vadd.f32 0.0, %v2332
        %v2334 = vpop.f32.mrf.mxu0
        %v2335 = vpop.f32.mrf.mxu0
        %v2336 = vadd.f32 0.0, %v2335
        %v2337 = vpop.f32.mrf.mxu0
        %2338 = vmatprep.mubr.bf16.mxu0 0
        %2339 = vmatmul.mubr.bf16.gmra.mxu0 %v2128
        %v2340 = vpop.f32.mrf.mxu0
        %v2341 = vadd.f32 0.0, %v2340
        %v2342 = vpop.f32.mrf.mxu0
        %v2343 = vpop.f32.mrf.mxu0
        %v2344 = vadd.f32 0.0, %v2343
        %v2345 = vpop.f32.mrf.mxu0
        %2346 = vmatprep.mubr.bf16.mxu0 0
        %2347 = vmatmul.mubr.bf16.gmra.mxu0 %v2129
        %v2348 = vpop.f32.mrf.mxu0
        %v2349 = vadd.f32 0.0, %v2348
        %v2350 = vpop.f32.mrf.mxu0
        %v2351 = vpop.f32.mrf.mxu0
        %v2352 = vadd.f32 0.0, %v2351
        %v2353 = vpop.f32.mrf.mxu0
        %2354 = vdwg.mxu0
        %v2355 = vadd.f32 %v2001, %v2229
        %v2356 = vadd.f32 %v2002, %v2232
        %v2357 = vadd.f32 %v2003, %v2237
        %v2358 = vadd.f32 %v2004, %v2240
        %v2359 = vadd.f32 %v2005, %v2245
        %v2360 = vadd.f32 %v2006, %v2248
        %v2361 = vadd.f32 %v2007, %v2253
        %v2362 = vadd.f32 %v2008, %v2256
        %v2363 = vadd.f32 %v2009, %v2261
        %v2364 = vadd.f32 %v2010, %v2264
        %v2365 = vadd.f32 %v2011, %v2269
        %v2366 = vadd.f32 %v2012, %v2272
        %v2367 = vadd.f32 %v2013, %v2277
        %v2368 = vadd.f32 %v2014, %v2280
        %v2369 = vadd.f32 %v2015, %v2285
        %v2370 = vadd.f32 %v2016, %v2288
        %v2371 = vadd.f32 %v2017, %v2293
        %v2372 = vadd.f32 %v2018, %v2296
        %v2373 = vadd.f32 %v2019, %v2301
        %v2374 = vadd.f32 %v2020, %v2304
        %v2375 = vadd.f32 %v2021, %v2309
        %v2376 = vadd.f32 %v2022, %v2312
        %v2377 = vadd.f32 %v2023, %v2317
        %v2378 = vadd.f32 %v2024, %v2320
        %v2379 = vadd.f32 %v2025, %v2325
        %v2380 = vadd.f32 %v2026, %v2328
        %v2381 = vadd.f32 %v2027, %v2333
        %v2382 = vadd.f32 %v2028, %v2336
        %v2383 = vadd.f32 %v2029, %v2341
        %v2384 = vadd.f32 %v2030, %v2344
        %v2385 = vadd.f32 %v2031, %v2349
        %v2386 = vadd.f32 %v2032, %v2352
        %v2388 = vshrl.u32 %v486, 16
        %v2390 = vrot.slane %v2388, 4
        %v2391 = vshll.u32 %v486, 16
        %v2393 = vrot.slane %v2391, 5
        %v2394 = vor.u32 %v2390, %v2393
        %v2395 = vrot.slane %v2394, 4
        %v2397 = vshll.u32 %v487, 16
        %v2399 = vrot.slane %v2397, 5
        %v2400 = vsel %vm600, %v2395, %v2399
        %v2401 = vshrl.u32 %v487, 16
        %v2403 = vrot.slane %v2401, 4
        %v2404 = vor.u32 %v2403, %v2399
        %v2405 = vrot.slane %v2404, 4
        %v2407 = vshll.u32 %v488, 16
        %v2409 = vrot.slane %v2407, 5
        %v2410 = vsel %vm600, %v2405, %v2409
        %v2412 = vshrl.u32 %v489, 16
        %v2414 = vrot.slane %v2412, 4
        %v2415 = vshll.u32 %v489, 16
        %v2417 = vrot.slane %v2415, 5
        %v2418 = vor.u32 %v2414, %v2417
        %v2419 = vrot.slane %v2418, 4
        %v2421 = vshll.u32 %v490, 16
        %v2423 = vrot.slane %v2421, 5
        %v2424 = vsel %vm600, %v2419, %v2423
        %v2425 = vshrl.u32 %v490, 16
        %v2427 = vrot.slane %v2425, 4
        %v2428 = vor.u32 %v2427, %v2423
        %v2429 = vrot.slane %v2428, 4
        %v2431 = vshll.u32 %v491, 16
        %v2433 = vrot.slane %v2431, 5
        %v2434 = vsel %vm600, %v2429, %v2433
        %v2436 = vshrl.u32 %v492, 16
        %v2438 = vrot.slane %v2436, 4
        %v2439 = vshll.u32 %v492, 16
        %v2441 = vrot.slane %v2439, 5
        %v2442 = vor.u32 %v2438, %v2441
        %v2443 = vrot.slane %v2442, 4
        %v2445 = vshll.u32 %v493, 16
        %v2447 = vrot.slane %v2445, 5
        %v2448 = vsel %vm600, %v2443, %v2447
        %v2449 = vshrl.u32 %v493, 16
        %v2451 = vrot.slane %v2449, 4
        %v2452 = vor.u32 %v2451, %v2447
        %v2453 = vrot.slane %v2452, 4
        %v2455 = vshll.u32 %v494, 16
        %v2457 = vrot.slane %v2455, 5
        %v2458 = vsel %vm600, %v2453, %v2457
        %v2460 = vshrl.u32 %v495, 16
        %v2462 = vrot.slane %v2460, 4
        %v2463 = vshll.u32 %v495, 16
        %v2465 = vrot.slane %v2463, 5
        %v2466 = vor.u32 %v2462, %v2465
        %v2467 = vrot.slane %v2466, 4
        %v2469 = vshll.u32 %v496, 16
        %v2471 = vrot.slane %v2469, 5
        %v2472 = vsel %vm600, %v2467, %v2471
        %v2473 = vshrl.u32 %v496, 16
        %v2475 = vrot.slane %v2473, 4
        %v2476 = vor.u32 %v2475, %v2471
        %v2477 = vrot.slane %v2476, 4
        %v2479 = vshll.u32 %v497, 16
        %v2481 = vrot.slane %v2479, 5
        %v2482 = vsel %vm600, %v2477, %v2481
        %v2484 = vshrl.u32 %v498, 16
        %v2486 = vrot.slane %v2484, 4
        %v2487 = vshll.u32 %v498, 16
        %v2489 = vrot.slane %v2487, 5
        %v2490 = vor.u32 %v2486, %v2489
        %v2491 = vrot.slane %v2490, 4
        %v2493 = vshll.u32 %v499, 16
        %v2495 = vrot.slane %v2493, 5
        %v2496 = vsel %vm600, %v2491, %v2495
        %v2497 = vshrl.u32 %v499, 16
        %v2499 = vrot.slane %v2497, 4
        %v2500 = vor.u32 %v2499, %v2495
        %v2501 = vrot.slane %v2500, 4
        %v2503 = vshll.u32 %v500, 16
        %v2505 = vrot.slane %v2503, 5
        %v2506 = vsel %vm600, %v2501, %v2505
        %v2508 = vshrl.u32 %v501, 16
        %v2510 = vrot.slane %v2508, 4
        %v2511 = vshll.u32 %v501, 16
        %v2513 = vrot.slane %v2511, 5
        %v2514 = vor.u32 %v2510, %v2513
        %v2515 = vrot.slane %v2514, 4
        %v2517 = vshll.u32 %v502, 16
        %v2519 = vrot.slane %v2517, 5
        %v2520 = vsel %vm600, %v2515, %v2519
        %v2521 = vshrl.u32 %v502, 16
        %v2523 = vrot.slane %v2521, 4
        %v2524 = vor.u32 %v2523, %v2519
        %v2525 = vrot.slane %v2524, 4
        %v2527 = vshll.u32 %v503, 16
        %v2529 = vrot.slane %v2527, 5
        %v2530 = vsel %vm600, %v2525, %v2529
        %v2532 = vshrl.u32 %v504, 16
        %v2534 = vrot.slane %v2532, 4
        %v2535 = vshll.u32 %v504, 16
        %v2537 = vrot.slane %v2535, 5
        %v2538 = vor.u32 %v2534, %v2537
        %v2539 = vrot.slane %v2538, 4
        %v2541 = vshll.u32 %v505, 16
        %v2543 = vrot.slane %v2541, 5
        %v2544 = vsel %vm600, %v2539, %v2543
        %v2545 = vshrl.u32 %v505, 16
        %v2547 = vrot.slane %v2545, 4
        %v2548 = vor.u32 %v2547, %v2543
        %v2549 = vrot.slane %v2548, 4
        %v2551 = vshll.u32 %v506, 16
        %v2553 = vrot.slane %v2551, 5
        %v2554 = vsel %vm600, %v2549, %v2553
        %v2556 = vshrl.u32 %v507, 16
        %v2558 = vrot.slane %v2556, 4
        %v2559 = vshll.u32 %v507, 16
        %v2561 = vrot.slane %v2559, 5
        %v2562 = vor.u32 %v2558, %v2561
        %v2563 = vrot.slane %v2562, 4
        %v2565 = vshll.u32 %v508, 16
        %v2567 = vrot.slane %v2565, 5
        %v2568 = vsel %vm600, %v2563, %v2567
        %v2569 = vshrl.u32 %v508, 16
        %v2571 = vrot.slane %v2569, 4
        %v2572 = vor.u32 %v2571, %v2567
        %v2573 = vrot.slane %v2572, 4
        %v2575 = vshll.u32 %v509, 16
        %v2577 = vrot.slane %v2575, 5
        %v2578 = vsel %vm600, %v2573, %v2577
        %v2580 = vshrl.u32 %v510, 16
        %v2582 = vrot.slane %v2580, 4
        %v2583 = vshll.u32 %v510, 16
        %v2585 = vrot.slane %v2583, 5
        %v2586 = vor.u32 %v2582, %v2585
        %v2587 = vrot.slane %v2586, 4
        %v2589 = vshll.u32 %v511, 16
        %v2591 = vrot.slane %v2589, 5
        %v2592 = vsel %vm600, %v2587, %v2591
        %v2593 = vshrl.u32 %v511, 16
        %v2595 = vrot.slane %v2593, 4
        %v2596 = vor.u32 %v2595, %v2591
        %v2597 = vrot.slane %v2596, 4
        %v2599 = vshll.u32 %v512, 16
        %v2601 = vrot.slane %v2599, 5
        %v2602 = vsel %vm600, %v2597, %v2601
        %v2604 = vshrl.u32 %v513, 16
        %v2606 = vrot.slane %v2604, 4
        %v2607 = vshll.u32 %v513, 16
        %v2609 = vrot.slane %v2607, 5
        %v2610 = vor.u32 %v2606, %v2609
        %v2611 = vrot.slane %v2610, 4
        %v2613 = vshll.u32 %v514, 16
        %v2615 = vrot.slane %v2613, 5
        %v2616 = vsel %vm600, %v2611, %v2615
        %v2617 = vshrl.u32 %v514, 16
        %v2619 = vrot.slane %v2617, 4
        %v2620 = vor.u32 %v2619, %v2615
        %v2621 = vrot.slane %v2620, 4
        %v2623 = vshll.u32 %v515, 16
        %v2625 = vrot.slane %v2623, 5
        %v2626 = vsel %vm600, %v2621, %v2625
        %v2628 = vshrl.u32 %v516, 16
        %v2630 = vrot.slane %v2628, 4
        %v2631 = vshll.u32 %v516, 16
        %v2633 = vrot.slane %v2631, 5
        %v2634 = vor.u32 %v2630, %v2633
        %v2635 = vrot.slane %v2634, 4
        %v2637 = vshll.u32 %v517, 16
        %v2639 = vrot.slane %v2637, 5
        %v2640 = vsel %vm600, %v2635, %v2639
        %v2641 = vshrl.u32 %v517, 16
        %v2643 = vrot.slane %v2641, 4
        %v2644 = vor.u32 %v2643, %v2639
        %v2645 = vrot.slane %v2644, 4
        %v2647 = vshll.u32 %v518, 16
        %v2649 = vrot.slane %v2647, 5
        %v2650 = vsel %vm600, %v2645, %v2649
        %v2652 = vshrl.u32 %v519, 16
        %v2654 = vrot.slane %v2652, 4
        %v2655 = vshll.u32 %v519, 16
        %v2657 = vrot.slane %v2655, 5
        %v2658 = vor.u32 %v2654, %v2657
        %v2659 = vrot.slane %v2658, 4
        %v2661 = vshll.u32 %v520, 16
        %v2663 = vrot.slane %v2661, 5
        %v2664 = vsel %vm600, %v2659, %v2663
        %v2665 = vshrl.u32 %v520, 16
        %v2667 = vrot.slane %v2665, 4
        %v2668 = vor.u32 %v2667, %v2663
        %v2669 = vrot.slane %v2668, 4
        %v2671 = vshll.u32 %v521, 16
        %v2673 = vrot.slane %v2671, 5
        %v2674 = vsel %vm600, %v2669, %v2673
        %v2676 = vshrl.u32 %v522, 16
        %v2678 = vrot.slane %v2676, 4
        %v2679 = vshll.u32 %v522, 16
        %v2681 = vrot.slane %v2679, 5
        %v2682 = vor.u32 %v2678, %v2681
        %v2683 = vrot.slane %v2682, 4
        %v2685 = vshll.u32 %v523, 16
        %v2687 = vrot.slane %v2685, 5
        %v2688 = vsel %vm600, %v2683, %v2687
        %v2689 = vshrl.u32 %v523, 16
        %v2691 = vrot.slane %v2689, 4
        %v2692 = vor.u32 %v2691, %v2687
        %v2693 = vrot.slane %v2692, 4
        %v2695 = vshll.u32 %v524, 16
        %v2697 = vrot.slane %v2695, 5
        %v2698 = vsel %vm600, %v2693, %v2697
        %v2700 = vshrl.u32 %v525, 16
        %v2702 = vrot.slane %v2700, 4
        %v2703 = vshll.u32 %v525, 16
        %v2705 = vrot.slane %v2703, 5
        %v2706 = vor.u32 %v2702, %v2705
        %v2707 = vrot.slane %v2706, 4
        %v2709 = vshll.u32 %v526, 16
        %v2711 = vrot.slane %v2709, 5
        %v2712 = vsel %vm600, %v2707, %v2711
        %v2713 = vshrl.u32 %v526, 16
        %v2715 = vrot.slane %v2713, 4
        %v2716 = vor.u32 %v2715, %v2711
        %v2717 = vrot.slane %v2716, 4
        %v2719 = vshll.u32 %v527, 16
        %v2721 = vrot.slane %v2719, 5
        %v2722 = vsel %vm600, %v2717, %v2721
        %v2724 = vshrl.u32 %v528, 16
        %v2726 = vrot.slane %v2724, 4
        %v2727 = vshll.u32 %v528, 16
        %v2729 = vrot.slane %v2727, 5
        %v2730 = vor.u32 %v2726, %v2729
        %v2731 = vrot.slane %v2730, 4
        %v2733 = vshll.u32 %v529, 16
        %v2735 = vrot.slane %v2733, 5
        %v2736 = vsel %vm600, %v2731, %v2735
        %v2737 = vshrl.u32 %v529, 16
        %v2739 = vrot.slane %v2737, 4
        %v2740 = vor.u32 %v2739, %v2735
        %v2741 = vrot.slane %v2740, 4
        %v2743 = vshll.u32 %v530, 16
        %v2745 = vrot.slane %v2743, 5
        %v2746 = vsel %vm600, %v2741, %v2745
        %v2748 = vshrl.u32 %v531, 16
        %v2750 = vrot.slane %v2748, 4
        %v2751 = vshll.u32 %v531, 16
        %v2753 = vrot.slane %v2751, 5
        %v2754 = vor.u32 %v2750, %v2753
        %v2755 = vrot.slane %v2754, 4
        %v2757 = vshll.u32 %v532, 16
        %v2759 = vrot.slane %v2757, 5
        %v2760 = vsel %vm600, %v2755, %v2759
        %v2761 = vshrl.u32 %v532, 16
        %v2763 = vrot.slane %v2761, 4
        %v2764 = vor.u32 %v2763, %v2759
        %v2765 = vrot.slane %v2764, 4
        %v2767 = vshll.u32 %v533, 16
        %v2769 = vrot.slane %v2767, 5
        %v2770 = vsel %vm600, %v2765, %v2769
        %s2771 = scalar_lea.vmem [#allocation9], 256
        %v2772 = vld [vmem:[%s2771] sm:$0xf]
        %v2773 = vld [vmem:[%s2771 + $0x4] sm:$0xf]
        %v2774 = vld [vmem:[%s2771 + $0x8] sm:$0xf]
        %v2775 = vld [vmem:[%s2771 + $0xc] sm:$0xf]
        %v2776 = vld [vmem:[%s2771 + $0x10] sm:$0xf]
        %v2777 = vld [vmem:[%s2771 + $0x14] sm:$0xf]
        %v2778 = vld [vmem:[%s2771 + $0x18] sm:$0xf]
        %v2779 = vld [vmem:[%s2771 + $0x1c] sm:$0xf]
        %v2780 = vld [vmem:[%s2771 + $0x20] sm:$0xf]
        %v2781 = vld [vmem:[%s2771 + $0x24] sm:$0xf]
        %v2782 = vld [vmem:[%s2771 + $0x28] sm:$0xf]
        %v2783 = vld [vmem:[%s2771 + $0x2c] sm:$0xf]
        %v2784 = vld [vmem:[%s2771 + $0x30] sm:$0xf]
        %v2785 = vld [vmem:[%s2771 + $0x34] sm:$0xf]
        %v2786 = vld [vmem:[%s2771 + $0x38] sm:$0xf]
        %v2787 = vld [vmem:[%s2771 + $0x3c] sm:$0xf]
        %v2788 = vunpack.c.l.b16 %v2400
        %v2789 = vunpack.c.l.b16 %v2410
        %v2790 = vunpack.c.l.b16 %v2424
        %v2791 = vunpack.c.l.b16 %v2434
        %v2792 = vunpack.c.l.b16 %v2448
        %v2793 = vunpack.c.l.b16 %v2458
        %v2794 = vunpack.c.l.b16 %v2472
        %v2795 = vunpack.c.l.b16 %v2482
        %v2796 = vunpack.c.l.b16 %v2496
        %v2797 = vunpack.c.l.b16 %v2506
        %v2798 = vunpack.c.l.b16 %v2520
        %v2799 = vunpack.c.l.b16 %v2530
        %v2800 = vunpack.c.l.b16 %v2544
        %v2801 = vunpack.c.l.b16 %v2554
        %v2802 = vunpack.c.l.b16 %v2568
        %v2803 = vunpack.c.l.b16 %v2578
        %v2804 = vunpack.c.l.b16 %v2592
        %v2805 = vunpack.c.l.b16 %v2602
        %v2806 = vunpack.c.l.b16 %v2616
        %v2807 = vunpack.c.l.b16 %v2626
        %v2808 = vunpack.c.l.b16 %v2640
        %v2809 = vunpack.c.l.b16 %v2650
        %v2810 = vunpack.c.l.b16 %v2664
        %v2811 = vunpack.c.l.b16 %v2674
        %v2812 = vunpack.c.l.b16 %v2688
        %v2813 = vunpack.c.l.b16 %v2698
        %v2814 = vunpack.c.l.b16 %v2712
        %v2815 = vunpack.c.l.b16 %v2722
        %v2816 = vunpack.c.l.b16 %v2736
        %v2817 = vunpack.c.l.b16 %v2746
        %v2818 = vunpack.c.l.b16 %v2760
        %v2819 = vunpack.c.l.b16 %v2770
        %v2820 = vpack.c.b16 %v2789, %v2788
        %v2821 = vpack.c.b16 %v2791, %v2790
        %v2822 = vpack.c.b16 %v2793, %v2792
        %v2823 = vpack.c.b16 %v2795, %v2794
        %v2824 = vpack.c.b16 %v2797, %v2796
        %v2825 = vpack.c.b16 %v2799, %v2798
        %v2826 = vpack.c.b16 %v2801, %v2800
        %v2827 = vpack.c.b16 %v2803, %v2802
        %v2828 = vpack.c.b16 %v2805, %v2804
        %v2829 = vpack.c.b16 %v2807, %v2806
        %v2830 = vpack.c.b16 %v2809, %v2808
        %v2831 = vpack.c.b16 %v2811, %v2810
        %v2832 = vpack.c.b16 %v2813, %v2812
        %v2833 = vpack.c.b16 %v2815, %v2814
        %v2834 = vpack.c.b16 %v2817, %v2816
        %v2835 = vpack.c.b16 %v2819, %v2818
        %v2868 = vunpack.c.l.b16 %v2772
        %v2869 = vunpack.c.l.b16 %v2773
        %v2870 = vunpack.c.l.b16 %v2774
        %v2871 = vunpack.c.l.b16 %v2775
        %v2872 = vunpack.c.l.b16 %v2776
        %v2873 = vunpack.c.l.b16 %v2777
        %v2874 = vunpack.c.l.b16 %v2778
        %v2875 = vunpack.c.l.b16 %v2779
        %v2876 = vunpack.c.l.b16 %v2780
        %v2877 = vunpack.c.l.b16 %v2781
        %v2878 = vunpack.c.l.b16 %v2782
        %v2879 = vunpack.c.l.b16 %v2783
        %v2880 = vunpack.c.l.b16 %v2784
        %v2881 = vunpack.c.l.b16 %v2785
        %v2882 = vunpack.c.l.b16 %v2786
        %v2883 = vunpack.c.l.b16 %v2787
        %v2884 = vpack.c.b16 %v2869, %v2868
        %v2885 = vpack.c.b16 %v2871, %v2870
        %v2886 = vpack.c.b16 %v2873, %v2872
        %v2887 = vpack.c.b16 %v2875, %v2874
        %v2888 = vpack.c.b16 %v2877, %v2876
        %v2889 = vpack.c.b16 %v2879, %v2878
        %v2890 = vpack.c.b16 %v2881, %v2880
        %v2891 = vpack.c.b16 %v2883, %v2882
        %2900 = vmatprep.subr.bf16.mxu0 0
        %2901 = vmatpush1.bf16.msra.mxu0 %v2891
        %2902 = vmatprep.subr.bf16.mxu0 0
        %2903 = vmatpush1.bf16.msra.mxu0 %v2890
        %2904 = vmatprep.subr.bf16.mxu0 0
        %2905 = vmatpush1.bf16.msra.mxu0 %v2889
        %2906 = vmatprep.subr.bf16.mxu0 0
        %2907 = vmatpush1.bf16.msra.mxu0 %v2888
        %2908 = vmatprep.subr.bf16.mxu0 0
        %2909 = vmatpush1.bf16.msra.mxu0 %v2887
        %2910 = vmatprep.subr.bf16.mxu0 0
        %2911 = vmatpush1.bf16.msra.mxu0 %v2886
        %2912 = vmatprep.subr.bf16.mxu0 0
        %2913 = vmatpush1.bf16.msra.mxu0 %v2885
        %2914 = vmatprep.subr.bf16.mxu0 0
        %2915 = vmatpush1.bf16.msra.mxu0 %v2884
        %2916 = vmatprep.subr.bf16.mxu0 0
        %2917 = vmatpush2.bf16.msra.mxu0 0
        %2918 = vmatprep.subr.bf16.mxu0 0
        %2919 = vmatpush2.bf16.msra.mxu0 0
        %2920 = vmatprep.subr.bf16.mxu0 0
        %2921 = vmatpush2.bf16.msra.mxu0 0
        %2922 = vmatprep.subr.bf16.mxu0 0
        %2923 = vmatpush2.bf16.msra.mxu0 0
        %2924 = vmatprep.subr.bf16.mxu0 0
        %2925 = vmatpush2.bf16.msra.mxu0 0
        %2926 = vmatprep.subr.bf16.mxu0 0
        %2927 = vmatpush2.bf16.msra.mxu0 0
        %2928 = vmatprep.subr.bf16.mxu0 0
        %2929 = vmatpush2.bf16.msra.mxu0 0
        %2930 = vmatprep.subr.bf16.mxu0 0
        %2931 = vmatpush2.bf16.msra.mxu0 0
        %2932 = vmatprep.mubr.bf16.mxu0 0
        %2933 = vmatmul.mubr.bf16.gmra.mxu0 %v2820
        %v2934 = vpop.f32.mrf.mxu0
        %v2935 = vadd.f32 0.0, %v2934
        %v2936 = vpop.f32.mrf.mxu0
        %v2937 = vpop.f32.mrf.mxu0
        %v2938 = vadd.f32 0.0, %v2937
        %v2939 = vpop.f32.mrf.mxu0
        %2940 = vmatprep.mubr.bf16.mxu0 0
        %2941 = vmatmul.mubr.bf16.gmra.mxu0 %v2821
        %v2942 = vpop.f32.mrf.mxu0
        %v2943 = vadd.f32 0.0, %v2942
        %v2944 = vpop.f32.mrf.mxu0
        %v2945 = vpop.f32.mrf.mxu0
        %v2946 = vadd.f32 0.0, %v2945
        %v2947 = vpop.f32.mrf.mxu0
        %2948 = vmatprep.mubr.bf16.mxu0 0
        %2949 = vmatmul.mubr.bf16.gmra.mxu0 %v2822
        %v2950 = vpop.f32.mrf.mxu0
        %v2951 = vadd.f32 0.0, %v2950
        %v2952 = vpop.f32.mrf.mxu0
        %v2953 = vpop.f32.mrf.mxu0
        %v2954 = vadd.f32 0.0, %v2953
        %v2955 = vpop.f32.mrf.mxu0
        %2956 = vmatprep.mubr.bf16.mxu0 0
        %2957 = vmatmul.mubr.bf16.gmra.mxu0 %v2823
        %v2958 = vpop.f32.mrf.mxu0
        %v2959 = vadd.f32 0.0, %v2958
        %v2960 = vpop.f32.mrf.mxu0
        %v2961 = vpop.f32.mrf.mxu0
        %v2962 = vadd.f32 0.0, %v2961
        %v2963 = vpop.f32.mrf.mxu0
        %2964 = vmatprep.mubr.bf16.mxu0 0
        %2965 = vmatmul.mubr.bf16.gmra.mxu0 %v2824
        %v2966 = vpop.f32.mrf.mxu0
        %v2967 = vadd.f32 0.0, %v2966
        %v2968 = vpop.f32.mrf.mxu0
        %v2969 = vpop.f32.mrf.mxu0
        %v2970 = vadd.f32 0.0, %v2969
        %v2971 = vpop.f32.mrf.mxu0
        %2972 = vmatprep.mubr.bf16.mxu0 0
        %2973 = vmatmul.mubr.bf16.gmra.mxu0 %v2825
        %v2974 = vpop.f32.mrf.mxu0
        %v2975 = vadd.f32 0.0, %v2974
        %v2976 = vpop.f32.mrf.mxu0
        %v2977 = vpop.f32.mrf.mxu0
        %v2978 = vadd.f32 0.0, %v2977
        %v2979 = vpop.f32.mrf.mxu0
        %2980 = vmatprep.mubr.bf16.mxu0 0
        %2981 = vmatmul.mubr.bf16.gmra.mxu0 %v2826
        %v2982 = vpop.f32.mrf.mxu0
        %v2983 = vadd.f32 0.0, %v2982
        %v2984 = vpop.f32.mrf.mxu0
        %v2985 = vpop.f32.mrf.mxu0
        %v2986 = vadd.f32 0.0, %v2985
        %v2987 = vpop.f32.mrf.mxu0
        %2988 = vmatprep.mubr.bf16.mxu0 0
        %2989 = vmatmul.mubr.bf16.gmra.mxu0 %v2827
        %v2990 = vpop.f32.mrf.mxu0
        %v2991 = vadd.f32 0.0, %v2990
        %v2992 = vpop.f32.mrf.mxu0
        %v2993 = vpop.f32.mrf.mxu0
        %v2994 = vadd.f32 0.0, %v2993
        %v2995 = vpop.f32.mrf.mxu0
        %2996 = vmatprep.mubr.bf16.mxu0 0
        %2997 = vmatmul.mubr.bf16.gmra.mxu0 %v2828
        %v2998 = vpop.f32.mrf.mxu0
        %v2999 = vadd.f32 0.0, %v2998
        %v3000 = vpop.f32.mrf.mxu0
        %v3001 = vpop.f32.mrf.mxu0
        %v3002 = vadd.f32 0.0, %v3001
        %v3003 = vpop.f32.mrf.mxu0
        %3004 = vmatprep.mubr.bf16.mxu0 0
        %3005 = vmatmul.mubr.bf16.gmra.mxu0 %v2829
        %v3006 = vpop.f32.mrf.mxu0
        %v3007 = vadd.f32 0.0, %v3006
        %v3008 = vpop.f32.mrf.mxu0
        %v3009 = vpop.f32.mrf.mxu0
        %v3010 = vadd.f32 0.0, %v3009
        %v3011 = vpop.f32.mrf.mxu0
        %3012 = vmatprep.mubr.bf16.mxu0 0
        %3013 = vmatmul.mubr.bf16.gmra.mxu0 %v2830
        %v3014 = vpop.f32.mrf.mxu0
        %v3015 = vadd.f32 0.0, %v3014
        %v3016 = vpop.f32.mrf.mxu0
        %v3017 = vpop.f32.mrf.mxu0
        %v3018 = vadd.f32 0.0, %v3017
        %v3019 = vpop.f32.mrf.mxu0
        %3020 = vmatprep.mubr.bf16.mxu0 0
        %3021 = vmatmul.mubr.bf16.gmra.mxu0 %v2831
        %v3022 = vpop.f32.mrf.mxu0
        %v3023 = vadd.f32 0.0, %v3022
        %v3024 = vpop.f32.mrf.mxu0
        %v3025 = vpop.f32.mrf.mxu0
        %v3026 = vadd.f32 0.0, %v3025
        %v3027 = vpop.f32.mrf.mxu0
        %3028 = vmatprep.mubr.bf16.mxu0 0
        %3029 = vmatmul.mubr.bf16.gmra.mxu0 %v2832
        %v3030 = vpop.f32.mrf.mxu0
        %v3031 = vadd.f32 0.0, %v3030
        %v3032 = vpop.f32.mrf.mxu0
        %v3033 = vpop.f32.mrf.mxu0
        %v3034 = vadd.f32 0.0, %v3033
        %v3035 = vpop.f32.mrf.mxu0
        %3036 = vmatprep.mubr.bf16.mxu0 0
        %3037 = vmatmul.mubr.bf16.gmra.mxu0 %v2833
        %v3038 = vpop.f32.mrf.mxu0
        %v3039 = vadd.f32 0.0, %v3038
        %v3040 = vpop.f32.mrf.mxu0
        %v3041 = vpop.f32.mrf.mxu0
        %v3042 = vadd.f32 0.0, %v3041
        %v3043 = vpop.f32.mrf.mxu0
        %3044 = vmatprep.mubr.bf16.mxu0 0
        %3045 = vmatmul.mubr.bf16.gmra.mxu0 %v2834
        %v3046 = vpop.f32.mrf.mxu0
        %v3047 = vadd.f32 0.0, %v3046
        %v3048 = vpop.f32.mrf.mxu0
        %v3049 = vpop.f32.mrf.mxu0
        %v3050 = vadd.f32 0.0, %v3049
        %v3051 = vpop.f32.mrf.mxu0
        %3052 = vmatprep.mubr.bf16.mxu0 0
        %3053 = vmatmul.mubr.bf16.gmra.mxu0 %v2835
        %v3054 = vpop.f32.mrf.mxu0
        %v3055 = vadd.f32 0.0, %v3054
        %v3056 = vpop.f32.mrf.mxu0
        %v3057 = vpop.f32.mrf.mxu0
        %v3058 = vadd.f32 0.0, %v3057
        %v3059 = vpop.f32.mrf.mxu0
        %3060 = vdwg.mxu0
        %v3061 = vadd.f32 %v2355, %v2935
        %v3062 = vadd.f32 %v2356, %v2938
        %v3063 = vadd.f32 %v2357, %v2943
        %v3064 = vadd.f32 %v2358, %v2946
        %v3065 = vadd.f32 %v2359, %v2951
        %v3066 = vadd.f32 %v2360, %v2954
        %v3067 = vadd.f32 %v2361, %v2959
        %v3068 = vadd.f32 %v2362, %v2962
        %v3069 = vadd.f32 %v2363, %v2967
        %v3070 = vadd.f32 %v2364, %v2970
        %v3071 = vadd.f32 %v2365, %v2975
        %v3072 = vadd.f32 %v2366, %v2978
        %v3073 = vadd.f32 %v2367, %v2983
        %v3074 = vadd.f32 %v2368, %v2986
        %v3075 = vadd.f32 %v2369, %v2991
        %v3076 = vadd.f32 %v2370, %v2994
        %v3077 = vadd.f32 %v2371, %v2999
        %v3078 = vadd.f32 %v2372, %v3002
        %v3079 = vadd.f32 %v2373, %v3007
        %v3080 = vadd.f32 %v2374, %v3010
        %v3081 = vadd.f32 %v2375, %v3015
        %v3082 = vadd.f32 %v2376, %v3018
        %v3083 = vadd.f32 %v2377, %v3023
        %v3084 = vadd.f32 %v2378, %v3026
        %v3085 = vadd.f32 %v2379, %v3031
        %v3086 = vadd.f32 %v2380, %v3034
        %v3087 = vadd.f32 %v2381, %v3039
        %v3088 = vadd.f32 %v2382, %v3042
        %v3089 = vadd.f32 %v2383, %v3047
        %v3090 = vadd.f32 %v2384, %v3050
        %v3091 = vadd.f32 %v2385, %v3055
        %v3092 = vadd.f32 %v2386, %v3058
        %v3109 = vrot.slane %v486, 5
        %v3110 = vrot.slane %v3109, 4
        %v3111 = vrot.slane %v487, 5
        %v3112 = vsel %vm1598, %v3110, %v3111
        %v3113 = vrot.slane %v3111, 4
        %v3114 = vrot.slane %v488, 5
        %v3115 = vsel %vm1598, %v3113, %v3114
        %v3116 = vrot.slane %v489, 5
        %v3117 = vrot.slane %v3116, 4
        %v3118 = vrot.slane %v490, 5
        %v3119 = vsel %vm1598, %v3117, %v3118
        %v3120 = vrot.slane %v3118, 4
        %v3121 = vrot.slane %v491, 5
        %v3122 = vsel %vm1598, %v3120, %v3121
        %v3123 = vrot.slane %v492, 5
        %v3124 = vrot.slane %v3123, 4
        %v3125 = vrot.slane %v493, 5
        %v3126 = vsel %vm1598, %v3124, %v3125
        %v3127 = vrot.slane %v3125, 4
        %v3128 = vrot.slane %v494, 5
        %v3129 = vsel %vm1598, %v3127, %v3128
        %v3130 = vrot.slane %v495, 5
        %v3131 = vrot.slane %v3130, 4
        %v3132 = vrot.slane %v496, 5
        %v3133 = vsel %vm1598, %v3131, %v3132
        %v3134 = vrot.slane %v3132, 4
        %v3135 = vrot.slane %v497, 5
        %v3136 = vsel %vm1598, %v3134, %v3135
        %v3137 = vrot.slane %v498, 5
        %v3138 = vrot.slane %v3137, 4
        %v3139 = vrot.slane %v499, 5
        %v3140 = vsel %vm1598, %v3138, %v3139
        %v3141 = vrot.slane %v3139, 4
        %v3142 = vrot.slane %v500, 5
        %v3143 = vsel %vm1598, %v3141, %v3142
        %v3144 = vrot.slane %v501, 5
        %v3145 = vrot.slane %v3144, 4
        %v3146 = vrot.slane %v502, 5
        %v3147 = vsel %vm1598, %v3145, %v3146
        %v3148 = vrot.slane %v3146, 4
        %v3149 = vrot.slane %v503, 5
        %v3150 = vsel %vm1598, %v3148, %v3149
        %v3151 = vrot.slane %v504, 5
        %v3152 = vrot.slane %v3151, 4
        %v3153 = vrot.slane %v505, 5
        %v3154 = vsel %vm1598, %v3152, %v3153
        %v3155 = vrot.slane %v3153, 4
        %v3156 = vrot.slane %v506, 5
        %v3157 = vsel %vm1598, %v3155, %v3156
        %v3158 = vrot.slane %v507, 5
        %v3159 = vrot.slane %v3158, 4
        %v3160 = vrot.slane %v508, 5
        %v3161 = vsel %vm1598, %v3159, %v3160
        %v3162 = vrot.slane %v3160, 4
        %v3163 = vrot.slane %v509, 5
        %v3164 = vsel %vm1598, %v3162, %v3163
        %v3165 = vrot.slane %v510, 5
        %v3166 = vrot.slane %v3165, 4
        %v3167 = vrot.slane %v511, 5
        %v3168 = vsel %vm1598, %v3166, %v3167
        %v3169 = vrot.slane %v3167, 4
        %v3170 = vrot.slane %v512, 5
        %v3171 = vsel %vm1598, %v3169, %v3170
        %v3172 = vrot.slane %v513, 5
        %v3173 = vrot.slane %v3172, 4
        %v3174 = vrot.slane %v514, 5
        %v3175 = vsel %vm1598, %v3173, %v3174
        %v3176 = vrot.slane %v3174, 4
        %v3177 = vrot.slane %v515, 5
        %v3178 = vsel %vm1598, %v3176, %v3177
        %v3179 = vrot.slane %v516, 5
        %v3180 = vrot.slane %v3179, 4
        %v3181 = vrot.slane %v517, 5
        %v3182 = vsel %vm1598, %v3180, %v3181
        %v3183 = vrot.slane %v3181, 4
        %v3184 = vrot.slane %v518, 5
        %v3185 = vsel %vm1598, %v3183, %v3184
        %v3186 = vrot.slane %v519, 5
        %v3187 = vrot.slane %v3186, 4
        %v3188 = vrot.slane %v520, 5
        %v3189 = vsel %vm1598, %v3187, %v3188
        %v3190 = vrot.slane %v3188, 4
        %v3191 = vrot.slane %v521, 5
        %v3192 = vsel %vm1598, %v3190, %v3191
        %v3193 = vrot.slane %v522, 5
        %v3194 = vrot.slane %v3193, 4
        %v3195 = vrot.slane %v523, 5
        %v3196 = vsel %vm1598, %v3194, %v3195
        %v3197 = vrot.slane %v3195, 4
        %v3198 = vrot.slane %v524, 5
        %v3199 = vsel %vm1598, %v3197, %v3198
        %v3200 = vrot.slane %v525, 5
        %v3201 = vrot.slane %v3200, 4
        %v3202 = vrot.slane %v526, 5
        %v3203 = vsel %vm1598, %v3201, %v3202
        %v3204 = vrot.slane %v3202, 4
        %v3205 = vrot.slane %v527, 5
        %v3206 = vsel %vm1598, %v3204, %v3205
        %v3207 = vrot.slane %v528, 5
        %v3208 = vrot.slane %v3207, 4
        %v3209 = vrot.slane %v529, 5
        %v3210 = vsel %vm1598, %v3208, %v3209
        %v3211 = vrot.slane %v3209, 4
        %v3212 = vrot.slane %v530, 5
        %v3213 = vsel %vm1598, %v3211, %v3212
        %v3214 = vrot.slane %v531, 5
        %v3215 = vrot.slane %v3214, 4
        %v3216 = vrot.slane %v532, 5
        %v3217 = vsel %vm1598, %v3215, %v3216
        %v3218 = vrot.slane %v3216, 4
        %v3219 = vrot.slane %v533, 5
        %v3220 = vsel %vm1598, %v3218, %v3219
        %s3221 = scalar_lea.vmem [#allocation9], 320
        %v3222 = vld [vmem:[%s3221] sm:$0xf]
        %v3223 = vld [vmem:[%s3221 + $0x4] sm:$0xf]
        %v3224 = vld [vmem:[%s3221 + $0x8] sm:$0xf]
        %v3225 = vld [vmem:[%s3221 + $0xc] sm:$0xf]
        %v3226 = vld [vmem:[%s3221 + $0x10] sm:$0xf]
        %v3227 = vld [vmem:[%s3221 + $0x14] sm:$0xf]
        %v3228 = vld [vmem:[%s3221 + $0x18] sm:$0xf]
        %v3229 = vld [vmem:[%s3221 + $0x1c] sm:$0xf]
        %v3230 = vld [vmem:[%s3221 + $0x20] sm:$0xf]
        %v3231 = vld [vmem:[%s3221 + $0x24] sm:$0xf]
        %v3232 = vld [vmem:[%s3221 + $0x28] sm:$0xf]
        %v3233 = vld [vmem:[%s3221 + $0x2c] sm:$0xf]
        %v3234 = vld [vmem:[%s3221 + $0x30] sm:$0xf]
        %v3235 = vld [vmem:[%s3221 + $0x34] sm:$0xf]
        %v3236 = vld [vmem:[%s3221 + $0x38] sm:$0xf]
        %v3237 = vld [vmem:[%s3221 + $0x3c] sm:$0xf]
        %v3238 = vunpack.c.l.b16 %v3112
        %v3239 = vunpack.c.l.b16 %v3115
        %v3240 = vunpack.c.l.b16 %v3119
        %v3241 = vunpack.c.l.b16 %v3122
        %v3242 = vunpack.c.l.b16 %v3126
        %v3243 = vunpack.c.l.b16 %v3129
        %v3244 = vunpack.c.l.b16 %v3133
        %v3245 = vunpack.c.l.b16 %v3136
        %v3246 = vunpack.c.l.b16 %v3140
        %v3247 = vunpack.c.l.b16 %v3143
        %v3248 = vunpack.c.l.b16 %v3147
        %v3249 = vunpack.c.l.b16 %v3150
        %v3250 = vunpack.c.l.b16 %v3154
        %v3251 = vunpack.c.l.b16 %v3157
        %v3252 = vunpack.c.l.b16 %v3161
        %v3253 = vunpack.c.l.b16 %v3164
        %v3254 = vunpack.c.l.b16 %v3168
        %v3255 = vunpack.c.l.b16 %v3171
        %v3256 = vunpack.c.l.b16 %v3175
        %v3257 = vunpack.c.l.b16 %v3178
        %v3258 = vunpack.c.l.b16 %v3182
        %v3259 = vunpack.c.l.b16 %v3185
        %v3260 = vunpack.c.l.b16 %v3189
        %v3261 = vunpack.c.l.b16 %v3192
        %v3262 = vunpack.c.l.b16 %v3196
        %v3263 = vunpack.c.l.b16 %v3199
        %v3264 = vunpack.c.l.b16 %v3203
        %v3265 = vunpack.c.l.b16 %v3206
        %v3266 = vunpack.c.l.b16 %v3210
        %v3267 = vunpack.c.l.b16 %v3213
        %v3268 = vunpack.c.l.b16 %v3217
        %v3269 = vunpack.c.l.b16 %v3220
        %v3270 = vpack.c.b16 %v3239, %v3238
        %v3271 = vpack.c.b16 %v3241, %v3240
        %v3272 = vpack.c.b16 %v3243, %v3242
        %v3273 = vpack.c.b16 %v3245, %v3244
        %v3274 = vpack.c.b16 %v3247, %v3246
        %v3275 = vpack.c.b16 %v3249, %v3248
        %v3276 = vpack.c.b16 %v3251, %v3250
        %v3277 = vpack.c.b16 %v3253, %v3252
        %v3278 = vpack.c.b16 %v3255, %v3254
        %v3279 = vpack.c.b16 %v3257, %v3256
        %v3280 = vpack.c.b16 %v3259, %v3258
        %v3281 = vpack.c.b16 %v3261, %v3260
        %v3282 = vpack.c.b16 %v3263, %v3262
        %v3283 = vpack.c.b16 %v3265, %v3264
        %v3284 = vpack.c.b16 %v3267, %v3266
        %v3285 = vpack.c.b16 %v3269, %v3268
        %v3318 = vunpack.c.l.b16 %v3222
        %v3319 = vunpack.c.l.b16 %v3223
        %v3320 = vunpack.c.l.b16 %v3224
        %v3321 = vunpack.c.l.b16 %v3225
        %v3322 = vunpack.c.l.b16 %v3226
        %v3323 = vunpack.c.l.b16 %v3227
        %v3324 = vunpack.c.l.b16 %v3228
        %v3325 = vunpack.c.l.b16 %v3229
        %v3326 = vunpack.c.l.b16 %v3230
        %v3327 = vunpack.c.l.b16 %v3231
        %v3328 = vunpack.c.l.b16 %v3232
        %v3329 = vunpack.c.l.b16 %v3233
        %v3330 = vunpack.c.l.b16 %v3234
        %v3331 = vunpack.c.l.b16 %v3235
        %v3332 = vunpack.c.l.b16 %v3236
        %v3333 = vunpack.c.l.b16 %v3237
        %v3334 = vpack.c.b16 %v3319, %v3318
        %v3335 = vpack.c.b16 %v3321, %v3320
        %v3336 = vpack.c.b16 %v3323, %v3322
        %v3337 = vpack.c.b16 %v3325, %v3324
        %v3338 = vpack.c.b16 %v3327, %v3326
        %v3339 = vpack.c.b16 %v3329, %v3328
        %v3340 = vpack.c.b16 %v3331, %v3330
        %v3341 = vpack.c.b16 %v3333, %v3332
        %3350 = vmatprep.subr.bf16.mxu0 0
        %3351 = vmatpush1.bf16.msra.mxu0 %v3341
        %3352 = vmatprep.subr.bf16.mxu0 0
        %3353 = vmatpush1.bf16.msra.mxu0 %v3340
        %3354 = vmatprep.subr.bf16.mxu0 0
        %3355 = vmatpush1.bf16.msra.mxu0 %v3339
        %3356 = vmatprep.subr.bf16.mxu0 0
        %3357 = vmatpush1.bf16.msra.mxu0 %v3338
        %3358 = vmatprep.subr.bf16.mxu0 0
        %3359 = vmatpush1.bf16.msra.mxu0 %v3337
        %3360 = vmatprep.subr.bf16.mxu0 0
        %3361 = vmatpush1.bf16.msra.mxu0 %v3336
        %3362 = vmatprep.subr.bf16.mxu0 0
        %3363 = vmatpush1.bf16.msra.mxu0 %v3335
        %3364 = vmatprep.subr.bf16.mxu0 0
        %3365 = vmatpush1.bf16.msra.mxu0 %v3334
        %3366 = vmatprep.subr.bf16.mxu0 0
        %3367 = vmatpush2.bf16.msra.mxu0 0
        %3368 = vmatprep.subr.bf16.mxu0 0
        %3369 = vmatpush2.bf16.msra.mxu0 0
        %3370 = vmatprep.subr.bf16.mxu0 0
        %3371 = vmatpush2.bf16.msra.mxu0 0
        %3372 = vmatprep.subr.bf16.mxu0 0
        %3373 = vmatpush2.bf16.msra.mxu0 0
        %3374 = vmatprep.subr.bf16.mxu0 0
        %3375 = vmatpush2.bf16.msra.mxu0 0
        %3376 = vmatprep.subr.bf16.mxu0 0
        %3377 = vmatpush2.bf16.msra.mxu0 0
        %3378 = vmatprep.subr.bf16.mxu0 0
        %3379 = vmatpush2.bf16.msra.mxu0 0
        %3380 = vmatprep.subr.bf16.mxu0 0
        %3381 = vmatpush2.bf16.msra.mxu0 0
        %3382 = vmatprep.mubr.bf16.mxu0 0
        %3383 = vmatmul.mubr.bf16.gmra.mxu0 %v3270
        %v3384 = vpop.f32.mrf.mxu0
        %v3385 = vadd.f32 0.0, %v3384
        %v3386 = vpop.f32.mrf.mxu0
        %v3387 = vpop.f32.mrf.mxu0
        %v3388 = vadd.f32 0.0, %v3387
        %v3389 = vpop.f32.mrf.mxu0
        %3390 = vmatprep.mubr.bf16.mxu0 0
        %3391 = vmatmul.mubr.bf16.gmra.mxu0 %v3271
        %v3392 = vpop.f32.mrf.mxu0
        %v3393 = vadd.f32 0.0, %v3392
        %v3394 = vpop.f32.mrf.mxu0
        %v3395 = vpop.f32.mrf.mxu0
        %v3396 = vadd.f32 0.0, %v3395
        %v3397 = vpop.f32.mrf.mxu0
        %3398 = vmatprep.mubr.bf16.mxu0 0
        %3399 = vmatmul.mubr.bf16.gmra.mxu0 %v3272
        %v3400 = vpop.f32.mrf.mxu0
        %v3401 = vadd.f32 0.0, %v3400
        %v3402 = vpop.f32.mrf.mxu0
        %v3403 = vpop.f32.mrf.mxu0
        %v3404 = vadd.f32 0.0, %v3403
        %v3405 = vpop.f32.mrf.mxu0
        %3406 = vmatprep.mubr.bf16.mxu0 0
        %3407 = vmatmul.mubr.bf16.gmra.mxu0 %v3273
        %v3408 = vpop.f32.mrf.mxu0
        %v3409 = vadd.f32 0.0, %v3408
        %v3410 = vpop.f32.mrf.mxu0
        %v3411 = vpop.f32.mrf.mxu0
        %v3412 = vadd.f32 0.0, %v3411
        %v3413 = vpop.f32.mrf.mxu0
        %3414 = vmatprep.mubr.bf16.mxu0 0
        %3415 = vmatmul.mubr.bf16.gmra.mxu0 %v3274
        %v3416 = vpop.f32.mrf.mxu0
        %v3417 = vadd.f32 0.0, %v3416
        %v3418 = vpop.f32.mrf.mxu0
        %v3419 = vpop.f32.mrf.mxu0
        %v3420 = vadd.f32 0.0, %v3419
        %v3421 = vpop.f32.mrf.mxu0
        %3422 = vmatprep.mubr.bf16.mxu0 0
        %3423 = vmatmul.mubr.bf16.gmra.mxu0 %v3275
        %v3424 = vpop.f32.mrf.mxu0
        %v3425 = vadd.f32 0.0, %v3424
        %v3426 = vpop.f32.mrf.mxu0
        %v3427 = vpop.f32.mrf.mxu0
        %v3428 = vadd.f32 0.0, %v3427
        %v3429 = vpop.f32.mrf.mxu0
        %3430 = vmatprep.mubr.bf16.mxu0 0
        %3431 = vmatmul.mubr.bf16.gmra.mxu0 %v3276
        %v3432 = vpop.f32.mrf.mxu0
        %v3433 = vadd.f32 0.0, %v3432
        %v3434 = vpop.f32.mrf.mxu0
        %v3435 = vpop.f32.mrf.mxu0
        %v3436 = vadd.f32 0.0, %v3435
        %v3437 = vpop.f32.mrf.mxu0
        %3438 = vmatprep.mubr.bf16.mxu0 0
        %3439 = vmatmul.mubr.bf16.gmra.mxu0 %v3277
        %v3440 = vpop.f32.mrf.mxu0
        %v3441 = vadd.f32 0.0, %v3440
        %v3442 = vpop.f32.mrf.mxu0
        %v3443 = vpop.f32.mrf.mxu0
        %v3444 = vadd.f32 0.0, %v3443
        %v3445 = vpop.f32.mrf.mxu0
        %3446 = vmatprep.mubr.bf16.mxu0 0
        %3447 = vmatmul.mubr.bf16.gmra.mxu0 %v3278
        %v3448 = vpop.f32.mrf.mxu0
        %v3449 = vadd.f32 0.0, %v3448
        %v3450 = vpop.f32.mrf.mxu0
        %v3451 = vpop.f32.mrf.mxu0
        %v3452 = vadd.f32 0.0, %v3451
        %v3453 = vpop.f32.mrf.mxu0
        %3454 = vmatprep.mubr.bf16.mxu0 0
        %3455 = vmatmul.mubr.bf16.gmra.mxu0 %v3279
        %v3456 = vpop.f32.mrf.mxu0
        %v3457 = vadd.f32 0.0, %v3456
        %v3458 = vpop.f32.mrf.mxu0
        %v3459 = vpop.f32.mrf.mxu0
        %v3460 = vadd.f32 0.0, %v3459
        %v3461 = vpop.f32.mrf.mxu0
        %3462 = vmatprep.mubr.bf16.mxu0 0
        %3463 = vmatmul.mubr.bf16.gmra.mxu0 %v3280
        %v3464 = vpop.f32.mrf.mxu0
        %v3465 = vadd.f32 0.0, %v3464
        %v3466 = vpop.f32.mrf.mxu0
        %v3467 = vpop.f32.mrf.mxu0
        %v3468 = vadd.f32 0.0, %v3467
        %v3469 = vpop.f32.mrf.mxu0
        %3470 = vmatprep.mubr.bf16.mxu0 0
        %3471 = vmatmul.mubr.bf16.gmra.mxu0 %v3281
        %v3472 = vpop.f32.mrf.mxu0
        %v3473 = vadd.f32 0.0, %v3472
        %v3474 = vpop.f32.mrf.mxu0
        %v3475 = vpop.f32.mrf.mxu0
        %v3476 = vadd.f32 0.0, %v3475
        %v3477 = vpop.f32.mrf.mxu0
        %3478 = vmatprep.mubr.bf16.mxu0 0
        %3479 = vmatmul.mubr.bf16.gmra.mxu0 %v3282
        %v3480 = vpop.f32.mrf.mxu0
        %v3481 = vadd.f32 0.0, %v3480
        %v3482 = vpop.f32.mrf.mxu0
        %v3483 = vpop.f32.mrf.mxu0
        %v3484 = vadd.f32 0.0, %v3483
        %v3485 = vpop.f32.mrf.mxu0
        %3486 = vmatprep.mubr.bf16.mxu0 0
        %3487 = vmatmul.mubr.bf16.gmra.mxu0 %v3283
        %v3488 = vpop.f32.mrf.mxu0
        %v3489 = vadd.f32 0.0, %v3488
        %v3490 = vpop.f32.mrf.mxu0
        %v3491 = vpop.f32.mrf.mxu0
        %v3492 = vadd.f32 0.0, %v3491
        %v3493 = vpop.f32.mrf.mxu0
        %3494 = vmatprep.mubr.bf16.mxu0 0
        %3495 = vmatmul.mubr.bf16.gmra.mxu0 %v3284
        %v3496 = vpop.f32.mrf.mxu0
        %v3497 = vadd.f32 0.0, %v3496
        %v3498 = vpop.f32.mrf.mxu0
        %v3499 = vpop.f32.mrf.mxu0
        %v3500 = vadd.f32 0.0, %v3499
        %v3501 = vpop.f32.mrf.mxu0
        %3502 = vmatprep.mubr.bf16.mxu0 0
        %3503 = vmatmul.mubr.bf16.gmra.mxu0 %v3285
        %v3504 = vpop.f32.mrf.mxu0
        %v3505 = vadd.f32 0.0, %v3504
        %v3506 = vpop.f32.mrf.mxu0
        %v3507 = vpop.f32.mrf.mxu0
        %v3508 = vadd.f32 0.0, %v3507
        %v3509 = vpop.f32.mrf.mxu0
        %3510 = vdwg.mxu0
        %v3511 = vadd.f32 %v3061, %v3385
        %v3512 = vadd.f32 %v3062, %v3388
        %v3513 = vadd.f32 %v3063, %v3393
        %v3514 = vadd.f32 %v3064, %v3396
        %v3515 = vadd.f32 %v3065, %v3401
        %v3516 = vadd.f32 %v3066, %v3404
        %v3517 = vadd.f32 %v3067, %v3409
        %v3518 = vadd.f32 %v3068, %v3412
        %v3519 = vadd.f32 %v3069, %v3417
        %v3520 = vadd.f32 %v3070, %v3420
        %v3521 = vadd.f32 %v3071, %v3425
        %v3522 = vadd.f32 %v3072, %v3428
        %v3523 = vadd.f32 %v3073, %v3433
        %v3524 = vadd.f32 %v3074, %v3436
        %v3525 = vadd.f32 %v3075, %v3441
        %v3526 = vadd.f32 %v3076, %v3444
        %v3527 = vadd.f32 %v3077, %v3449
        %v3528 = vadd.f32 %v3078, %v3452
        %v3529 = vadd.f32 %v3079, %v3457
        %v3530 = vadd.f32 %v3080, %v3460
        %v3531 = vadd.f32 %v3081, %v3465
        %v3532 = vadd.f32 %v3082, %v3468
        %v3533 = vadd.f32 %v3083, %v3473
        %v3534 = vadd.f32 %v3084, %v3476
        %v3535 = vadd.f32 %v3085, %v3481
        %v3536 = vadd.f32 %v3086, %v3484
        %v3537 = vadd.f32 %v3087, %v3489
        %v3538 = vadd.f32 %v3088, %v3492
        %v3539 = vadd.f32 %v3089, %v3497
        %v3540 = vadd.f32 %v3090, %v3500
        %v3541 = vadd.f32 %v3091, %v3505
        %v3542 = vadd.f32 %v3092, %v3508
        %s3543 = scalar_lea.vmem [#allocation9], 384
        %v3544 = vld [vmem:[%s3543] sm:$0xf]
        %v3545 = vld [vmem:[%s3543 + $0x4] sm:$0xf]
        %v3546 = vld [vmem:[%s3543 + $0x8] sm:$0xf]
        %v3547 = vld [vmem:[%s3543 + $0xc] sm:$0xf]
        %v3548 = vld [vmem:[%s3543 + $0x10] sm:$0xf]
        %v3549 = vld [vmem:[%s3543 + $0x14] sm:$0xf]
        %v3550 = vld [vmem:[%s3543 + $0x18] sm:$0xf]
        %v3551 = vld [vmem:[%s3543 + $0x1c] sm:$0xf]
        %v3552 = vld [vmem:[%s3543 + $0x20] sm:$0xf]
        %v3553 = vld [vmem:[%s3543 + $0x24] sm:$0xf]
        %v3554 = vld [vmem:[%s3543 + $0x28] sm:$0xf]
        %v3555 = vld [vmem:[%s3543 + $0x2c] sm:$0xf]
        %v3556 = vld [vmem:[%s3543 + $0x30] sm:$0xf]
        %v3557 = vld [vmem:[%s3543 + $0x34] sm:$0xf]
        %v3558 = vld [vmem:[%s3543 + $0x38] sm:$0xf]
        %v3559 = vld [vmem:[%s3543 + $0x3c] sm:$0xf]
        %v3592 = vunpack.c.l.b16 %v534
        %v3593 = vunpack.c.l.b16 %v535
        %v3594 = vunpack.c.l.b16 %v537
        %v3595 = vunpack.c.l.b16 %v538
        %v3596 = vunpack.c.l.b16 %v540
        %v3597 = vunpack.c.l.b16 %v541
        %v3598 = vunpack.c.l.b16 %v543
        %v3599 = vunpack.c.l.b16 %v544
        %v3600 = vunpack.c.l.b16 %v546
        %v3601 = vunpack.c.l.b16 %v547
        %v3602 = vunpack.c.l.b16 %v549
        %v3603 = vunpack.c.l.b16 %v550
        %v3604 = vunpack.c.l.b16 %v552
        %v3605 = vunpack.c.l.b16 %v553
        %v3606 = vunpack.c.l.b16 %v555
        %v3607 = vunpack.c.l.b16 %v556
        %v3608 = vunpack.c.l.b16 %v558
        %v3609 = vunpack.c.l.b16 %v559
        %v3610 = vunpack.c.l.b16 %v561
        %v3611 = vunpack.c.l.b16 %v562
        %v3612 = vunpack.c.l.b16 %v564
        %v3613 = vunpack.c.l.b16 %v565
        %v3614 = vunpack.c.l.b16 %v567
        %v3615 = vunpack.c.l.b16 %v568
        %v3616 = vunpack.c.l.b16 %v570
        %v3617 = vunpack.c.l.b16 %v571
        %v3618 = vunpack.c.l.b16 %v573
        %v3619 = vunpack.c.l.b16 %v574
        %v3620 = vunpack.c.l.b16 %v576
        %v3621 = vunpack.c.l.b16 %v577
        %v3622 = vunpack.c.l.b16 %v579
        %v3623 = vunpack.c.l.b16 %v580
        %v3624 = vpack.c.b16 %v3593, %v3592
        %v3625 = vpack.c.b16 %v3595, %v3594
        %v3626 = vpack.c.b16 %v3597, %v3596
        %v3627 = vpack.c.b16 %v3599, %v3598
        %v3628 = vpack.c.b16 %v3601, %v3600
        %v3629 = vpack.c.b16 %v3603, %v3602
        %v3630 = vpack.c.b16 %v3605, %v3604
        %v3631 = vpack.c.b16 %v3607, %v3606
        %v3632 = vpack.c.b16 %v3609, %v3608
        %v3633 = vpack.c.b16 %v3611, %v3610
        %v3634 = vpack.c.b16 %v3613, %v3612
        %v3635 = vpack.c.b16 %v3615, %v3614
        %v3636 = vpack.c.b16 %v3617, %v3616
        %v3637 = vpack.c.b16 %v3619, %v3618
        %v3638 = vpack.c.b16 %v3621, %v3620
        %v3639 = vpack.c.b16 %v3623, %v3622
        %v3672 = vunpack.c.l.b16 %v3544
        %v3673 = vunpack.c.l.b16 %v3545
        %v3674 = vunpack.c.l.b16 %v3546
        %v3675 = vunpack.c.l.b16 %v3547
        %v3676 = vunpack.c.l.b16 %v3548
        %v3677 = vunpack.c.l.b16 %v3549
        %v3678 = vunpack.c.l.b16 %v3550
        %v3679 = vunpack.c.l.b16 %v3551
        %v3680 = vunpack.c.l.b16 %v3552
        %v3681 = vunpack.c.l.b16 %v3553
        %v3682 = vunpack.c.l.b16 %v3554
        %v3683 = vunpack.c.l.b16 %v3555
        %v3684 = vunpack.c.l.b16 %v3556
        %v3685 = vunpack.c.l.b16 %v3557
        %v3686 = vunpack.c.l.b16 %v3558
        %v3687 = vunpack.c.l.b16 %v3559
        %v3688 = vpack.c.b16 %v3673, %v3672
        %v3689 = vpack.c.b16 %v3675, %v3674
        %v3690 = vpack.c.b16 %v3677, %v3676
        %v3691 = vpack.c.b16 %v3679, %v3678
        %v3692 = vpack.c.b16 %v3681, %v3680
        %v3693 = vpack.c.b16 %v3683, %v3682
        %v3694 = vpack.c.b16 %v3685, %v3684
        %v3695 = vpack.c.b16 %v3687, %v3686
        %3704 = vmatprep.subr.bf16.mxu0 0
        %3705 = vmatpush1.bf16.msra.mxu0 %v3695
        %3706 = vmatprep.subr.bf16.mxu0 0
        %3707 = vmatpush1.bf16.msra.mxu0 %v3694
        %3708 = vmatprep.subr.bf16.mxu0 0
        %3709 = vmatpush1.bf16.msra.mxu0 %v3693
        %3710 = vmatprep.subr.bf16.mxu0 0
        %3711 = vmatpush1.bf16.msra.mxu0 %v3692
        %3712 = vmatprep.subr.bf16.mxu0 0
        %3713 = vmatpush1.bf16.msra.mxu0 %v3691
        %3714 = vmatprep.subr.bf16.mxu0 0
        %3715 = vmatpush1.bf16.msra.mxu0 %v3690
        %3716 = vmatprep.subr.bf16.mxu0 0
        %3717 = vmatpush1.bf16.msra.mxu0 %v3689
        %3718 = vmatprep.subr.bf16.mxu0 0
        %3719 = vmatpush1.bf16.msra.mxu0 %v3688
        %3720 = vmatprep.subr.bf16.mxu0 0
        %3721 = vmatpush2.bf16.msra.mxu0 0
        %3722 = vmatprep.subr.bf16.mxu0 0
        %3723 = vmatpush2.bf16.msra.mxu0 0
        %3724 = vmatprep.subr.bf16.mxu0 0
        %3725 = vmatpush2.bf16.msra.mxu0 0
        %3726 = vmatprep.subr.bf16.mxu0 0
        %3727 = vmatpush2.bf16.msra.mxu0 0
        %3728 = vmatprep.subr.bf16.mxu0 0
        %3729 = vmatpush2.bf16.msra.mxu0 0
        %3730 = vmatprep.subr.bf16.mxu0 0
        %3731 = vmatpush2.bf16.msra.mxu0 0
        %3732 = vmatprep.subr.bf16.mxu0 0
        %3733 = vmatpush2.bf16.msra.mxu0 0
        %3734 = vmatprep.subr.bf16.mxu0 0
        %3735 = vmatpush2.bf16.msra.mxu0 0
        %3736 = vmatprep.mubr.bf16.mxu0 0
        %3737 = vmatmul.mubr.bf16.gmra.mxu0 %v3624
        %v3738 = vpop.f32.mrf.mxu0
        %v3739 = vadd.f32 0.0, %v3738
        %v3740 = vpop.f32.mrf.mxu0
        %v3741 = vpop.f32.mrf.mxu0
        %v3742 = vadd.f32 0.0, %v3741
        %v3743 = vpop.f32.mrf.mxu0
        %3744 = vmatprep.mubr.bf16.mxu0 0
        %3745 = vmatmul.mubr.bf16.gmra.mxu0 %v3625
        %v3746 = vpop.f32.mrf.mxu0
        %v3747 = vadd.f32 0.0, %v3746
        %v3748 = vpop.f32.mrf.mxu0
        %v3749 = vpop.f32.mrf.mxu0
        %v3750 = vadd.f32 0.0, %v3749
        %v3751 = vpop.f32.mrf.mxu0
        %3752 = vmatprep.mubr.bf16.mxu0 0
        %3753 = vmatmul.mubr.bf16.gmra.mxu0 %v3626
        %v3754 = vpop.f32.mrf.mxu0
        %v3755 = vadd.f32 0.0, %v3754
        %v3756 = vpop.f32.mrf.mxu0
        %v3757 = vpop.f32.mrf.mxu0
        %v3758 = vadd.f32 0.0, %v3757
        %v3759 = vpop.f32.mrf.mxu0
        %3760 = vmatprep.mubr.bf16.mxu0 0
        %3761 = vmatmul.mubr.bf16.gmra.mxu0 %v3627
        %v3762 = vpop.f32.mrf.mxu0
        %v3763 = vadd.f32 0.0, %v3762
        %v3764 = vpop.f32.mrf.mxu0
        %v3765 = vpop.f32.mrf.mxu0
        %v3766 = vadd.f32 0.0, %v3765
        %v3767 = vpop.f32.mrf.mxu0
        %3768 = vmatprep.mubr.bf16.mxu0 0
        %3769 = vmatmul.mubr.bf16.gmra.mxu0 %v3628
        %v3770 = vpop.f32.mrf.mxu0
        %v3771 = vadd.f32 0.0, %v3770
        %v3772 = vpop.f32.mrf.mxu0
        %v3773 = vpop.f32.mrf.mxu0
        %v3774 = vadd.f32 0.0, %v3773
        %v3775 = vpop.f32.mrf.mxu0
        %3776 = vmatprep.mubr.bf16.mxu0 0
        %3777 = vmatmul.mubr.bf16.gmra.mxu0 %v3629
        %v3778 = vpop.f32.mrf.mxu0
        %v3779 = vadd.f32 0.0, %v3778
        %v3780 = vpop.f32.mrf.mxu0
        %v3781 = vpop.f32.mrf.mxu0
        %v3782 = vadd.f32 0.0, %v3781
        %v3783 = vpop.f32.mrf.mxu0
        %3784 = vmatprep.mubr.bf16.mxu0 0
        %3785 = vmatmul.mubr.bf16.gmra.mxu0 %v3630
        %v3786 = vpop.f32.mrf.mxu0
        %v3787 = vadd.f32 0.0, %v3786
        %v3788 = vpop.f32.mrf.mxu0
        %v3789 = vpop.f32.mrf.mxu0
        %v3790 = vadd.f32 0.0, %v3789
        %v3791 = vpop.f32.mrf.mxu0
        %3792 = vmatprep.mubr.bf16.mxu0 0
        %3793 = vmatmul.mubr.bf16.gmra.mxu0 %v3631
        %v3794 = vpop.f32.mrf.mxu0
        %v3795 = vadd.f32 0.0, %v3794
        %v3796 = vpop.f32.mrf.mxu0
        %v3797 = vpop.f32.mrf.mxu0
        %v3798 = vadd.f32 0.0, %v3797
        %v3799 = vpop.f32.mrf.mxu0
        %3800 = vmatprep.mubr.bf16.mxu0 0
        %3801 = vmatmul.mubr.bf16.gmra.mxu0 %v3632
        %v3802 = vpop.f32.mrf.mxu0
        %v3803 = vadd.f32 0.0, %v3802
        %v3804 = vpop.f32.mrf.mxu0
        %v3805 = vpop.f32.mrf.mxu0
        %v3806 = vadd.f32 0.0, %v3805
        %v3807 = vpop.f32.mrf.mxu0
        %3808 = vmatprep.mubr.bf16.mxu0 0
        %3809 = vmatmul.mubr.bf16.gmra.mxu0 %v3633
        %v3810 = vpop.f32.mrf.mxu0
        %v3811 = vadd.f32 0.0, %v3810
        %v3812 = vpop.f32.mrf.mxu0
        %v3813 = vpop.f32.mrf.mxu0
        %v3814 = vadd.f32 0.0, %v3813
        %v3815 = vpop.f32.mrf.mxu0
        %3816 = vmatprep.mubr.bf16.mxu0 0
        %3817 = vmatmul.mubr.bf16.gmra.mxu0 %v3634
        %v3818 = vpop.f32.mrf.mxu0
        %v3819 = vadd.f32 0.0, %v3818
        %v3820 = vpop.f32.mrf.mxu0
        %v3821 = vpop.f32.mrf.mxu0
        %v3822 = vadd.f32 0.0, %v3821
        %v3823 = vpop.f32.mrf.mxu0
        %3824 = vmatprep.mubr.bf16.mxu0 0
        %3825 = vmatmul.mubr.bf16.gmra.mxu0 %v3635
        %v3826 = vpop.f32.mrf.mxu0
        %v3827 = vadd.f32 0.0, %v3826
        %v3828 = vpop.f32.mrf.mxu0
        %v3829 = vpop.f32.mrf.mxu0
        %v3830 = vadd.f32 0.0, %v3829
        %v3831 = vpop.f32.mrf.mxu0
        %3832 = vmatprep.mubr.bf16.mxu0 0
        %3833 = vmatmul.mubr.bf16.gmra.mxu0 %v3636
        %v3834 = vpop.f32.mrf.mxu0
        %v3835 = vadd.f32 0.0, %v3834
        %v3836 = vpop.f32.mrf.mxu0
        %v3837 = vpop.f32.mrf.mxu0
        %v3838 = vadd.f32 0.0, %v3837
        %v3839 = vpop.f32.mrf.mxu0
        %3840 = vmatprep.mubr.bf16.mxu0 0
        %3841 = vmatmul.mubr.bf16.gmra.mxu0 %v3637
        %v3842 = vpop.f32.mrf.mxu0
        %v3843 = vadd.f32 0.0, %v3842
        %v3844 = vpop.f32.mrf.mxu0
        %v3845 = vpop.f32.mrf.mxu0
        %v3846 = vadd.f32 0.0, %v3845
        %v3847 = vpop.f32.mrf.mxu0
        %3848 = vmatprep.mubr.bf16.mxu0 0
        %3849 = vmatmul.mubr.bf16.gmra.mxu0 %v3638
        %v3850 = vpop.f32.mrf.mxu0
        %v3851 = vadd.f32 0.0, %v3850
        %v3852 = vpop.f32.mrf.mxu0
        %v3853 = vpop.f32.mrf.mxu0
        %v3854 = vadd.f32 0.0, %v3853
        %v3855 = vpop.f32.mrf.mxu0
        %3856 = vmatprep.mubr.bf16.mxu0 0
        %3857 = vmatmul.mubr.bf16.gmra.mxu0 %v3639
        %v3858 = vpop.f32.mrf.mxu0
        %v3859 = vadd.f32 0.0, %v3858
        %v3860 = vpop.f32.mrf.mxu0
        %v3861 = vpop.f32.mrf.mxu0
        %v3862 = vadd.f32 0.0, %v3861
        %v3863 = vpop.f32.mrf.mxu0
        %3864 = vdwg.mxu0
        %v3865 = vadd.f32 %v3511, %v3739
        %v3866 = vadd.f32 %v3512, %v3742
        %v3867 = vadd.f32 %v3513, %v3747
        %v3868 = vadd.f32 %v3514, %v3750
        %v3869 = vadd.f32 %v3515, %v3755
        %v3870 = vadd.f32 %v3516, %v3758
        %v3871 = vadd.f32 %v3517, %v3763
        %v3872 = vadd.f32 %v3518, %v3766
        %v3873 = vadd.f32 %v3519, %v3771
        %v3874 = vadd.f32 %v3520, %v3774
        %v3875 = vadd.f32 %v3521, %v3779
        %v3876 = vadd.f32 %v3522, %v3782
        %v3877 = vadd.f32 %v3523, %v3787
        %v3878 = vadd.f32 %v3524, %v3790
        %v3879 = vadd.f32 %v3525, %v3795
        %v3880 = vadd.f32 %v3526, %v3798
        %v3881 = vadd.f32 %v3527, %v3803
        %v3882 = vadd.f32 %v3528, %v3806
        %v3883 = vadd.f32 %v3529, %v3811
        %v3884 = vadd.f32 %v3530, %v3814
        %v3885 = vadd.f32 %v3531, %v3819
        %v3886 = vadd.f32 %v3532, %v3822
        %v3887 = vadd.f32 %v3533, %v3827
        %v3888 = vadd.f32 %v3534, %v3830
        %v3889 = vadd.f32 %v3535, %v3835
        %v3890 = vadd.f32 %v3536, %v3838
        %v3891 = vadd.f32 %v3537, %v3843
        %v3892 = vadd.f32 %v3538, %v3846
        %v3893 = vadd.f32 %v3539, %v3851
        %v3894 = vadd.f32 %v3540, %v3854
        %v3895 = vadd.f32 %v3541, %v3859
        %v3896 = vadd.f32 %v3542, %v3862
        %v3898 = vshrl.u32 %v534, 16
        %v3900 = vrot.slane %v3898, 4
        %v3901 = vshll.u32 %v534, 16
        %v3903 = vrot.slane %v3901, 5
        %v3904 = vor.u32 %v3900, %v3903
        %v3905 = vrot.slane %v3904, 4
        %v3907 = vshll.u32 %v535, 16
        %v3909 = vrot.slane %v3907, 5
        %v3910 = vsel %vm600, %v3905, %v3909
        %v3911 = vshrl.u32 %v535, 16
        %v3913 = vrot.slane %v3911, 4
        %v3914 = vor.u32 %v3913, %v3909
        %v3915 = vrot.slane %v3914, 4
        %v3917 = vshll.u32 %v536, 16
        %v3919 = vrot.slane %v3917, 5
        %v3920 = vsel %vm600, %v3915, %v3919
        %v3922 = vshrl.u32 %v537, 16
        %v3924 = vrot.slane %v3922, 4
        %v3925 = vshll.u32 %v537, 16
        %v3927 = vrot.slane %v3925, 5
        %v3928 = vor.u32 %v3924, %v3927
        %v3929 = vrot.slane %v3928, 4
        %v3931 = vshll.u32 %v538, 16
        %v3933 = vrot.slane %v3931, 5
        %v3934 = vsel %vm600, %v3929, %v3933
        %v3935 = vshrl.u32 %v538, 16
        %v3937 = vrot.slane %v3935, 4
        %v3938 = vor.u32 %v3937, %v3933
        %v3939 = vrot.slane %v3938, 4
        %v3941 = vshll.u32 %v539, 16
        %v3943 = vrot.slane %v3941, 5
        %v3944 = vsel %vm600, %v3939, %v3943
        %v3946 = vshrl.u32 %v540, 16
        %v3948 = vrot.slane %v3946, 4
        %v3949 = vshll.u32 %v540, 16
        %v3951 = vrot.slane %v3949, 5
        %v3952 = vor.u32 %v3948, %v3951
        %v3953 = vrot.slane %v3952, 4
        %v3955 = vshll.u32 %v541, 16
        %v3957 = vrot.slane %v3955, 5
        %v3958 = vsel %vm600, %v3953, %v3957
        %v3959 = vshrl.u32 %v541, 16
        %v3961 = vrot.slane %v3959, 4
        %v3962 = vor.u32 %v3961, %v3957
        %v3963 = vrot.slane %v3962, 4
        %v3965 = vshll.u32 %v542, 16
        %v3967 = vrot.slane %v3965, 5
        %v3968 = vsel %vm600, %v3963, %v3967
        %v3970 = vshrl.u32 %v543, 16
        %v3972 = vrot.slane %v3970, 4
        %v3973 = vshll.u32 %v543, 16
        %v3975 = vrot.slane %v3973, 5
        %v3976 = vor.u32 %v3972, %v3975
        %v3977 = vrot.slane %v3976, 4
        %v3979 = vshll.u32 %v544, 16
        %v3981 = vrot.slane %v3979, 5
        %v3982 = vsel %vm600, %v3977, %v3981
        %v3983 = vshrl.u32 %v544, 16
        %v3985 = vrot.slane %v3983, 4
        %v3986 = vor.u32 %v3985, %v3981
        %v3987 = vrot.slane %v3986, 4
        %v3989 = vshll.u32 %v545, 16
        %v3991 = vrot.slane %v3989, 5
        %v3992 = vsel %vm600, %v3987, %v3991
        %v3994 = vshrl.u32 %v546, 16
        %v3996 = vrot.slane %v3994, 4
        %v3997 = vshll.u32 %v546, 16
        %v3999 = vrot.slane %v3997, 5
        %v4000 = vor.u32 %v3996, %v3999
        %v4001 = vrot.slane %v4000, 4
        %v4003 = vshll.u32 %v547, 16
        %v4005 = vrot.slane %v4003, 5
        %v4006 = vsel %vm600, %v4001, %v4005
        %v4007 = vshrl.u32 %v547, 16
        %v4009 = vrot.slane %v4007, 4
        %v4010 = vor.u32 %v4009, %v4005
        %v4011 = vrot.slane %v4010, 4
        %v4013 = vshll.u32 %v548, 16
        %v4015 = vrot.slane %v4013, 5
        %v4016 = vsel %vm600, %v4011, %v4015
        %v4018 = vshrl.u32 %v549, 16
        %v4020 = vrot.slane %v4018, 4
        %v4021 = vshll.u32 %v549, 16
        %v4023 = vrot.slane %v4021, 5
        %v4024 = vor.u32 %v4020, %v4023
        %v4025 = vrot.slane %v4024, 4
        %v4027 = vshll.u32 %v550, 16
        %v4029 = vrot.slane %v4027, 5
        %v4030 = vsel %vm600, %v4025, %v4029
        %v4031 = vshrl.u32 %v550, 16
        %v4033 = vrot.slane %v4031, 4
        %v4034 = vor.u32 %v4033, %v4029
        %v4035 = vrot.slane %v4034, 4
        %v4037 = vshll.u32 %v551, 16
        %v4039 = vrot.slane %v4037, 5
        %v4040 = vsel %vm600, %v4035, %v4039
        %v4042 = vshrl.u32 %v552, 16
        %v4044 = vrot.slane %v4042, 4
        %v4045 = vshll.u32 %v552, 16
        %v4047 = vrot.slane %v4045, 5
        %v4048 = vor.u32 %v4044, %v4047
        %v4049 = vrot.slane %v4048, 4
        %v4051 = vshll.u32 %v553, 16
        %v4053 = vrot.slane %v4051, 5
        %v4054 = vsel %vm600, %v4049, %v4053
        %v4055 = vshrl.u32 %v553, 16
        %v4057 = vrot.slane %v4055, 4
        %v4058 = vor.u32 %v4057, %v4053
        %v4059 = vrot.slane %v4058, 4
        %v4061 = vshll.u32 %v554, 16
        %v4063 = vrot.slane %v4061, 5
        %v4064 = vsel %vm600, %v4059, %v4063
        %v4066 = vshrl.u32 %v555, 16
        %v4068 = vrot.slane %v4066, 4
        %v4069 = vshll.u32 %v555, 16
        %v4071 = vrot.slane %v4069, 5
        %v4072 = vor.u32 %v4068, %v4071
        %v4073 = vrot.slane %v4072, 4
        %v4075 = vshll.u32 %v556, 16
        %v4077 = vrot.slane %v4075, 5
        %v4078 = vsel %vm600, %v4073, %v4077
        %v4079 = vshrl.u32 %v556, 16
        %v4081 = vrot.slane %v4079, 4
        %v4082 = vor.u32 %v4081, %v4077
        %v4083 = vrot.slane %v4082, 4
        %v4085 = vshll.u32 %v557, 16
        %v4087 = vrot.slane %v4085, 5
        %v4088 = vsel %vm600, %v4083, %v4087
        %v4090 = vshrl.u32 %v558, 16
        %v4092 = vrot.slane %v4090, 4
        %v4093 = vshll.u32 %v558, 16
        %v4095 = vrot.slane %v4093, 5
        %v4096 = vor.u32 %v4092, %v4095
        %v4097 = vrot.slane %v4096, 4
        %v4099 = vshll.u32 %v559, 16
        %v4101 = vrot.slane %v4099, 5
        %v4102 = vsel %vm600, %v4097, %v4101
        %v4103 = vshrl.u32 %v559, 16
        %v4105 = vrot.slane %v4103, 4
        %v4106 = vor.u32 %v4105, %v4101
        %v4107 = vrot.slane %v4106, 4
        %v4109 = vshll.u32 %v560, 16
        %v4111 = vrot.slane %v4109, 5
        %v4112 = vsel %vm600, %v4107, %v4111
        %v4114 = vshrl.u32 %v561, 16
        %v4116 = vrot.slane %v4114, 4
        %v4117 = vshll.u32 %v561, 16
        %v4119 = vrot.slane %v4117, 5
        %v4120 = vor.u32 %v4116, %v4119
        %v4121 = vrot.slane %v4120, 4
        %v4123 = vshll.u32 %v562, 16
        %v4125 = vrot.slane %v4123, 5
        %v4126 = vsel %vm600, %v4121, %v4125
        %v4127 = vshrl.u32 %v562, 16
        %v4129 = vrot.slane %v4127, 4
        %v4130 = vor.u32 %v4129, %v4125
        %v4131 = vrot.slane %v4130, 4
        %v4133 = vshll.u32 %v563, 16
        %v4135 = vrot.slane %v4133, 5
        %v4136 = vsel %vm600, %v4131, %v4135
        %v4138 = vshrl.u32 %v564, 16
        %v4140 = vrot.slane %v4138, 4
        %v4141 = vshll.u32 %v564, 16
        %v4143 = vrot.slane %v4141, 5
        %v4144 = vor.u32 %v4140, %v4143
        %v4145 = vrot.slane %v4144, 4
        %v4147 = vshll.u32 %v565, 16
        %v4149 = vrot.slane %v4147, 5
        %v4150 = vsel %vm600, %v4145, %v4149
        %v4151 = vshrl.u32 %v565, 16
        %v4153 = vrot.slane %v4151, 4
        %v4154 = vor.u32 %v4153, %v4149
        %v4155 = vrot.slane %v4154, 4
        %v4157 = vshll.u32 %v566, 16
        %v4159 = vrot.slane %v4157, 5
        %v4160 = vsel %vm600, %v4155, %v4159
        %v4162 = vshrl.u32 %v567, 16
        %v4164 = vrot.slane %v4162, 4
        %v4165 = vshll.u32 %v567, 16
        %v4167 = vrot.slane %v4165, 5
        %v4168 = vor.u32 %v4164, %v4167
        %v4169 = vrot.slane %v4168, 4
        %v4171 = vshll.u32 %v568, 16
        %v4173 = vrot.slane %v4171, 5
        %v4174 = vsel %vm600, %v4169, %v4173
        %v4175 = vshrl.u32 %v568, 16
        %v4177 = vrot.slane %v4175, 4
        %v4178 = vor.u32 %v4177, %v4173
        %v4179 = vrot.slane %v4178, 4
        %v4181 = vshll.u32 %v569, 16
        %v4183 = vrot.slane %v4181, 5
        %v4184 = vsel %vm600, %v4179, %v4183
        %v4186 = vshrl.u32 %v570, 16
        %v4188 = vrot.slane %v4186, 4
        %v4189 = vshll.u32 %v570, 16
        %v4191 = vrot.slane %v4189, 5
        %v4192 = vor.u32 %v4188, %v4191
        %v4193 = vrot.slane %v4192, 4
        %v4195 = vshll.u32 %v571, 16
        %v4197 = vrot.slane %v4195, 5
        %v4198 = vsel %vm600, %v4193, %v4197
        %v4199 = vshrl.u32 %v571, 16
        %v4201 = vrot.slane %v4199, 4
        %v4202 = vor.u32 %v4201, %v4197
        %v4203 = vrot.slane %v4202, 4
        %v4205 = vshll.u32 %v572, 16
        %v4207 = vrot.slane %v4205, 5
        %v4208 = vsel %vm600, %v4203, %v4207
        %v4210 = vshrl.u32 %v573, 16
        %v4212 = vrot.slane %v4210, 4
        %v4213 = vshll.u32 %v573, 16
        %v4215 = vrot.slane %v4213, 5
        %v4216 = vor.u32 %v4212, %v4215
        %v4217 = vrot.slane %v4216, 4
        %v4219 = vshll.u32 %v574, 16
        %v4221 = vrot.slane %v4219, 5
        %v4222 = vsel %vm600, %v4217, %v4221
        %v4223 = vshrl.u32 %v574, 16
        %v4225 = vrot.slane %v4223, 4
        %v4226 = vor.u32 %v4225, %v4221
        %v4227 = vrot.slane %v4226, 4
        %v4229 = vshll.u32 %v575, 16
        %v4231 = vrot.slane %v4229, 5
        %v4232 = vsel %vm600, %v4227, %v4231
        %v4234 = vshrl.u32 %v576, 16
        %v4236 = vrot.slane %v4234, 4
        %v4237 = vshll.u32 %v576, 16
        %v4239 = vrot.slane %v4237, 5
        %v4240 = vor.u32 %v4236, %v4239
        %v4241 = vrot.slane %v4240, 4
        %v4243 = vshll.u32 %v577, 16
        %v4245 = vrot.slane %v4243, 5
        %v4246 = vsel %vm600, %v4241, %v4245
        %v4247 = vshrl.u32 %v577, 16
        %v4249 = vrot.slane %v4247, 4
        %v4250 = vor.u32 %v4249, %v4245
        %v4251 = vrot.slane %v4250, 4
        %v4253 = vshll.u32 %v578, 16
        %v4255 = vrot.slane %v4253, 5
        %v4256 = vsel %vm600, %v4251, %v4255
        %v4258 = vshrl.u32 %v579, 16
        %v4260 = vrot.slane %v4258, 4
        %v4261 = vshll.u32 %v579, 16
        %v4263 = vrot.slane %v4261, 5
        %v4264 = vor.u32 %v4260, %v4263
        %v4265 = vrot.slane %v4264, 4
        %v4267 = vshll.u32 %v580, 16
        %v4269 = vrot.slane %v4267, 5
        %v4270 = vsel %vm600, %v4265, %v4269
        %v4271 = vshrl.u32 %v580, 16
        %v4273 = vrot.slane %v4271, 4
        %v4274 = vor.u32 %v4273, %v4269
        %v4275 = vrot.slane %v4274, 4
        %v4277 = vshll.u32 %v581, 16
        %v4279 = vrot.slane %v4277, 5
        %v4280 = vsel %vm600, %v4275, %v4279
        %s4281 = scalar_lea.vmem [#allocation9], 448
        %v4282 = vld [vmem:[%s4281] sm:$0xf]
        %v4283 = vld [vmem:[%s4281 + $0x4] sm:$0xf]
        %v4284 = vld [vmem:[%s4281 + $0x8] sm:$0xf]
        %v4285 = vld [vmem:[%s4281 + $0xc] sm:$0xf]
        %v4286 = vld [vmem:[%s4281 + $0x10] sm:$0xf]
        %v4287 = vld [vmem:[%s4281 + $0x14] sm:$0xf]
        %v4288 = vld [vmem:[%s4281 + $0x18] sm:$0xf]
        %v4289 = vld [vmem:[%s4281 + $0x1c] sm:$0xf]
        %v4290 = vld [vmem:[%s4281 + $0x20] sm:$0xf]
        %v4291 = vld [vmem:[%s4281 + $0x24] sm:$0xf]
        %v4292 = vld [vmem:[%s4281 + $0x28] sm:$0xf]
        %v4293 = vld [vmem:[%s4281 + $0x2c] sm:$0xf]
        %v4294 = vld [vmem:[%s4281 + $0x30] sm:$0xf]
        %v4295 = vld [vmem:[%s4281 + $0x34] sm:$0xf]
        %v4296 = vld [vmem:[%s4281 + $0x38] sm:$0xf]
        %v4297 = vld [vmem:[%s4281 + $0x3c] sm:$0xf]
        %v4298 = vunpack.c.l.b16 %v3910
        %v4299 = vunpack.c.l.b16 %v3920
        %v4300 = vunpack.c.l.b16 %v3934
        %v4301 = vunpack.c.l.b16 %v3944
        %v4302 = vunpack.c.l.b16 %v3958
        %v4303 = vunpack.c.l.b16 %v3968
        %v4304 = vunpack.c.l.b16 %v3982
        %v4305 = vunpack.c.l.b16 %v3992
        %v4306 = vunpack.c.l.b16 %v4006
        %v4307 = vunpack.c.l.b16 %v4016
        %v4308 = vunpack.c.l.b16 %v4030
        %v4309 = vunpack.c.l.b16 %v4040
        %v4310 = vunpack.c.l.b16 %v4054
        %v4311 = vunpack.c.l.b16 %v4064
        %v4312 = vunpack.c.l.b16 %v4078
        %v4313 = vunpack.c.l.b16 %v4088
        %v4314 = vunpack.c.l.b16 %v4102
        %v4315 = vunpack.c.l.b16 %v4112
        %v4316 = vunpack.c.l.b16 %v4126
        %v4317 = vunpack.c.l.b16 %v4136
        %v4318 = vunpack.c.l.b16 %v4150
        %v4319 = vunpack.c.l.b16 %v4160
        %v4320 = vunpack.c.l.b16 %v4174
        %v4321 = vunpack.c.l.b16 %v4184
        %v4322 = vunpack.c.l.b16 %v4198
        %v4323 = vunpack.c.l.b16 %v4208
        %v4324 = vunpack.c.l.b16 %v4222
        %v4325 = vunpack.c.l.b16 %v4232
        %v4326 = vunpack.c.l.b16 %v4246
        %v4327 = vunpack.c.l.b16 %v4256
        %v4328 = vunpack.c.l.b16 %v4270
        %v4329 = vunpack.c.l.b16 %v4280
        %v4330 = vpack.c.b16 %v4299, %v4298
        %v4331 = vpack.c.b16 %v4301, %v4300
        %v4332 = vpack.c.b16 %v4303, %v4302
        %v4333 = vpack.c.b16 %v4305, %v4304
        %v4334 = vpack.c.b16 %v4307, %v4306
        %v4335 = vpack.c.b16 %v4309, %v4308
        %v4336 = vpack.c.b16 %v4311, %v4310
        %v4337 = vpack.c.b16 %v4313, %v4312
        %v4338 = vpack.c.b16 %v4315, %v4314
        %v4339 = vpack.c.b16 %v4317, %v4316
        %v4340 = vpack.c.b16 %v4319, %v4318
        %v4341 = vpack.c.b16 %v4321, %v4320
        %v4342 = vpack.c.b16 %v4323, %v4322
        %v4343 = vpack.c.b16 %v4325, %v4324
        %v4344 = vpack.c.b16 %v4327, %v4326
        %v4345 = vpack.c.b16 %v4329, %v4328
        %v4378 = vunpack.c.l.b16 %v4282
        %v4379 = vunpack.c.l.b16 %v4283
        %v4380 = vunpack.c.l.b16 %v4284
        %v4381 = vunpack.c.l.b16 %v4285
        %v4382 = vunpack.c.l.b16 %v4286
        %v4383 = vunpack.c.l.b16 %v4287
        %v4384 = vunpack.c.l.b16 %v4288
        %v4385 = vunpack.c.l.b16 %v4289
        %v4386 = vunpack.c.l.b16 %v4290
        %v4387 = vunpack.c.l.b16 %v4291
        %v4388 = vunpack.c.l.b16 %v4292
        %v4389 = vunpack.c.l.b16 %v4293
        %v4390 = vunpack.c.l.b16 %v4294
        %v4391 = vunpack.c.l.b16 %v4295
        %v4392 = vunpack.c.l.b16 %v4296
        %v4393 = vunpack.c.l.b16 %v4297
        %v4394 = vpack.c.b16 %v4379, %v4378
        %v4395 = vpack.c.b16 %v4381, %v4380
        %v4396 = vpack.c.b16 %v4383, %v4382
        %v4397 = vpack.c.b16 %v4385, %v4384
        %v4398 = vpack.c.b16 %v4387, %v4386
        %v4399 = vpack.c.b16 %v4389, %v4388
        %v4400 = vpack.c.b16 %v4391, %v4390
        %v4401 = vpack.c.b16 %v4393, %v4392
        %4410 = vmatprep.subr.bf16.mxu0 0
        %4411 = vmatpush1.bf16.msra.mxu0 %v4401
        %4412 = vmatprep.subr.bf16.mxu0 0
        %4413 = vmatpush1.bf16.msra.mxu0 %v4400
        %4414 = vmatprep.subr.bf16.mxu0 0
        %4415 = vmatpush1.bf16.msra.mxu0 %v4399
        %4416 = vmatprep.subr.bf16.mxu0 0
        %4417 = vmatpush1.bf16.msra.mxu0 %v4398
        %4418 = vmatprep.subr.bf16.mxu0 0
        %4419 = vmatpush1.bf16.msra.mxu0 %v4397
        %4420 = vmatprep.subr.bf16.mxu0 0
        %4421 = vmatpush1.bf16.msra.mxu0 %v4396
        %4422 = vmatprep.subr.bf16.mxu0 0
        %4423 = vmatpush1.bf16.msra.mxu0 %v4395
        %4424 = vmatprep.subr.bf16.mxu0 0
        %4425 = vmatpush1.bf16.msra.mxu0 %v4394
        %4426 = vmatprep.subr.bf16.mxu0 0
        %4427 = vmatpush2.bf16.msra.mxu0 0
        %4428 = vmatprep.subr.bf16.mxu0 0
        %4429 = vmatpush2.bf16.msra.mxu0 0
        %4430 = vmatprep.subr.bf16.mxu0 0
        %4431 = vmatpush2.bf16.msra.mxu0 0
        %4432 = vmatprep.subr.bf16.mxu0 0
        %4433 = vmatpush2.bf16.msra.mxu0 0
        %4434 = vmatprep.subr.bf16.mxu0 0
        %4435 = vmatpush2.bf16.msra.mxu0 0
        %4436 = vmatprep.subr.bf16.mxu0 0
        %4437 = vmatpush2.bf16.msra.mxu0 0
        %4438 = vmatprep.subr.bf16.mxu0 0
        %4439 = vmatpush2.bf16.msra.mxu0 0
        %4440 = vmatprep.subr.bf16.mxu0 0
        %4441 = vmatpush2.bf16.msra.mxu0 0
        %4442 = vmatprep.mubr.bf16.mxu0 0
        %4443 = vmatmul.mubr.bf16.gmra.mxu0 %v4330
        %v4444 = vpop.f32.mrf.mxu0
        %v4445 = vadd.f32 0.0, %v4444
        %v4446 = vpop.f32.mrf.mxu0
        %v4447 = vpop.f32.mrf.mxu0
        %v4448 = vadd.f32 0.0, %v4447
        %v4449 = vpop.f32.mrf.mxu0
        %4450 = vmatprep.mubr.bf16.mxu0 0
        %4451 = vmatmul.mubr.bf16.gmra.mxu0 %v4331
        %v4452 = vpop.f32.mrf.mxu0
        %v4453 = vadd.f32 0.0, %v4452
        %v4454 = vpop.f32.mrf.mxu0
        %v4455 = vpop.f32.mrf.mxu0
        %v4456 = vadd.f32 0.0, %v4455
        %v4457 = vpop.f32.mrf.mxu0
        %4458 = vmatprep.mubr.bf16.mxu0 0
        %4459 = vmatmul.mubr.bf16.gmra.mxu0 %v4332
        %v4460 = vpop.f32.mrf.mxu0
        %v4461 = vadd.f32 0.0, %v4460
        %v4462 = vpop.f32.mrf.mxu0
        %v4463 = vpop.f32.mrf.mxu0
        %v4464 = vadd.f32 0.0, %v4463
        %v4465 = vpop.f32.mrf.mxu0
        %4466 = vmatprep.mubr.bf16.mxu0 0
        %4467 = vmatmul.mubr.bf16.gmra.mxu0 %v4333
        %v4468 = vpop.f32.mrf.mxu0
        %v4469 = vadd.f32 0.0, %v4468
        %v4470 = vpop.f32.mrf.mxu0
        %v4471 = vpop.f32.mrf.mxu0
        %v4472 = vadd.f32 0.0, %v4471
        %v4473 = vpop.f32.mrf.mxu0
        %4474 = vmatprep.mubr.bf16.mxu0 0
        %4475 = vmatmul.mubr.bf16.gmra.mxu0 %v4334
        %v4476 = vpop.f32.mrf.mxu0
        %v4477 = vadd.f32 0.0, %v4476
        %v4478 = vpop.f32.mrf.mxu0
        %v4479 = vpop.f32.mrf.mxu0
        %v4480 = vadd.f32 0.0, %v4479
        %v4481 = vpop.f32.mrf.mxu0
        %4482 = vmatprep.mubr.bf16.mxu0 0
        %4483 = vmatmul.mubr.bf16.gmra.mxu0 %v4335
        %v4484 = vpop.f32.mrf.mxu0
        %v4485 = vadd.f32 0.0, %v4484
        %v4486 = vpop.f32.mrf.mxu0
        %v4487 = vpop.f32.mrf.mxu0
        %v4488 = vadd.f32 0.0, %v4487
        %v4489 = vpop.f32.mrf.mxu0
        %4490 = vmatprep.mubr.bf16.mxu0 0
        %4491 = vmatmul.mubr.bf16.gmra.mxu0 %v4336
        %v4492 = vpop.f32.mrf.mxu0
        %v4493 = vadd.f32 0.0, %v4492
        %v4494 = vpop.f32.mrf.mxu0
        %v4495 = vpop.f32.mrf.mxu0
        %v4496 = vadd.f32 0.0, %v4495
        %v4497 = vpop.f32.mrf.mxu0
        %4498 = vmatprep.mubr.bf16.mxu0 0
        %4499 = vmatmul.mubr.bf16.gmra.mxu0 %v4337
        %v4500 = vpop.f32.mrf.mxu0
        %v4501 = vadd.f32 0.0, %v4500
        %v4502 = vpop.f32.mrf.mxu0
        %v4503 = vpop.f32.mrf.mxu0
        %v4504 = vadd.f32 0.0, %v4503
        %v4505 = vpop.f32.mrf.mxu0
        %4506 = vmatprep.mubr.bf16.mxu0 0
        %4507 = vmatmul.mubr.bf16.gmra.mxu0 %v4338
        %v4508 = vpop.f32.mrf.mxu0
        %v4509 = vadd.f32 0.0, %v4508
        %v4510 = vpop.f32.mrf.mxu0
        %v4511 = vpop.f32.mrf.mxu0
        %v4512 = vadd.f32 0.0, %v4511
        %v4513 = vpop.f32.mrf.mxu0
        %4514 = vmatprep.mubr.bf16.mxu0 0
        %4515 = vmatmul.mubr.bf16.gmra.mxu0 %v4339
        %v4516 = vpop.f32.mrf.mxu0
        %v4517 = vadd.f32 0.0, %v4516
        %v4518 = vpop.f32.mrf.mxu0
        %v4519 = vpop.f32.mrf.mxu0
        %v4520 = vadd.f32 0.0, %v4519
        %v4521 = vpop.f32.mrf.mxu0
        %4522 = vmatprep.mubr.bf16.mxu0 0
        %4523 = vmatmul.mubr.bf16.gmra.mxu0 %v4340
        %v4524 = vpop.f32.mrf.mxu0
        %v4525 = vadd.f32 0.0, %v4524
        %v4526 = vpop.f32.mrf.mxu0
        %v4527 = vpop.f32.mrf.mxu0
        %v4528 = vadd.f32 0.0, %v4527
        %v4529 = vpop.f32.mrf.mxu0
        %4530 = vmatprep.mubr.bf16.mxu0 0
        %4531 = vmatmul.mubr.bf16.gmra.mxu0 %v4341
        %v4532 = vpop.f32.mrf.mxu0
        %v4533 = vadd.f32 0.0, %v4532
        %v4534 = vpop.f32.mrf.mxu0
        %v4535 = vpop.f32.mrf.mxu0
        %v4536 = vadd.f32 0.0, %v4535
        %v4537 = vpop.f32.mrf.mxu0
        %4538 = vmatprep.mubr.bf16.mxu0 0
        %4539 = vmatmul.mubr.bf16.gmra.mxu0 %v4342
        %v4540 = vpop.f32.mrf.mxu0
        %v4541 = vadd.f32 0.0, %v4540
        %v4542 = vpop.f32.mrf.mxu0
        %v4543 = vpop.f32.mrf.mxu0
        %v4544 = vadd.f32 0.0, %v4543
        %v4545 = vpop.f32.mrf.mxu0
        %4546 = vmatprep.mubr.bf16.mxu0 0
        %4547 = vmatmul.mubr.bf16.gmra.mxu0 %v4343
        %v4548 = vpop.f32.mrf.mxu0
        %v4549 = vadd.f32 0.0, %v4548
        %v4550 = vpop.f32.mrf.mxu0
        %v4551 = vpop.f32.mrf.mxu0
        %v4552 = vadd.f32 0.0, %v4551
        %v4553 = vpop.f32.mrf.mxu0
        %4554 = vmatprep.mubr.bf16.mxu0 0
        %4555 = vmatmul.mubr.bf16.gmra.mxu0 %v4344
        %v4556 = vpop.f32.mrf.mxu0
        %v4557 = vadd.f32 0.0, %v4556
        %v4558 = vpop.f32.mrf.mxu0
        %v4559 = vpop.f32.mrf.mxu0
        %v4560 = vadd.f32 0.0, %v4559
        %v4561 = vpop.f32.mrf.mxu0
        %4562 = vmatprep.mubr.bf16.mxu0 0
        %4563 = vmatmul.mubr.bf16.gmra.mxu0 %v4345
        %v4564 = vpop.f32.mrf.mxu0
        %v4565 = vadd.f32 0.0, %v4564
        %v4566 = vpop.f32.mrf.mxu0
        %v4567 = vpop.f32.mrf.mxu0
        %v4568 = vadd.f32 0.0, %v4567
        %v4569 = vpop.f32.mrf.mxu0
        %4570 = vdwg.mxu0
        %v4571 = vadd.f32 %v3865, %v4445
        %v4572 = vadd.f32 %v3866, %v4448
        %v4573 = vadd.f32 %v3867, %v4453
        %v4574 = vadd.f32 %v3868, %v4456
        %v4575 = vadd.f32 %v3869, %v4461
        %v4576 = vadd.f32 %v3870, %v4464
        %v4577 = vadd.f32 %v3871, %v4469
        %v4578 = vadd.f32 %v3872, %v4472
        %v4579 = vadd.f32 %v3873, %v4477
        %v4580 = vadd.f32 %v3874, %v4480
        %v4581 = vadd.f32 %v3875, %v4485
        %v4582 = vadd.f32 %v3876, %v4488
        %v4583 = vadd.f32 %v3877, %v4493
        %v4584 = vadd.f32 %v3878, %v4496
        %v4585 = vadd.f32 %v3879, %v4501
        %v4586 = vadd.f32 %v3880, %v4504
        %v4587 = vadd.f32 %v3881, %v4509
        %v4588 = vadd.f32 %v3882, %v4512
        %v4589 = vadd.f32 %v3883, %v4517
        %v4590 = vadd.f32 %v3884, %v4520
        %v4591 = vadd.f32 %v3885, %v4525
        %v4592 = vadd.f32 %v3886, %v4528
        %v4593 = vadd.f32 %v3887, %v4533
        %v4594 = vadd.f32 %v3888, %v4536
        %v4595 = vadd.f32 %v3889, %v4541
        %v4596 = vadd.f32 %v3890, %v4544
        %v4597 = vadd.f32 %v3891, %v4549
        %v4598 = vadd.f32 %v3892, %v4552
        %v4599 = vadd.f32 %v3893, %v4557
        %v4600 = vadd.f32 %v3894, %v4560
        %v4601 = vadd.f32 %v3895, %v4565
        %v4602 = vadd.f32 %v3896, %v4568
        %v4619 = vrot.slane %v534, 5
        %v4620 = vrot.slane %v4619, 4
        %v4621 = vrot.slane %v535, 5
        %v4622 = vsel %vm1598, %v4620, %v4621
        %v4623 = vrot.slane %v4621, 4
        %v4624 = vrot.slane %v536, 5
        %v4625 = vsel %vm1598, %v4623, %v4624
        %v4626 = vrot.slane %v537, 5
        %v4627 = vrot.slane %v4626, 4
        %v4628 = vrot.slane %v538, 5
        %v4629 = vsel %vm1598, %v4627, %v4628
        %v4630 = vrot.slane %v4628, 4
        %v4631 = vrot.slane %v539, 5
        %v4632 = vsel %vm1598, %v4630, %v4631
        %v4633 = vrot.slane %v540, 5
        %v4634 = vrot.slane %v4633, 4
        %v4635 = vrot.slane %v541, 5
        %v4636 = vsel %vm1598, %v4634, %v4635
        %v4637 = vrot.slane %v4635, 4
        %v4638 = vrot.slane %v542, 5
        %v4639 = vsel %vm1598, %v4637, %v4638
        %v4640 = vrot.slane %v543, 5
        %v4641 = vrot.slane %v4640, 4
        %v4642 = vrot.slane %v544, 5
        %v4643 = vsel %vm1598, %v4641, %v4642
        %v4644 = vrot.slane %v4642, 4
        %v4645 = vrot.slane %v545, 5
        %v4646 = vsel %vm1598, %v4644, %v4645
        %v4647 = vrot.slane %v546, 5
        %v4648 = vrot.slane %v4647, 4
        %v4649 = vrot.slane %v547, 5
        %v4650 = vsel %vm1598, %v4648, %v4649
        %v4651 = vrot.slane %v4649, 4
        %v4652 = vrot.slane %v548, 5
        %v4653 = vsel %vm1598, %v4651, %v4652
        %v4654 = vrot.slane %v549, 5
        %v4655 = vrot.slane %v4654, 4
        %v4656 = vrot.slane %v550, 5
        %v4657 = vsel %vm1598, %v4655, %v4656
        %v4658 = vrot.slane %v4656, 4
        %v4659 = vrot.slane %v551, 5
        %v4660 = vsel %vm1598, %v4658, %v4659
        %v4661 = vrot.slane %v552, 5
        %v4662 = vrot.slane %v4661, 4
        %v4663 = vrot.slane %v553, 5
        %v4664 = vsel %vm1598, %v4662, %v4663
        %v4665 = vrot.slane %v4663, 4
        %v4666 = vrot.slane %v554, 5
        %v4667 = vsel %vm1598, %v4665, %v4666
        %v4668 = vrot.slane %v555, 5
        %v4669 = vrot.slane %v4668, 4
        %v4670 = vrot.slane %v556, 5
        %v4671 = vsel %vm1598, %v4669, %v4670
        %v4672 = vrot.slane %v4670, 4
        %v4673 = vrot.slane %v557, 5
        %v4674 = vsel %vm1598, %v4672, %v4673
        %v4675 = vrot.slane %v558, 5
        %v4676 = vrot.slane %v4675, 4
        %v4677 = vrot.slane %v559, 5
        %v4678 = vsel %vm1598, %v4676, %v4677
        %v4679 = vrot.slane %v4677, 4
        %v4680 = vrot.slane %v560, 5
        %v4681 = vsel %vm1598, %v4679, %v4680
        %v4682 = vrot.slane %v561, 5
        %v4683 = vrot.slane %v4682, 4
        %v4684 = vrot.slane %v562, 5
        %v4685 = vsel %vm1598, %v4683, %v4684
        %v4686 = vrot.slane %v4684, 4
        %v4687 = vrot.slane %v563, 5
        %v4688 = vsel %vm1598, %v4686, %v4687
        %v4689 = vrot.slane %v564, 5
        %v4690 = vrot.slane %v4689, 4
        %v4691 = vrot.slane %v565, 5
        %v4692 = vsel %vm1598, %v4690, %v4691
        %v4693 = vrot.slane %v4691, 4
        %v4694 = vrot.slane %v566, 5
        %v4695 = vsel %vm1598, %v4693, %v4694
        %v4696 = vrot.slane %v567, 5
        %v4697 = vrot.slane %v4696, 4
        %v4698 = vrot.slane %v568, 5
        %v4699 = vsel %vm1598, %v4697, %v4698
        %v4700 = vrot.slane %v4698, 4
        %v4701 = vrot.slane %v569, 5
        %v4702 = vsel %vm1598, %v4700, %v4701
        %v4703 = vrot.slane %v570, 5
        %v4704 = vrot.slane %v4703, 4
        %v4705 = vrot.slane %v571, 5
        %v4706 = vsel %vm1598, %v4704, %v4705
        %v4707 = vrot.slane %v4705, 4
        %v4708 = vrot.slane %v572, 5
        %v4709 = vsel %vm1598, %v4707, %v4708
        %v4710 = vrot.slane %v573, 5
        %v4711 = vrot.slane %v4710, 4
        %v4712 = vrot.slane %v574, 5
        %v4713 = vsel %vm1598, %v4711, %v4712
        %v4714 = vrot.slane %v4712, 4
        %v4715 = vrot.slane %v575, 5
        %v4716 = vsel %vm1598, %v4714, %v4715
        %v4717 = vrot.slane %v576, 5
        %v4718 = vrot.slane %v4717, 4
        %v4719 = vrot.slane %v577, 5
        %v4720 = vsel %vm1598, %v4718, %v4719
        %v4721 = vrot.slane %v4719, 4
        %v4722 = vrot.slane %v578, 5
        %v4723 = vsel %vm1598, %v4721, %v4722
        %v4724 = vrot.slane %v579, 5
        %v4725 = vrot.slane %v4724, 4
        %v4726 = vrot.slane %v580, 5
        %v4727 = vsel %vm1598, %v4725, %v4726
        %v4728 = vrot.slane %v4726, 4
        %v4729 = vrot.slane %v581, 5
        %v4730 = vsel %vm1598, %v4728, %v4729
        %s4731 = scalar_lea.vmem [#allocation9], 512
        %v4732 = vld [vmem:[%s4731] sm:$0xf]
        %v4733 = vld [vmem:[%s4731 + $0x4] sm:$0xf]
        %v4734 = vld [vmem:[%s4731 + $0x8] sm:$0xf]
        %v4735 = vld [vmem:[%s4731 + $0xc] sm:$0xf]
        %v4736 = vld [vmem:[%s4731 + $0x10] sm:$0xf]
        %v4737 = vld [vmem:[%s4731 + $0x14] sm:$0xf]
        %v4738 = vld [vmem:[%s4731 + $0x18] sm:$0xf]
        %v4739 = vld [vmem:[%s4731 + $0x1c] sm:$0xf]
        %v4740 = vld [vmem:[%s4731 + $0x20] sm:$0xf]
        %v4741 = vld [vmem:[%s4731 + $0x24] sm:$0xf]
        %v4742 = vld [vmem:[%s4731 + $0x28] sm:$0xf]
        %v4743 = vld [vmem:[%s4731 + $0x2c] sm:$0xf]
        %v4744 = vld [vmem:[%s4731 + $0x30] sm:$0xf]
        %v4745 = vld [vmem:[%s4731 + $0x34] sm:$0xf]
        %v4746 = vld [vmem:[%s4731 + $0x38] sm:$0xf]
        %v4747 = vld [vmem:[%s4731 + $0x3c] sm:$0xf]
        %v4748 = vunpack.c.l.b16 %v4622
        %v4749 = vunpack.c.l.b16 %v4625
        %v4750 = vunpack.c.l.b16 %v4629
        %v4751 = vunpack.c.l.b16 %v4632
        %v4752 = vunpack.c.l.b16 %v4636
        %v4753 = vunpack.c.l.b16 %v4639
        %v4754 = vunpack.c.l.b16 %v4643
        %v4755 = vunpack.c.l.b16 %v4646
        %v4756 = vunpack.c.l.b16 %v4650
        %v4757 = vunpack.c.l.b16 %v4653
        %v4758 = vunpack.c.l.b16 %v4657
        %v4759 = vunpack.c.l.b16 %v4660
        %v4760 = vunpack.c.l.b16 %v4664
        %v4761 = vunpack.c.l.b16 %v4667
        %v4762 = vunpack.c.l.b16 %v4671
        %v4763 = vunpack.c.l.b16 %v4674
        %v4764 = vunpack.c.l.b16 %v4678
        %v4765 = vunpack.c.l.b16 %v4681
        %v4766 = vunpack.c.l.b16 %v4685
        %v4767 = vunpack.c.l.b16 %v4688
        %v4768 = vunpack.c.l.b16 %v4692
        %v4769 = vunpack.c.l.b16 %v4695
        %v4770 = vunpack.c.l.b16 %v4699
        %v4771 = vunpack.c.l.b16 %v4702
        %v4772 = vunpack.c.l.b16 %v4706
        %v4773 = vunpack.c.l.b16 %v4709
        %v4774 = vunpack.c.l.b16 %v4713
        %v4775 = vunpack.c.l.b16 %v4716
        %v4776 = vunpack.c.l.b16 %v4720
        %v4777 = vunpack.c.l.b16 %v4723
        %v4778 = vunpack.c.l.b16 %v4727
        %v4779 = vunpack.c.l.b16 %v4730
        %v4780 = vpack.c.b16 %v4749, %v4748
        %v4781 = vpack.c.b16 %v4751, %v4750
        %v4782 = vpack.c.b16 %v4753, %v4752
        %v4783 = vpack.c.b16 %v4755, %v4754
        %v4784 = vpack.c.b16 %v4757, %v4756
        %v4785 = vpack.c.b16 %v4759, %v4758
        %v4786 = vpack.c.b16 %v4761, %v4760
        %v4787 = vpack.c.b16 %v4763, %v4762
        %v4788 = vpack.c.b16 %v4765, %v4764
        %v4789 = vpack.c.b16 %v4767, %v4766
        %v4790 = vpack.c.b16 %v4769, %v4768
        %v4791 = vpack.c.b16 %v4771, %v4770
        %v4792 = vpack.c.b16 %v4773, %v4772
        %v4793 = vpack.c.b16 %v4775, %v4774
        %v4794 = vpack.c.b16 %v4777, %v4776
        %v4795 = vpack.c.b16 %v4779, %v4778
        %v4828 = vunpack.c.l.b16 %v4732
        %v4829 = vunpack.c.l.b16 %v4733
        %v4830 = vunpack.c.l.b16 %v4734
        %v4831 = vunpack.c.l.b16 %v4735
        %v4832 = vunpack.c.l.b16 %v4736
        %v4833 = vunpack.c.l.b16 %v4737
        %v4834 = vunpack.c.l.b16 %v4738
        %v4835 = vunpack.c.l.b16 %v4739
        %v4836 = vunpack.c.l.b16 %v4740
        %v4837 = vunpack.c.l.b16 %v4741
        %v4838 = vunpack.c.l.b16 %v4742
        %v4839 = vunpack.c.l.b16 %v4743
        %v4840 = vunpack.c.l.b16 %v4744
        %v4841 = vunpack.c.l.b16 %v4745
        %v4842 = vunpack.c.l.b16 %v4746
        %v4843 = vunpack.c.l.b16 %v4747
        %v4844 = vpack.c.b16 %v4829, %v4828
        %v4845 = vpack.c.b16 %v4831, %v4830
        %v4846 = vpack.c.b16 %v4833, %v4832
        %v4847 = vpack.c.b16 %v4835, %v4834
        %v4848 = vpack.c.b16 %v4837, %v4836
        %v4849 = vpack.c.b16 %v4839, %v4838
        %v4850 = vpack.c.b16 %v4841, %v4840
        %v4851 = vpack.c.b16 %v4843, %v4842
        %4860 = vmatprep.subr.bf16.mxu0 0
        %4861 = vmatpush1.bf16.msra.mxu0 %v4851
        %4862 = vmatprep.subr.bf16.mxu0 0
        %4863 = vmatpush1.bf16.msra.mxu0 %v4850
        %4864 = vmatprep.subr.bf16.mxu0 0
        %4865 = vmatpush1.bf16.msra.mxu0 %v4849
        %4866 = vmatprep.subr.bf16.mxu0 0
        %4867 = vmatpush1.bf16.msra.mxu0 %v4848
        %4868 = vmatprep.subr.bf16.mxu0 0
        %4869 = vmatpush1.bf16.msra.mxu0 %v4847
        %4870 = vmatprep.subr.bf16.mxu0 0
        %4871 = vmatpush1.bf16.msra.mxu0 %v4846
        %4872 = vmatprep.subr.bf16.mxu0 0
        %4873 = vmatpush1.bf16.msra.mxu0 %v4845
        %4874 = vmatprep.subr.bf16.mxu0 0
        %4875 = vmatpush1.bf16.msra.mxu0 %v4844
        %4876 = vmatprep.subr.bf16.mxu0 0
        %4877 = vmatpush2.bf16.msra.mxu0 0
        %4878 = vmatprep.subr.bf16.mxu0 0
        %4879 = vmatpush2.bf16.msra.mxu0 0
        %4880 = vmatprep.subr.bf16.mxu0 0
        %4881 = vmatpush2.bf16.msra.mxu0 0
        %4882 = vmatprep.subr.bf16.mxu0 0
        %4883 = vmatpush2.bf16.msra.mxu0 0
        %4884 = vmatprep.subr.bf16.mxu0 0
        %4885 = vmatpush2.bf16.msra.mxu0 0
        %4886 = vmatprep.subr.bf16.mxu0 0
        %4887 = vmatpush2.bf16.msra.mxu0 0
        %4888 = vmatprep.subr.bf16.mxu0 0
        %4889 = vmatpush2.bf16.msra.mxu0 0
        %4890 = vmatprep.subr.bf16.mxu0 0
        %4891 = vmatpush2.bf16.msra.mxu0 0
        %4892 = vmatprep.mubr.bf16.mxu0 0
        %4893 = vmatmul.mubr.bf16.gmra.mxu0 %v4780
        %v4894 = vpop.f32.mrf.mxu0
        %v4895 = vadd.f32 0.0, %v4894
        %v4896 = vpop.f32.mrf.mxu0
        %v4897 = vpop.f32.mrf.mxu0
        %v4898 = vadd.f32 0.0, %v4897
        %v4899 = vpop.f32.mrf.mxu0
        %4900 = vmatprep.mubr.bf16.mxu0 0
        %4901 = vmatmul.mubr.bf16.gmra.mxu0 %v4781
        %v4902 = vpop.f32.mrf.mxu0
        %v4903 = vadd.f32 0.0, %v4902
        %v4904 = vpop.f32.mrf.mxu0
        %v4905 = vpop.f32.mrf.mxu0
        %v4906 = vadd.f32 0.0, %v4905
        %v4907 = vpop.f32.mrf.mxu0
        %4908 = vmatprep.mubr.bf16.mxu0 0
        %4909 = vmatmul.mubr.bf16.gmra.mxu0 %v4782
        %v4910 = vpop.f32.mrf.mxu0
        %v4911 = vadd.f32 0.0, %v4910
        %v4912 = vpop.f32.mrf.mxu0
        %v4913 = vpop.f32.mrf.mxu0
        %v4914 = vadd.f32 0.0, %v4913
        %v4915 = vpop.f32.mrf.mxu0
        %4916 = vmatprep.mubr.bf16.mxu0 0
        %4917 = vmatmul.mubr.bf16.gmra.mxu0 %v4783
        %v4918 = vpop.f32.mrf.mxu0
        %v4919 = vadd.f32 0.0, %v4918
        %v4920 = vpop.f32.mrf.mxu0
        %v4921 = vpop.f32.mrf.mxu0
        %v4922 = vadd.f32 0.0, %v4921
        %v4923 = vpop.f32.mrf.mxu0
        %4924 = vmatprep.mubr.bf16.mxu0 0
        %4925 = vmatmul.mubr.bf16.gmra.mxu0 %v4784
        %v4926 = vpop.f32.mrf.mxu0
        %v4927 = vadd.f32 0.0, %v4926
        %v4928 = vpop.f32.mrf.mxu0
        %v4929 = vpop.f32.mrf.mxu0
        %v4930 = vadd.f32 0.0, %v4929
        %v4931 = vpop.f32.mrf.mxu0
        %4932 = vmatprep.mubr.bf16.mxu0 0
        %4933 = vmatmul.mubr.bf16.gmra.mxu0 %v4785
        %v4934 = vpop.f32.mrf.mxu0
        %v4935 = vadd.f32 0.0, %v4934
        %v4936 = vpop.f32.mrf.mxu0
        %v4937 = vpop.f32.mrf.mxu0
        %v4938 = vadd.f32 0.0, %v4937
        %v4939 = vpop.f32.mrf.mxu0
        %4940 = vmatprep.mubr.bf16.mxu0 0
        %4941 = vmatmul.mubr.bf16.gmra.mxu0 %v4786
        %v4942 = vpop.f32.mrf.mxu0
        %v4943 = vadd.f32 0.0, %v4942
        %v4944 = vpop.f32.mrf.mxu0
        %v4945 = vpop.f32.mrf.mxu0
        %v4946 = vadd.f32 0.0, %v4945
        %v4947 = vpop.f32.mrf.mxu0
        %4948 = vmatprep.mubr.bf16.mxu0 0
        %4949 = vmatmul.mubr.bf16.gmra.mxu0 %v4787
        %v4950 = vpop.f32.mrf.mxu0
        %v4951 = vadd.f32 0.0, %v4950
        %v4952 = vpop.f32.mrf.mxu0
        %v4953 = vpop.f32.mrf.mxu0
        %v4954 = vadd.f32 0.0, %v4953
        %v4955 = vpop.f32.mrf.mxu0
        %4956 = vmatprep.mubr.bf16.mxu0 0
        %4957 = vmatmul.mubr.bf16.gmra.mxu0 %v4788
        %v4958 = vpop.f32.mrf.mxu0
        %v4959 = vadd.f32 0.0, %v4958
        %v4960 = vpop.f32.mrf.mxu0
        %v4961 = vpop.f32.mrf.mxu0
        %v4962 = vadd.f32 0.0, %v4961
        %v4963 = vpop.f32.mrf.mxu0
        %4964 = vmatprep.mubr.bf16.mxu0 0
        %4965 = vmatmul.mubr.bf16.gmra.mxu0 %v4789
        %v4966 = vpop.f32.mrf.mxu0
        %v4967 = vadd.f32 0.0, %v4966
        %v4968 = vpop.f32.mrf.mxu0
        %v4969 = vpop.f32.mrf.mxu0
        %v4970 = vadd.f32 0.0, %v4969
        %v4971 = vpop.f32.mrf.mxu0
        %4972 = vmatprep.mubr.bf16.mxu0 0
        %4973 = vmatmul.mubr.bf16.gmra.mxu0 %v4790
        %v4974 = vpop.f32.mrf.mxu0
        %v4975 = vadd.f32 0.0, %v4974
        %v4976 = vpop.f32.mrf.mxu0
        %v4977 = vpop.f32.mrf.mxu0
        %v4978 = vadd.f32 0.0, %v4977
        %v4979 = vpop.f32.mrf.mxu0
        %4980 = vmatprep.mubr.bf16.mxu0 0
        %4981 = vmatmul.mubr.bf16.gmra.mxu0 %v4791
        %v4982 = vpop.f32.mrf.mxu0
        %v4983 = vadd.f32 0.0, %v4982
        %v4984 = vpop.f32.mrf.mxu0
        %v4985 = vpop.f32.mrf.mxu0
        %v4986 = vadd.f32 0.0, %v4985
        %v4987 = vpop.f32.mrf.mxu0
        %4988 = vmatprep.mubr.bf16.mxu0 0
        %4989 = vmatmul.mubr.bf16.gmra.mxu0 %v4792
        %v4990 = vpop.f32.mrf.mxu0
        %v4991 = vadd.f32 0.0, %v4990
        %v4992 = vpop.f32.mrf.mxu0
        %v4993 = vpop.f32.mrf.mxu0
        %v4994 = vadd.f32 0.0, %v4993
        %v4995 = vpop.f32.mrf.mxu0
        %4996 = vmatprep.mubr.bf16.mxu0 0
        %4997 = vmatmul.mubr.bf16.gmra.mxu0 %v4793
        %v4998 = vpop.f32.mrf.mxu0
        %v4999 = vadd.f32 0.0, %v4998
        %v5000 = vpop.f32.mrf.mxu0
        %v5001 = vpop.f32.mrf.mxu0
        %v5002 = vadd.f32 0.0, %v5001
        %v5003 = vpop.f32.mrf.mxu0
        %5004 = vmatprep.mubr.bf16.mxu0 0
        %5005 = vmatmul.mubr.bf16.gmra.mxu0 %v4794
        %v5006 = vpop.f32.mrf.mxu0
        %v5007 = vadd.f32 0.0, %v5006
        %v5008 = vpop.f32.mrf.mxu0
        %v5009 = vpop.f32.mrf.mxu0
        %v5010 = vadd.f32 0.0, %v5009
        %v5011 = vpop.f32.mrf.mxu0
        %5012 = vmatprep.mubr.bf16.mxu0 0
        %5013 = vmatmul.mubr.bf16.gmra.mxu0 %v4795
        %v5014 = vpop.f32.mrf.mxu0
        %v5015 = vadd.f32 0.0, %v5014
        %v5016 = vpop.f32.mrf.mxu0
        %v5017 = vpop.f32.mrf.mxu0
        %v5018 = vadd.f32 0.0, %v5017
        %v5019 = vpop.f32.mrf.mxu0
        %5020 = vdwg.mxu0
        %v5021 = vadd.f32 %v4571, %v4895
        %v5022 = vadd.f32 %v4572, %v4898
        %v5023 = vadd.f32 %v4573, %v4903
        %v5024 = vadd.f32 %v4574, %v4906
        %v5025 = vadd.f32 %v4575, %v4911
        %v5026 = vadd.f32 %v4576, %v4914
        %v5027 = vadd.f32 %v4577, %v4919
        %v5028 = vadd.f32 %v4578, %v4922
        %v5029 = vadd.f32 %v4579, %v4927
        %v5030 = vadd.f32 %v4580, %v4930
        %v5031 = vadd.f32 %v4581, %v4935
        %v5032 = vadd.f32 %v4582, %v4938
        %v5033 = vadd.f32 %v4583, %v4943
        %v5034 = vadd.f32 %v4584, %v4946
        %v5035 = vadd.f32 %v4585, %v4951
        %v5036 = vadd.f32 %v4586, %v4954
        %v5037 = vadd.f32 %v4587, %v4959
        %v5038 = vadd.f32 %v4588, %v4962
        %v5039 = vadd.f32 %v4589, %v4967
        %v5040 = vadd.f32 %v4590, %v4970
        %v5041 = vadd.f32 %v4591, %v4975
        %v5042 = vadd.f32 %v4592, %v4978
        %v5043 = vadd.f32 %v4593, %v4983
        %v5044 = vadd.f32 %v4594, %v4986
        %v5045 = vadd.f32 %v4595, %v4991
        %v5046 = vadd.f32 %v4596, %v4994
        %v5047 = vadd.f32 %v4597, %v4999
        %v5048 = vadd.f32 %v4598, %v5002
        %v5049 = vadd.f32 %v4599, %v5007
        %v5050 = vadd.f32 %v4600, %v5010
        %v5051 = vadd.f32 %v4601, %v5015
        %v5052 = vadd.f32 %v4602, %v5018
        %v5053 = vld [vmem:[%s4] sm:$0x1]
        %v5055 = vlaneseq
        %v5056 = vshrl.u32 %v5055, 7
        %v5057 = vsub.s32 0, %v5056
        %v5058 = vrot.slane %v5053, %v5057
        %v5060 = vadd.f32 %v5021, %v5058
        %v5061 = vadd.f32 %v5022, %v5058
        %v5062 = vadd.f32 %v5023, %v5058
        %v5063 = vadd.f32 %v5024, %v5058
        %v5064 = vadd.f32 %v5025, %v5058
        %v5065 = vadd.f32 %v5026, %v5058
        %v5066 = vadd.f32 %v5027, %v5058
        %v5067 = vadd.f32 %v5028, %v5058
        %v5068 = vadd.f32 %v5029, %v5058
        %v5069 = vadd.f32 %v5030, %v5058
        %v5070 = vadd.f32 %v5031, %v5058
        %v5071 = vadd.f32 %v5032, %v5058
        %v5072 = vadd.f32 %v5033, %v5058
        %v5073 = vadd.f32 %v5034, %v5058
        %v5074 = vadd.f32 %v5035, %v5058
        %v5075 = vadd.f32 %v5036, %v5058
        %v5076 = vadd.f32 %v5037, %v5058
        %v5077 = vadd.f32 %v5038, %v5058
        %v5078 = vadd.f32 %v5039, %v5058
        %v5079 = vadd.f32 %v5040, %v5058
        %v5080 = vadd.f32 %v5041, %v5058
        %v5081 = vadd.f32 %v5042, %v5058
        %v5082 = vadd.f32 %v5043, %v5058
        %v5083 = vadd.f32 %v5044, %v5058
        %v5084 = vadd.f32 %v5045, %v5058
        %v5085 = vadd.f32 %v5046, %v5058
        %v5086 = vadd.f32 %v5047, %v5058
        %v5087 = vadd.f32 %v5048, %v5058
        %v5088 = vadd.f32 %v5049, %v5058
        %v5089 = vadd.f32 %v5050, %v5058
        %v5090 = vadd.f32 %v5051, %v5058
        %v5091 = vadd.f32 %v5052, %v5058
        %v5092 = vmax.f32 %v5060, 0.0
        %v5093 = vmax.f32 %v5061, 0.0
        %v5094 = vmax.f32 %v5062, 0.0
        %v5095 = vmax.f32 %v5063, 0.0
        %v5096 = vmax.f32 %v5064, 0.0
        %v5097 = vmax.f32 %v5065, 0.0
        %v5098 = vmax.f32 %v5066, 0.0
        %v5099 = vmax.f32 %v5067, 0.0
        %v5100 = vmax.f32 %v5068, 0.0
        %v5101 = vmax.f32 %v5069, 0.0
        %v5102 = vmax.f32 %v5070, 0.0
        %v5103 = vmax.f32 %v5071, 0.0
        %v5104 = vmax.f32 %v5072, 0.0
        %v5105 = vmax.f32 %v5073, 0.0
        %v5106 = vmax.f32 %v5074, 0.0
        %v5107 = vmax.f32 %v5075, 0.0
        %v5108 = vmax.f32 %v5076, 0.0
        %v5109 = vmax.f32 %v5077, 0.0
        %v5110 = vmax.f32 %v5078, 0.0
        %v5111 = vmax.f32 %v5079, 0.0
        %v5112 = vmax.f32 %v5080, 0.0
        %v5113 = vmax.f32 %v5081, 0.0
        %v5114 = vmax.f32 %v5082, 0.0
        %v5115 = vmax.f32 %v5083, 0.0
        %v5116 = vmax.f32 %v5084, 0.0
        %v5117 = vmax.f32 %v5085, 0.0
        %v5118 = vmax.f32 %v5086, 0.0
        %v5119 = vmax.f32 %v5087, 0.0
        %v5120 = vmax.f32 %v5088, 0.0
        %v5121 = vmax.f32 %v5089, 0.0
        %v5122 = vmax.f32 %v5090, 0.0
        %v5123 = vmax.f32 %v5091, 0.0
        %v5124 = vld [vmem:[#allocation2] sm:$0x1]
        %v5125 = vadd.f32 %v5092, %v5093
        %v5126 = vadd.f32 %v5125, %v5094
        %v5127 = vadd.f32 %v5126, %v5095
        %v5128 = vadd.f32 %v5127, %v5096
        %v5129 = vadd.f32 %v5128, %v5097
        %v5130 = vadd.f32 %v5129, %v5098
        %v5131 = vadd.f32 %v5130, %v5099
        %v5132 = vadd.f32 %v5131, %v5100
        %v5133 = vadd.f32 %v5132, %v5101
        %v5134 = vadd.f32 %v5133, %v5102
        %v5135 = vadd.f32 %v5134, %v5103
        %v5136 = vadd.f32 %v5135, %v5104
        %v5137 = vadd.f32 %v5136, %v5105
        %v5138 = vadd.f32 %v5137, %v5106
        %v5139 = vadd.f32 %v5138, %v5107
        %v5140 = vadd.f32 %v5139, %v5108
        %v5141 = vadd.f32 %v5140, %v5109
        %v5142 = vadd.f32 %v5141, %v5110
        %v5143 = vadd.f32 %v5142, %v5111
        %v5144 = vadd.f32 %v5143, %v5112
        %v5145 = vadd.f32 %v5144, %v5113
        %v5146 = vadd.f32 %v5145, %v5114
        %v5147 = vadd.f32 %v5146, %v5115
        %v5148 = vadd.f32 %v5147, %v5116
        %v5149 = vadd.f32 %v5148, %v5117
        %v5150 = vadd.f32 %v5149, %v5118
        %v5151 = vadd.f32 %v5150, %v5119
        %v5152 = vadd.f32 %v5151, %v5120
        %v5153 = vadd.f32 %v5152, %v5121
        %v5154 = vadd.f32 %v5153, %v5122
        %v5155 = vadd.f32 %v5154, %v5123
        %v5156 = vrot.slane %v5155, 4
        %v5157 = vadd.f32 %v5155, %v5156
        %v5158 = vrot.slane %v5157, 2
        %v5159 = vadd.f32 %v5157, %v5158
        %v5160 = vrot.slane %v5159, 1
        %v5161 = vadd.f32 %v5159, %v5160
        %v5162 = vadd.f32 %v5124, %v5161
        %5163 = vst [vmem:[#allocation2] sm:$0x1] %v5162
        // Predicated region
        $region73: #{tpu_custom_call.1} parent=47 // pred_check
          %p5164 = pneg %p433
        $region74: #{tpu_custom_call.1} parent=47 // pred_check_branch
          %5166 = sbr.rel (%p5164) target = $region76
        $region75: #{tpu_custom_call.1} parent=47 // pred_region
          %v5167 = vld [vmem:[#allocation2] sm:$0x1]
          %v5168 = vld [vmem:[#allocation11] sm:$0xff]
          %v5169 = vld [vmem:[#allocation11 + $0x8] sm:$0xff]
          %v5170 = vld [vmem:[#allocation11 + $0x10] sm:$0xff]
          %v5171 = vld [vmem:[#allocation11 + $0x18] sm:$0xff]
          %v5172 = vld [vmem:[#allocation11 + $0x20] sm:$0xff]
          %v5173 = vld [vmem:[#allocation11 + $0x28] sm:$0xff]
          %v5174 = vld [vmem:[#allocation11 + $0x30] sm:$0xff]
          %v5175 = vld [vmem:[#allocation11 + $0x38] sm:$0xff]
          %v5176 = vld [vmem:[#allocation11 + $0x40] sm:$0xff]
          %v5177 = vld [vmem:[#allocation11 + $0x48] sm:$0xff]
          %v5178 = vld [vmem:[#allocation11 + $0x50] sm:$0xff]
          %v5179 = vld [vmem:[#allocation11 + $0x58] sm:$0xff]
          %v5180 = vld [vmem:[#allocation11 + $0x60] sm:$0xff]
          %v5181 = vld [vmem:[#allocation11 + $0x68] sm:$0xff]
          %v5182 = vld [vmem:[#allocation11 + $0x70] sm:$0xff]
          %v5183 = vld [vmem:[#allocation11 + $0x78] sm:$0xff]
          %v5184 = vld [vmem:[%s6] sm:$0x1]
          %5185 = vmatprep.subr.mxu0 0.0
          %5186 = vmatpush1.msra.mxu0 %v5183
          %5187 = vmatprep.subr.mxu0 0.0
          %5188 = vmatpush1.msra.mxu0 %v5182
          %5189 = vmatprep.subr.mxu0 0.0
          %5190 = vmatpush1.msra.mxu0 %v5181
          %5191 = vmatprep.subr.mxu0 0.0
          %5192 = vmatpush1.msra.mxu0 %v5180
          %5193 = vmatprep.subr.mxu0 0.0
          %5194 = vmatpush1.msra.mxu0 %v5179
          %5195 = vmatprep.subr.mxu0 0.0
          %5196 = vmatpush1.msra.mxu0 %v5178
          %5197 = vmatprep.subr.mxu0 0.0
          %5198 = vmatpush1.msra.mxu0 %v5177
          %5199 = vmatprep.subr.mxu0 0.0
          %5200 = vmatpush1.msra.mxu0 %v5176
          %5201 = vmatprep.subr.mxu0 0.0
          %5202 = vmatpush1.msra.mxu0 %v5175
          %5203 = vmatprep.subr.mxu0 0.0
          %5204 = vmatpush1.msra.mxu0 %v5174
          %5205 = vmatprep.subr.mxu0 0.0
          %5206 = vmatpush1.msra.mxu0 %v5173
          %5207 = vmatprep.subr.mxu0 0.0
          %5208 = vmatpush1.msra.mxu0 %v5172
          %5209 = vmatprep.subr.mxu0 0.0
          %5210 = vmatpush1.msra.mxu0 %v5171
          %5211 = vmatprep.subr.mxu0 0.0
          %5212 = vmatpush1.msra.mxu0 %v5170
          %5213 = vmatprep.subr.mxu0 0.0
          %5214 = vmatpush1.msra.mxu0 %v5169
          %5215 = vmatprep.subr.mxu0 0.0
          %5216 = vmatpush1.msra.mxu0 %v5168
          %5217 = vmatprep.subr.mxu0 0.0
          %5218 = vmatpush2.msra.mxu0 0.0
          %5219 = vmatprep.subr.mxu0 0.0
          %5220 = vmatpush2.msra.mxu0 0.0
          %5221 = vmatprep.subr.mxu0 0.0
          %5222 = vmatpush2.msra.mxu0 0.0
          %5223 = vmatprep.subr.mxu0 0.0
          %5224 = vmatpush2.msra.mxu0 0.0
          %5225 = vmatprep.subr.mxu0 0.0
          %5226 = vmatpush2.msra.mxu0 0.0
          %5227 = vmatprep.subr.mxu0 0.0
          %5228 = vmatpush2.msra.mxu0 0.0
          %5229 = vmatprep.subr.mxu0 0.0
          %5230 = vmatpush2.msra.mxu0 0.0
          %5231 = vmatprep.subr.mxu0 0.0
          %5232 = vmatpush2.msra.mxu0 0.0
          %5233 = vmatprep.subr.mxu0 0.0
          %5234 = vmatpush2.msra.mxu0 0.0
          %5235 = vmatprep.subr.mxu0 0.0
          %5236 = vmatpush2.msra.mxu0 0.0
          %5237 = vmatprep.subr.mxu0 0.0
          %5238 = vmatpush2.msra.mxu0 0.0
          %5239 = vmatprep.subr.mxu0 0.0
          %5240 = vmatpush2.msra.mxu0 0.0
          %5241 = vmatprep.subr.mxu0 0.0
          %5242 = vmatpush2.msra.mxu0 0.0
          %5243 = vmatprep.subr.mxu0 0.0
          %5244 = vmatpush2.msra.mxu0 0.0
          %5245 = vmatprep.subr.mxu0 0.0
          %5246 = vmatpush2.msra.mxu0 0.0
          %5247 = vmatprep.subr.mxu0 0.0
          %5248 = vmatpush2.msra.mxu0 0.0
          %5249 = vmatprep.mubr.f32.mxu0 0.0
          %5250 = vmatmul.mubr.f32.gmra.mxu0 %v5167
          %v5251 = vpop.f32.mrf.mxu0
          %v5252 = vadd.f32 %v5184, %v5251
          %v5253 = vpop.f32.mrf.mxu0
          %5254 = vdwg.mxu0
          %5255 = vst [vmem:[%s428] sm:$0x1] %v5252
        $region76: #{tpu_custom_call.1} parent=47 // pred_fallthru
          _
        %s5256 = sand.u32 %s216, 1
        %s5257 = scalar_lea.sflag [#allocation5], %s5256
        %s5258 = sand.u32 %s216, 1
        %s5259 = scalar_lea.vmem [#allocation12], %s5258
        // Predicated region
        $region77: #{tpu_custom_call.1} parent=47 // pred_check
          %p5260 = pneg %p226
        $region78: #{tpu_custom_call.1} parent=47 // pred_check_branch
          %5262 = sbr.rel (%p5260) target = $region80
        $region79: #{tpu_custom_call.1} parent=47 // pred_region
          %s5264 = ssub.s32 16, 16
          %5265 = vsyncadd %s5257, %s5264
          %s5266 = smul.addr %s32, 16
          %s5267 = scalar_lea.hbm %s7, %s5266
          %s5269 = sshll.u32 %s5259, 4
          %s5270 = int_to_ptr.vmem [resolvable:$true] %s5269
          %5272 = dma.vmem_to_hbm [thread:$0]  %s5270, 16, %s5267, %s5257
        $region80: #{tpu_custom_call.1} parent=47 // pred_fallthru
          _
      $region48: #{tpu_custom_call.1} parent=5 // pred_fallthru
        _
      %p5273 = scmp.le.s32.totalorder 2, %s23
      // Predicated region
      $region81: #{tpu_custom_call.1} parent=5 // pred_check
        %p5274 = pneg %p5273
      $region82: #{tpu_custom_call.1} parent=5 // pred_check_branch
        %5276 = sbr.rel (%p5274) target = $region84
      $region83: #{tpu_custom_call.1} parent=5 // pred_region
        %s5277 = ssub.s32 %s23, 2
        // Predicated region
        $region85: #{tpu_custom_call.1} parent=83 // pred_check
          %p5278 = pneg %p232
        $region86: #{tpu_custom_call.1} parent=83 // pred_check_branch
          %5280 = sbr.rel (%p5278) target = $region88
        $region87: #{tpu_custom_call.1} parent=83 // pred_region
          %s5281 = sand.u32 %s217, 1
          %s5282 = scalar_lea.sflag [#allocation5], %s5281
          %s5283 = sand.u32 %s217, 1
          %s5284 = scalar_lea.vmem [#allocation12], %s5283
          %5285 = dma.done %s5282, 16
        $region88: #{tpu_custom_call.1} parent=83 // pred_fallthru
          _
      $region84: #{tpu_custom_call.1} parent=5 // pred_fallthru
        _
    $region6: #{tpu_custom_call.1} parent=1 // loop_footer
      %s27 = sadd.s32 1, %s23
    $region7: #{tpu_custom_call.1} parent=1 // loop_footer_branch
      %22 = sbr.rel target = $region3
    $region8: #{tpu_custom_call.1} parent=1 // loop_exit
      _
    %5286 = vsyncpa [#allocation4], 1
    %s5287 = scalar_lea.sflag [#allocation4], 1
    %5288 = vsyncpa %s5287, 1
    %5289 = vsyncpa [#allocation7], 1
    %s5290 = scalar_lea.sflag [#allocation7], 1
    %5291 = vsyncpa %s5290, 1
    %5292 = vsyncpa [#allocation10], 1
    %5293 = vsyncpa [#allocation5], 1
    %s5294 = scalar_lea.sflag [#allocation5], 1
    %5295 = vsyncpa %s5294, 1

</llo_original>
